<compile_context>
chip_gen: v7x
topology: tpu7x:2x2x1
jax: 0.10.0
libtpu: 0.0.40
codegen_flags: <defaults>
</compile_context>

<pallas_src>
import functools
import math

import jax
import jax.numpy as jnp
from jax.experimental import pallas as pl
from jax.experimental.pallas import tpu as pltpu

F32 = jnp.float32
BF16 = jnp.bfloat16


# ---------------------------------------------------------------------------
# In-kernel helpers (traced inline inside the fused kernel)
# ---------------------------------------------------------------------------

def _mm(a_bf16, w_bf16):
    """MXU matmul: bf16 operands, f32 accumulation."""
    return jnp.dot(a_bf16, w_bf16, preferred_element_type=F32)


def _pre_norm(x_f32, g, b):
    """LayerNorm over last dim (stats in f32, torch eps=1e-5); bf16 out for the MXU."""
    mu = jnp.mean(x_f32, axis=-1, keepdims=True)
    d = x_f32 - mu
    var = jnp.mean(d * d, axis=-1, keepdims=True)
    return (d * jax.lax.rsqrt(var + 1e-5) * g + b).astype(BF16)


def _split_heads(x2, B, S, H, dh, col0):
    """(B*S, >=col0+H*dh) -> (H*B, S, dh).

    Per-head lane slices are stacked on a NEW leading (major) dim -- no lane-dim
    concat -- followed by free major-dim reshapes.  The (h, b) leading order is
    consistent across Q/K/V so batch pairing is preserved.
    """
    heads = [x2[:, col0 + h * dh: col0 + (h + 1) * dh].reshape(B, S, dh)
             for h in range(H)]
    return jnp.stack(heads, axis=0).reshape(H * B, S, dh)


def _attention(q3, k3, v3, mask):
    """Scaled-dot-product attention batched over (head, batch) in ONE einsum pair.

    The 1/sqrt(dh) scale is already folded into the Q projection weights.
    """
    s = jnp.einsum("bqd,bkd->bqk", q3, k3, preferred_element_type=F32)
    if mask is not None:
        s = s + mask                                    # broadcast over (h, b)
    s = s - jnp.max(s, axis=-1, keepdims=True)
    p = jnp.exp(s)
    p = p * pl.reciprocal(jnp.sum(p, axis=-1, keepdims=True), approx=True)
    return jnp.einsum("bqk,bkd->bqd", p.astype(BF16), v3,
                      preferred_element_type=F32)       # (H*B, Sq, dh) f32


def _merge_heads_project(ctx, wo3, bo, B, Sq, H, dh):
    """Output projection without any head transpose: wo is pre-reshaped to
    (H, dh, D); do a per-head batched matmul and sum over the head (major) axis."""
    ctx_m = ctx.reshape(H, B * Sq, dh).astype(BF16)     # free major/minor reshape
    out = jnp.einsum("hnd,hde->hne", ctx_m, wo3, preferred_element_type=F32)
    return jnp.sum(out, axis=0) + bo                    # (B*Sq, D) f32


def _self_attention(n_bf16, wqkv, bqkv, wo3, bo, B, S, H, dh, mask):
    D = H * dh
    qkv = (_mm(n_bf16, wqkv) + bqkv).astype(BF16)       # fused QKV: one (N,D)x(D,3D)
    q3 = _split_heads(qkv, B, S, H, dh, 0)
    k3 = _split_heads(qkv, B, S, H, dh, D)
    v3 = _split_heads(qkv, B, S, H, dh, 2 * D)
    return _merge_heads_project(_attention(q3, k3, v3, mask), wo3, bo, B, S, H, dh)


def _cross_attention(nq_bf16, e_bf16, wq, bq, wkv, bkv, wo3, bo, B, Sq, Skv, H, dh):
    D = H * dh
    q2 = (_mm(nq_bf16, wq) + bq).astype(BF16)           # (B*Sq, D), scale folded in wq
    kv = (_mm(e_bf16, wkv) + bkv).astype(BF16)          # fused KV: (B*Skv, 2D)
    q3 = _split_heads(q2, B, Sq, H, dh, 0)
    k3 = _split_heads(kv, B, Skv, H, dh, 0)
    v3 = _split_heads(kv, B, Skv, H, dh, D)
    return _merge_heads_project(_attention(q3, k3, v3, None), wo3, bo, B, Sq, H, dh)


def _ffn(n_bf16, w1, b1, w2, b2):
    h = jnp.maximum(_mm(n_bf16, w1) + b1, 0.0).astype(BF16)
    return _mm(h, w2) + b2


# ---------------------------------------------------------------------------
# The ONE fused kernel: encoder block + decoder block
# ---------------------------------------------------------------------------

def encoder_decoder_kernel(*refs, B, S_enc, S_dec, num_heads):
    (xe_ref,
     e_ln1g, e_ln1b, e_wqkv, e_bqkv, e_wo3, e_bo,
     e_ln2g, e_ln2b, e_w1, e_b1, e_w2, e_b2,
     xd_ref,
     d_ln1g, d_ln1b, d_wqkv, d_bqkv, d_wo3, d_bo,
     d_ln2g, d_ln2b, d_wqc, d_bqc, d_wkvc, d_bkvc, d_wo3c, d_boc,
     d_ln3g, d_ln3b, d_w1, d_b1, d_w2, d_b2,
     o_ref) = refs

    H = num_heads
    D = xe_ref.shape[-1]
    dh = D // H

    # ----- encoder block: pre-norm self-attn + residual, pre-norm FFN + residual -----
    xe = xe_ref[...].astype(F32)                        # (B*S_enc, D) residual, f32
    n = _pre_norm(xe, e_ln1g[...], e_ln1b[...])
    xe = xe + _self_attention(n, e_wqkv[...], e_bqkv[...], e_wo3[...], e_bo[...],
                              B, S_enc, H, dh, mask=None)
    n = _pre_norm(xe, e_ln2g[...], e_ln2b[...])
    xe = xe + _ffn(n, e_w1[...], e_b1[...], e_w2[...], e_b2[...])
    enc_bf16 = xe.astype(BF16)                          # encoder output stays in VMEM

    # ----- decoder block -----
    xd = xd_ref[...].astype(F32)                        # (B*S_dec, D) residual, f32

    # Causal mask built once (hoisted).  Diagonal is always unmasked so the row-max
    # subtraction keeps exp finite; switch to jnp.where on post-max scores if padding
    # masks are ever added.
    row = jax.lax.broadcasted_iota(jnp.int32, (S_dec, S_dec), 0)
    col = jax.lax.broadcasted_iota(jnp.int32, (S_dec, S_dec), 1)
    causal = jnp.where(col <= row, 0.0, -1e30).astype(F32)

    n = _pre_norm(xd, d_ln1g[...], d_ln1b[...])
    xd = xd + _self_attention(n, d_wqkv[...], d_bqkv[...], d_wo3[...], d_bo[...],
                              B, S_dec, H, dh, mask=causal)     # dropout1 = identity
    n = _pre_norm(xd, d_ln2g[...], d_ln2b[...])
    xd = xd + _cross_attention(n, enc_bf16, d_wqc[...], d_bqc[...], d_wkvc[...],
                               d_bkvc[...], d_wo3c[...], d_boc[...],
                               B, S_dec, S_enc, H, dh)          # dropout2 = identity
    n = _pre_norm(xd, d_ln3g[...], d_ln3b[...])
    xd = xd + _ffn(n, d_w1[...], d_b1[...], d_w2[...], d_b2[...])  # dropout3 = identity

    o_ref[...] = xd.astype(o_ref.dtype)                 # 2-D (B*S_dec, D) slab


# ---------------------------------------------------------------------------
# Parameter init (deterministic) + forward glue
# ---------------------------------------------------------------------------

def init_params(key, d_model, num_heads, d_ff, vocab_size, max_len):
    dh = d_model // num_heads
    q_scale = 1.0 / math.sqrt(dh)       # folded into Q projection weights (bias is 0)
    ks = jax.random.split(key, 15)

    def w(k, shape):
        return jax.random.normal(k, shape, F32) * 0.02

    def bf(x):
        return x.astype(BF16)

    def zeros(n):
        return jnp.zeros((1, n), F32)

    def ln(d):
        return jnp.ones((1, d), F32), jnp.zeros((1, d), F32)

    def wo3(k):
        # output projection pre-reshaped to (H, dh, D) so the kernel never transposes
        return bf(w(k, (d_model, d_model)).reshape(num_heads, dh, d_model))

    def wqkv(k):
        m = w(k, (d_model, 3 * d_model))
        m = m.at[:, :d_model].multiply(q_scale)          # fold 1/sqrt(dh) into Q block
        return bf(m)

    enc = {
        "tok": w(ks[0], (vocab_size, d_model)),
        "pos": w(ks[1], (max_len, d_model)),
        "wqkv": wqkv(ks[2]), "bqkv": zeros(3 * d_model),
        "wo3": wo3(ks[3]), "bo": zeros(d_model),
        "w1": bf(w(ks[4], (d_model, d_ff))), "b1": zeros(d_ff),
        "w2": bf(w(ks[5], (d_ff, d_model))), "b2": zeros(d_model),
    }
    enc["ln1_g"], enc["ln1_b"] = ln(d_model)
    enc["ln2_g"], enc["ln2_b"] = ln(d_model)

    dec = {
        "tok": w(ks[6], (vocab_size, d_model)),
        "pos": w(ks[7], (max_len, d_model)),
        "wqkv": wqkv(ks[8]), "bqkv": zeros(3 * d_model),
        "wo3": wo3(ks[9]), "bo": zeros(d_model),
        "wq_c": bf(w(ks[10], (d_model, d_model)) * q_scale), "bq_c": zeros(d_model),
        "wkv_c": bf(w(ks[11], (d_model, 2 * d_model))), "bkv_c": zeros(2 * d_model),
        "wo3_c": wo3(ks[12]), "bo_c": zeros(d_model),
        "w1": bf(w(ks[13], (d_model, d_ff))), "b1": zeros(d_ff),
        "w2": bf(w(ks[14], (d_ff, d_model))), "b2": zeros(d_model),
    }
    dec["ln1_g"], dec["ln1_b"] = ln(d_model)
    dec["ln2_g"], dec["ln2_b"] = ln(d_model)
    dec["ln3_g"], dec["ln3_b"] = ln(d_model)
    return {"enc": enc, "dec": dec}


def encoder_decoder_forward(params, X_encoder, X_decoder, *, num_heads):
    ep, dp = params["enc"], params["dec"]
    B, S_enc = X_encoder.shape
    _, S_dec = X_decoder.shape
    D = ep["tok"].shape[-1]

    # Embedding gather + positional add: cheap glue, left to XLA.
    # TODO(synk): sqrt(d_model) token-embedding scaling / stochastic dropout not modeled.
    enc_emb = jnp.take(ep["tok"], X_encoder, axis=0) + ep["pos"][None, :S_enc, :]
    dec_emb = jnp.take(dp["tok"], X_decoder, axis=0) + dp["pos"][None, :S_dec, :]

    # Present kernel inputs as 2-D (B*S, D) bf16 slabs (half the DMA bytes, no
    # in-kernel batch fold).
    xe = enc_emb.reshape(B * S_enc, D).astype(BF16)
    xd = dec_emb.reshape(B * S_dec, D).astype(BF16)

    args = (xe,
            ep["ln1_g"], ep["ln1_b"], ep["wqkv"], ep["bqkv"], ep["wo3"], ep["bo"],
            ep["ln2_g"], ep["ln2_b"], ep["w1"], ep["b1"], ep["w2"], ep["b2"],
            xd,
            dp["ln1_g"], dp["ln1_b"], dp["wqkv"], dp["bqkv"], dp["wo3"], dp["bo"],
            dp["ln2_g"], dp["ln2_b"], dp["wq_c"], dp["bq_c"], dp["wkv_c"], dp["bkv_c"],
            dp["wo3_c"], dp["bo_c"],
            dp["ln3_g"], dp["ln3_b"], dp["w1"], dp["b1"], dp["w2"], dp["b2"])

    vmem = pl.BlockSpec(memory_space=pltpu.MemorySpace.VMEM)
    kern = functools.partial(encoder_decoder_kernel,
                             B=B, S_enc=S_enc, S_dec=S_dec, num_heads=num_heads)

    # Single launch, grid-less: all weights + slabs (<100 KB) resident in VMEM.
    # When scaling up: add a "parallel" grid axis over batch/row tiles (v7x: 2 TCs)
    # and set pltpu.CompilerParams(vmem_limit_bytes=...) sized for the generation.
    out2 = pl.pallas_call(
        kern,
        out_shape=jax.ShapeDtypeStruct((B * S_dec, D), F32),
        in_specs=[vmem] * len(args),
        out_specs=vmem,
    )(*args)
    return out2.reshape(B, S_dec, D)


# ---------------------------------------------------------------------------
# Main
# ---------------------------------------------------------------------------

if __name__ == "__main__":
    d_model, h, d_ff, vocab_size, max_len = 32, 4, 64, 100, 16
    B, S_enc, S_dec = 2, 8, 8

    key = jax.random.PRNGKey(0)
    kp, ke, kd = jax.random.split(key, 3)

    params = init_params(kp, d_model, h, d_ff, vocab_size, max_len)
    X_encoder = jax.random.randint(ke, (B, S_enc), 0, vocab_size, dtype=jnp.int32)
    X_decoder = jax.random.randint(kd, (B, S_dec), 0, vocab_size, dtype=jnp.int32)

    # num_heads bound statically (not part of the jitted pytree -> no tracer math)
    fwd = jax.jit(functools.partial(encoder_decoder_forward, num_heads=h))
    out = jax.block_until_ready(fwd(params, X_encoder, X_decoder))

    assert out.shape == (B, S_dec, d_model), out.shape
    assert jnp.all(jnp.isfinite(out))
    print("KERNEL_OK")
</pallas_src>

<mosaic_0001>
module attributes {stable_mosaic.version = 11 : i64} {
  func.func @encoder_decoder_kernel(%arg0: memref<16x32xbf16, #tpu.memory_space<vmem>>, %arg1: memref<1x32xf32, #tpu.memory_space<vmem>>, %arg2: memref<1x32xf32, #tpu.memory_space<vmem>>, %arg3: memref<32x96xbf16, #tpu.memory_space<vmem>>, %arg4: memref<1x96xf32, #tpu.memory_space<vmem>>, %arg5: memref<4x8x32xbf16, #tpu.memory_space<vmem>>, %arg6: memref<1x32xf32, #tpu.memory_space<vmem>>, %arg7: memref<1x32xf32, #tpu.memory_space<vmem>>, %arg8: memref<1x32xf32, #tpu.memory_space<vmem>>, %arg9: memref<32x64xbf16, #tpu.memory_space<vmem>>, %arg10: memref<1x64xf32, #tpu.memory_space<vmem>>, %arg11: memref<64x32xbf16, #tpu.memory_space<vmem>>, %arg12: memref<1x32xf32, #tpu.memory_space<vmem>>, %arg13: memref<16x32xbf16, #tpu.memory_space<vmem>>, %arg14: memref<1x32xf32, #tpu.memory_space<vmem>>, %arg15: memref<1x32xf32, #tpu.memory_space<vmem>>, %arg16: memref<32x96xbf16, #tpu.memory_space<vmem>>, %arg17: memref<1x96xf32, #tpu.memory_space<vmem>>, %arg18: memref<4x8x32xbf16, #tpu.memory_space<vmem>>, %arg19: memref<1x32xf32, #tpu.memory_space<vmem>>, %arg20: memref<1x32xf32, #tpu.memory_space<vmem>>, %arg21: memref<1x32xf32, #tpu.memory_space<vmem>>, %arg22: memref<32x32xbf16, #tpu.memory_space<vmem>>, %arg23: memref<1x32xf32, #tpu.memory_space<vmem>>, %arg24: memref<32x64xbf16, #tpu.memory_space<vmem>>, %arg25: memref<1x64xf32, #tpu.memory_space<vmem>>, %arg26: memref<4x8x32xbf16, #tpu.memory_space<vmem>>, %arg27: memref<1x32xf32, #tpu.memory_space<vmem>>, %arg28: memref<1x32xf32, #tpu.memory_space<vmem>>, %arg29: memref<1x32xf32, #tpu.memory_space<vmem>>, %arg30: memref<32x64xbf16, #tpu.memory_space<vmem>>, %arg31: memref<1x64xf32, #tpu.memory_space<vmem>>, %arg32: memref<64x32xbf16, #tpu.memory_space<vmem>>, %arg33: memref<1x32xf32, #tpu.memory_space<vmem>>, %arg34: memref<16x32xf32, #tpu.memory_space<vmem>>) attributes {dimension_semantics = [], scalar_prefetch = 0 : i64, scratch_operands = 0 : i64, tpu.core_type = #tpu.core_type<tc>} {
    %c0 = arith.constant 0 : index
    %c0_0 = arith.constant 0 : index
    %0 = vector.load %arg0[%c0, %c0_0] : memref<16x32xbf16, #tpu.memory_space<vmem>>, vector<16x32xbf16>
    %1 = arith.extf %0 : vector<16x32xbf16> to vector<16x32xf32>
    %c0_1 = arith.constant 0 : index
    %c0_2 = arith.constant 0 : index
    %2 = vector.load %arg1[%c0_1, %c0_2] : memref<1x32xf32, #tpu.memory_space<vmem>>, vector<1x32xf32>
    %c0_3 = arith.constant 0 : index
    %c0_4 = arith.constant 0 : index
    %3 = vector.load %arg2[%c0_3, %c0_4] : memref<1x32xf32, #tpu.memory_space<vmem>>, vector<1x32xf32>
    %cst = arith.constant dense<0.000000e+00> : vector<16xf32>
    %4 = vector.multi_reduction <add>, %1, %cst [1] : vector<16x32xf32> to vector<16xf32>
    %5 = vector.shape_cast %4 : vector<16xf32> to vector<16x1xf32>
    %cst_5 = arith.constant 3.200000e+01 : f32
    %6 = vector.broadcast %cst_5 : f32 to vector<16x1xf32>
    %7 = arith.divf %5, %6 : vector<16x1xf32>
    %8 = vector.broadcast %7 : vector<16x1xf32> to vector<16x32xf32>
    %9 = arith.subf %1, %8 : vector<16x32xf32>
    %10 = arith.mulf %9, %9 : vector<16x32xf32>
    %cst_6 = arith.constant dense<0.000000e+00> : vector<16xf32>
    %11 = vector.multi_reduction <add>, %10, %cst_6 [1] : vector<16x32xf32> to vector<16xf32>
    %12 = vector.shape_cast %11 : vector<16xf32> to vector<16x1xf32>
    %cst_7 = arith.constant 3.200000e+01 : f32
    %13 = vector.broadcast %cst_7 : f32 to vector<16x1xf32>
    %14 = arith.divf %12, %13 : vector<16x1xf32>
    %cst_8 = arith.constant 9.99999974E-6 : f32
    %15 = vector.broadcast %cst_8 : f32 to vector<16x1xf32>
    %16 = arith.addf %14, %15 : vector<16x1xf32>
    %17 = math.rsqrt %16 : vector<16x1xf32>
    %18 = vector.broadcast %17 : vector<16x1xf32> to vector<16x32xf32>
    %19 = arith.mulf %9, %18 : vector<16x32xf32>
    %20 = vector.broadcast %2 : vector<1x32xf32> to vector<16x32xf32>
    %21 = arith.mulf %19, %20 : vector<16x32xf32>
    %22 = vector.broadcast %3 : vector<1x32xf32> to vector<16x32xf32>
    %23 = arith.addf %21, %22 : vector<16x32xf32>
    %24 = arith.truncf %23 : vector<16x32xf32> to vector<16x32xbf16>
    %c0_9 = arith.constant 0 : index
    %c0_10 = arith.constant 0 : index
    %25 = vector.load %arg3[%c0_9, %c0_10] : memref<32x96xbf16, #tpu.memory_space<vmem>>, vector<32x96xbf16>
    %c0_11 = arith.constant 0 : index
    %c0_12 = arith.constant 0 : index
    %26 = vector.load %arg4[%c0_11, %c0_12] : memref<1x96xf32, #tpu.memory_space<vmem>>, vector<1x96xf32>
    %c0_13 = arith.constant 0 : index
    %c0_14 = arith.constant 0 : index
    %c0_15 = arith.constant 0 : index
    %27 = vector.load %arg5[%c0_13, %c0_14, %c0_15] : memref<4x8x32xbf16, #tpu.memory_space<vmem>>, vector<4x8x32xbf16>
    %c0_16 = arith.constant 0 : index
    %c0_17 = arith.constant 0 : index
    %28 = vector.load %arg6[%c0_16, %c0_17] : memref<1x32xf32, #tpu.memory_space<vmem>>, vector<1x32xf32>
    %cst_18 = arith.constant dense<0.000000e+00> : vector<16x96xf32>
    %29 = tpu.matmul %24, %25, %cst_18 {dimension_numbers = #tpu.dot_dimension_numbers<[1], [0], [0], [1], [0, 0, 1, 1], [], []>} : vector<16x32xbf16>, vector<32x96xbf16>, vector<16x96xf32> -> vector<16x96xf32>
    %30 = vector.broadcast %26 : vector<1x96xf32> to vector<16x96xf32>
    %31 = arith.addf %29, %30 : vector<16x96xf32>
    %32 = arith.truncf %31 : vector<16x96xf32> to vector<16x96xbf16>
    %33 = vector.extract_strided_slice %32 {offsets = [0, 0], sizes = [16, 8], strides = [1, 1]} : vector<16x96xbf16> to vector<16x8xbf16>
    %34 = vector.shape_cast %33 : vector<16x8xbf16> to vector<2x8x8xbf16>
    %35 = vector.extract_strided_slice %32 {offsets = [0, 8], sizes = [16, 8], strides = [1, 1]} : vector<16x96xbf16> to vector<16x8xbf16>
    %36 = vector.shape_cast %35 : vector<16x8xbf16> to vector<2x8x8xbf16>
    %37 = vector.extract_strided_slice %32 {offsets = [0, 16], sizes = [16, 8], strides = [1, 1]} : vector<16x96xbf16> to vector<16x8xbf16>
    %38 = vector.shape_cast %37 : vector<16x8xbf16> to vector<2x8x8xbf16>
    %39 = vector.extract_strided_slice %32 {offsets = [0, 24], sizes = [16, 8], strides = [1, 1]} : vector<16x96xbf16> to vector<16x8xbf16>
    %40 = vector.shape_cast %39 : vector<16x8xbf16> to vector<2x8x8xbf16>
    %41 = vector.shape_cast %34 : vector<2x8x8xbf16> to vector<1x2x8x8xbf16>
    %42 = vector.shape_cast %36 : vector<2x8x8xbf16> to vector<1x2x8x8xbf16>
    %43 = vector.shape_cast %38 : vector<2x8x8xbf16> to vector<1x2x8x8xbf16>
    %44 = vector.shape_cast %40 : vector<2x8x8xbf16> to vector<1x2x8x8xbf16>
    %45 = tpu.concatenate %41, %42, %43, %44 in 0 : vector<1x2x8x8xbf16>, vector<1x2x8x8xbf16>, vector<1x2x8x8xbf16>, vector<1x2x8x8xbf16> -> vector<4x2x8x8xbf16>
    %46 = vector.shape_cast %45 : vector<4x2x8x8xbf16> to vector<8x8x8xbf16>
    %47 = vector.extract_strided_slice %32 {offsets = [0, 32], sizes = [16, 8], strides = [1, 1]} : vector<16x96xbf16> to vector<16x8xbf16>
    %48 = vector.shape_cast %47 : vector<16x8xbf16> to vector<2x8x8xbf16>
    %49 = vector.extract_strided_slice %32 {offsets = [0, 40], sizes = [16, 8], strides = [1, 1]} : vector<16x96xbf16> to vector<16x8xbf16>
    %50 = vector.shape_cast %49 : vector<16x8xbf16> to vector<2x8x8xbf16>
    %51 = vector.extract_strided_slice %32 {offsets = [0, 48], sizes = [16, 8], strides = [1, 1]} : vector<16x96xbf16> to vector<16x8xbf16>
    %52 = vector.shape_cast %51 : vector<16x8xbf16> to vector<2x8x8xbf16>
    %53 = vector.extract_strided_slice %32 {offsets = [0, 56], sizes = [16, 8], strides = [1, 1]} : vector<16x96xbf16> to vector<16x8xbf16>
    %54 = vector.shape_cast %53 : vector<16x8xbf16> to vector<2x8x8xbf16>
    %55 = vector.shape_cast %48 : vector<2x8x8xbf16> to vector<1x2x8x8xbf16>
    %56 = vector.shape_cast %50 : vector<2x8x8xbf16> to vector<1x2x8x8xbf16>
    %57 = vector.shape_cast %52 : vector<2x8x8xbf16> to vector<1x2x8x8xbf16>
    %58 = vector.shape_cast %54 : vector<2x8x8xbf16> to vector<1x2x8x8xbf16>
    %59 = tpu.concatenate %55, %56, %57, %58 in 0 : vector<1x2x8x8xbf16>, vector<1x2x8x8xbf16>, vector<1x2x8x8xbf16>, vector<1x2x8x8xbf16> -> vector<4x2x8x8xbf16>
    %60 = vector.shape_cast %59 : vector<4x2x8x8xbf16> to vector<8x8x8xbf16>
    %61 = vector.extract_strided_slice %32 {offsets = [0, 64], sizes = [16, 8], strides = [1, 1]} : vector<16x96xbf16> to vector<16x8xbf16>
    %62 = vector.shape_cast %61 : vector<16x8xbf16> to vector<2x8x8xbf16>
    %63 = vector.extract_strided_slice %32 {offsets = [0, 72], sizes = [16, 8], strides = [1, 1]} : vector<16x96xbf16> to vector<16x8xbf16>
    %64 = vector.shape_cast %63 : vector<16x8xbf16> to vector<2x8x8xbf16>
    %65 = vector.extract_strided_slice %32 {offsets = [0, 80], sizes = [16, 8], strides = [1, 1]} : vector<16x96xbf16> to vector<16x8xbf16>
    %66 = vector.shape_cast %65 : vector<16x8xbf16> to vector<2x8x8xbf16>
    %67 = vector.extract_strided_slice %32 {offsets = [0, 88], sizes = [16, 8], strides = [1, 1]} : vector<16x96xbf16> to vector<16x8xbf16>
    %68 = vector.shape_cast %67 : vector<16x8xbf16> to vector<2x8x8xbf16>
    %69 = vector.shape_cast %62 : vector<2x8x8xbf16> to vector<1x2x8x8xbf16>
    %70 = vector.shape_cast %64 : vector<2x8x8xbf16> to vector<1x2x8x8xbf16>
    %71 = vector.shape_cast %66 : vector<2x8x8xbf16> to vector<1x2x8x8xbf16>
    %72 = vector.shape_cast %68 : vector<2x8x8xbf16> to vector<1x2x8x8xbf16>
    %73 = tpu.concatenate %69, %70, %71, %72 in 0 : vector<1x2x8x8xbf16>, vector<1x2x8x8xbf16>, vector<1x2x8x8xbf16>, vector<1x2x8x8xbf16> -> vector<4x2x8x8xbf16>
    %74 = vector.shape_cast %73 : vector<4x2x8x8xbf16> to vector<8x8x8xbf16>
    "tpu.trace_start"() <{level = 10 : i32, message = "bqd,bkd->bqk"}> : () -> ()
    %cst_19 = arith.constant dense<0.000000e+00> : vector<8x8x8xf32>
    %75 = tpu.matmul %46, %60, %cst_19 {dimension_numbers = #tpu.dot_dimension_numbers<[2], [2], [1], [1], [0, 0, 0, 1, 1, 1], [0], [0]>} : vector<8x8x8xbf16>, vector<8x8x8xbf16>, vector<8x8x8xf32> -> vector<8x8x8xf32>
    "tpu.trace_stop"() : () -> ()
    %cst_20 = arith.constant dense<0xFF800000> : vector<8x8xf32>
    %76 = vector.multi_reduction <maximumf>, %75, %cst_20 [2] : vector<8x8x8xf32> to vector<8x8xf32>
    %77 = vector.shape_cast %76 : vector<8x8xf32> to vector<8x8x1xf32>
    %78 = vector.broadcast %77 : vector<8x8x1xf32> to vector<8x8x8xf32>
    %79 = arith.subf %75, %78 : vector<8x8x8xf32>
    %80 = math.exp %79 : vector<8x8x8xf32>
    %cst_21 = arith.constant dense<0.000000e+00> : vector<8x8xf32>
    %81 = vector.multi_reduction <add>, %80, %cst_21 [2] : vector<8x8x8xf32> to vector<8x8xf32>
    %82 = vector.shape_cast %81 : vector<8x8xf32> to vector<8x8x1xf32>
    %83 = tpu.reciprocal %82 {approx = true} : vector<8x8x1xf32> -> vector<8x8x1xf32>
    %84 = vector.broadcast %83 : vector<8x8x1xf32> to vector<8x8x8xf32>
    %85 = arith.mulf %80, %84 : vector<8x8x8xf32>
    %86 = arith.truncf %85 : vector<8x8x8xf32> to vector<8x8x8xbf16>
    "tpu.trace_start"() <{level = 10 : i32, message = "bqk,bkd->bqd"}> : () -> ()
    %cst_22 = arith.constant dense<0.000000e+00> : vector<8x8x8xf32>
    %87 = tpu.matmul %86, %74, %cst_22 {dimension_numbers = #tpu.dot_dimension_numbers<[2], [1], [1], [2], [0, 0, 0, 1, 1, 2], [0], [0]>} : vector<8x8x8xbf16>, vector<8x8x8xbf16>, vector<8x8x8xf32> -> vector<8x8x8xf32>
    "tpu.trace_stop"() : () -> ()
    %88 = vector.shape_cast %87 : vector<8x8x8xf32> to vector<4x16x8xf32>
    %89 = arith.truncf %88 : vector<4x16x8xf32> to vector<4x16x8xbf16>
    "tpu.trace_start"() <{level = 10 : i32, message = "hnd,hde->hne"}> : () -> ()
    %cst_23 = arith.constant dense<0.000000e+00> : vector<4x16x32xf32>
    %90 = tpu.matmul %89, %27, %cst_23 {dimension_numbers = #tpu.dot_dimension_numbers<[2], [1], [1], [2], [0, 0, 0, 1, 1, 2], [0], [0]>} : vector<4x16x8xbf16>, vector<4x8x32xbf16>, vector<4x16x32xf32> -> vector<4x16x32xf32>
    "tpu.trace_stop"() : () -> ()
    %cst_24 = arith.constant dense<0.000000e+00> : vector<16x32xf32>
    %91 = vector.multi_reduction <add>, %90, %cst_24 [0] : vector<4x16x32xf32> to vector<16x32xf32>
    %92 = vector.broadcast %28 : vector<1x32xf32> to vector<16x32xf32>
    %93 = arith.addf %91, %92 : vector<16x32xf32>
    %94 = arith.addf %1, %93 : vector<16x32xf32>
    %c0_25 = arith.constant 0 : index
    %c0_26 = arith.constant 0 : index
    %95 = vector.load %arg7[%c0_25, %c0_26] : memref<1x32xf32, #tpu.memory_space<vmem>>, vector<1x32xf32>
    %c0_27 = arith.constant 0 : index
    %c0_28 = arith.constant 0 : index
    %96 = vector.load %arg8[%c0_27, %c0_28] : memref<1x32xf32, #tpu.memory_space<vmem>>, vector<1x32xf32>
    %cst_29 = arith.constant dense<0.000000e+00> : vector<16xf32>
    %97 = vector.multi_reduction <add>, %94, %cst_29 [1] : vector<16x32xf32> to vector<16xf32>
    %98 = vector.shape_cast %97 : vector<16xf32> to vector<16x1xf32>
    %cst_30 = arith.constant 3.200000e+01 : f32
    %99 = vector.broadcast %cst_30 : f32 to vector<16x1xf32>
    %100 = arith.divf %98, %99 : vector<16x1xf32>
    %101 = vector.broadcast %100 : vector<16x1xf32> to vector<16x32xf32>
    %102 = arith.subf %94, %101 : vector<16x32xf32>
    %103 = arith.mulf %102, %102 : vector<16x32xf32>
    %cst_31 = arith.constant dense<0.000000e+00> : vector<16xf32>
    %104 = vector.multi_reduction <add>, %103, %cst_31 [1] : vector<16x32xf32> to vector<16xf32>
    %105 = vector.shape_cast %104 : vector<16xf32> to vector<16x1xf32>
    %cst_32 = arith.constant 3.200000e+01 : f32
    %106 = vector.broadcast %cst_32 : f32 to vector<16x1xf32>
    %107 = arith.divf %105, %106 : vector<16x1xf32>
    %cst_33 = arith.constant 9.99999974E-6 : f32
    %108 = vector.broadcast %cst_33 : f32 to vector<16x1xf32>
    %109 = arith.addf %107, %108 : vector<16x1xf32>
    %110 = math.rsqrt %109 : vector<16x1xf32>
    %111 = vector.broadcast %110 : vector<16x1xf32> to vector<16x32xf32>
    %112 = arith.mulf %102, %111 : vector<16x32xf32>
    %113 = vector.broadcast %95 : vector<1x32xf32> to vector<16x32xf32>
    %114 = arith.mulf %112, %113 : vector<16x32xf32>
    %115 = vector.broadcast %96 : vector<1x32xf32> to vector<16x32xf32>
    %116 = arith.addf %114, %115 : vector<16x32xf32>
    %117 = arith.truncf %116 : vector<16x32xf32> to vector<16x32xbf16>
    %c0_34 = arith.constant 0 : index
    %c0_35 = arith.constant 0 : index
    %118 = vector.load %arg9[%c0_34, %c0_35] : memref<32x64xbf16, #tpu.memory_space<vmem>>, vector<32x64xbf16>
    %c0_36 = arith.constant 0 : index
    %c0_37 = arith.constant 0 : index
    %119 = vector.load %arg10[%c0_36, %c0_37] : memref<1x64xf32, #tpu.memory_space<vmem>>, vector<1x64xf32>
    %c0_38 = arith.constant 0 : index
    %c0_39 = arith.constant 0 : index
    %120 = vector.load %arg11[%c0_38, %c0_39] : memref<64x32xbf16, #tpu.memory_space<vmem>>, vector<64x32xbf16>
    %c0_40 = arith.constant 0 : index
    %c0_41 = arith.constant 0 : index
    %121 = vector.load %arg12[%c0_40, %c0_41] : memref<1x32xf32, #tpu.memory_space<vmem>>, vector<1x32xf32>
    %cst_42 = arith.constant dense<0.000000e+00> : vector<16x64xf32>
    %122 = tpu.matmul %117, %118, %cst_42 {dimension_numbers = #tpu.dot_dimension_numbers<[1], [0], [0], [1], [0, 0, 1, 1], [], []>} : vector<16x32xbf16>, vector<32x64xbf16>, vector<16x64xf32> -> vector<16x64xf32>
    %123 = vector.broadcast %119 : vector<1x64xf32> to vector<16x64xf32>
    %124 = arith.addf %122, %123 : vector<16x64xf32>
    %cst_43 = arith.constant 0.000000e+00 : f32
    %125 = vector.broadcast %cst_43 : f32 to vector<16x64xf32>
    %126 = arith.maximumf %124, %125 : vector<16x64xf32>
    %127 = arith.truncf %126 : vector<16x64xf32> to vector<16x64xbf16>
    %cst_44 = arith.constant dense<0.000000e+00> : vector<16x32xf32>
    %128 = tpu.matmul %127, %120, %cst_44 {dimension_numbers = #tpu.dot_dimension_numbers<[1], [0], [0], [1], [0, 0, 1, 1], [], []>} : vector<16x64xbf16>, vector<64x32xbf16>, vector<16x32xf32> -> vector<16x32xf32>
    %129 = vector.broadcast %121 : vector<1x32xf32> to vector<16x32xf32>
    %130 = arith.addf %128, %129 : vector<16x32xf32>
    %131 = arith.addf %94, %130 : vector<16x32xf32>
    %132 = arith.truncf %131 : vector<16x32xf32> to vector<16x32xbf16>
    %c0_45 = arith.constant 0 : index
    %c0_46 = arith.constant 0 : index
    %133 = vector.load %arg13[%c0_45, %c0_46] : memref<16x32xbf16, #tpu.memory_space<vmem>>, vector<16x32xbf16>
    %134 = arith.extf %133 : vector<16x32xbf16> to vector<16x32xf32>
    %135 = tpu.iota {dimensions = array<i32: 0>} : vector<8x8xi32>
    %136 = tpu.iota {dimensions = array<i32: 1>} : vector<8x8xi32>
    %137 = arith.cmpi sle, %136, %135 : vector<8x8xi32>
    %cst_47 = arith.constant 0.000000e+00 : f32
    %cst_48 = arith.constant -1.000000e+30 : f32
    %138 = vector.broadcast %cst_47 : f32 to vector<8x8xf32>
    %139 = vector.broadcast %cst_48 : f32 to vector<8x8xf32>
    %140 = arith.select %137, %138, %139 : vector<8x8xi1>, vector<8x8xf32>
    %c0_49 = arith.constant 0 : index
    %c0_50 = arith.constant 0 : index
    %141 = vector.load %arg14[%c0_49, %c0_50] : memref<1x32xf32, #tpu.memory_space<vmem>>, vector<1x32xf32>
    %c0_51 = arith.constant 0 : index
    %c0_52 = arith.constant 0 : index
    %142 = vector.load %arg15[%c0_51, %c0_52] : memref<1x32xf32, #tpu.memory_space<vmem>>, vector<1x32xf32>
    %cst_53 = arith.constant dense<0.000000e+00> : vector<16xf32>
    %143 = vector.multi_reduction <add>, %134, %cst_53 [1] : vector<16x32xf32> to vector<16xf32>
    %144 = vector.shape_cast %143 : vector<16xf32> to vector<16x1xf32>
    %cst_54 = arith.constant 3.200000e+01 : f32
    %145 = vector.broadcast %cst_54 : f32 to vector<16x1xf32>
    %146 = arith.divf %144, %145 : vector<16x1xf32>
    %147 = vector.broadcast %146 : vector<16x1xf32> to vector<16x32xf32>
    %148 = arith.subf %134, %147 : vector<16x32xf32>
    %149 = arith.mulf %148, %148 : vector<16x32xf32>
    %cst_55 = arith.constant dense<0.000000e+00> : vector<16xf32>
    %150 = vector.multi_reduction <add>, %149, %cst_55 [1] : vector<16x32xf32> to vector<16xf32>
    %151 = vector.shape_cast %150 : vector<16xf32> to vector<16x1xf32>
    %cst_56 = arith.constant 3.200000e+01 : f32
    %152 = vector.broadcast %cst_56 : f32 to vector<16x1xf32>
    %153 = arith.divf %151, %152 : vector<16x1xf32>
    %cst_57 = arith.constant 9.99999974E-6 : f32
    %154 = vector.broadcast %cst_57 : f32 to vector<16x1xf32>
    %155 = arith.addf %153, %154 : vector<16x1xf32>
    %156 = math.rsqrt %155 : vector<16x1xf32>
    %157 = vector.broadcast %156 : vector<16x1xf32> to vector<16x32xf32>
    %158 = arith.mulf %148, %157 : vector<16x32xf32>
    %159 = vector.broadcast %141 : vector<1x32xf32> to vector<16x32xf32>
    %160 = arith.mulf %158, %159 : vector<16x32xf32>
    %161 = vector.broadcast %142 : vector<1x32xf32> to vector<16x32xf32>
    %162 = arith.addf %160, %161 : vector<16x32xf32>
    %163 = arith.truncf %162 : vector<16x32xf32> to vector<16x32xbf16>
    %c0_58 = arith.constant 0 : index
    %c0_59 = arith.constant 0 : index
    %164 = vector.load %arg16[%c0_58, %c0_59] : memref<32x96xbf16, #tpu.memory_space<vmem>>, vector<32x96xbf16>
    %c0_60 = arith.constant 0 : index
    %c0_61 = arith.constant 0 : index
    %165 = vector.load %arg17[%c0_60, %c0_61] : memref<1x96xf32, #tpu.memory_space<vmem>>, vector<1x96xf32>
    %c0_62 = arith.constant 0 : index
    %c0_63 = arith.constant 0 : index
    %c0_64 = arith.constant 0 : index
    %166 = vector.load %arg18[%c0_62, %c0_63, %c0_64] : memref<4x8x32xbf16, #tpu.memory_space<vmem>>, vector<4x8x32xbf16>
    %c0_65 = arith.constant 0 : index
    %c0_66 = arith.constant 0 : index
    %167 = vector.load %arg19[%c0_65, %c0_66] : memref<1x32xf32, #tpu.memory_space<vmem>>, vector<1x32xf32>
    %cst_67 = arith.constant dense<0.000000e+00> : vector<16x96xf32>
    %168 = tpu.matmul %163, %164, %cst_67 {dimension_numbers = #tpu.dot_dimension_numbers<[1], [0], [0], [1], [0, 0, 1, 1], [], []>} : vector<16x32xbf16>, vector<32x96xbf16>, vector<16x96xf32> -> vector<16x96xf32>
    %169 = vector.broadcast %165 : vector<1x96xf32> to vector<16x96xf32>
    %170 = arith.addf %168, %169 : vector<16x96xf32>
    %171 = arith.truncf %170 : vector<16x96xf32> to vector<16x96xbf16>
    %172 = vector.extract_strided_slice %171 {offsets = [0, 0], sizes = [16, 8], strides = [1, 1]} : vector<16x96xbf16> to vector<16x8xbf16>
    %173 = vector.shape_cast %172 : vector<16x8xbf16> to vector<2x8x8xbf16>
    %174 = vector.extract_strided_slice %171 {offsets = [0, 8], sizes = [16, 8], strides = [1, 1]} : vector<16x96xbf16> to vector<16x8xbf16>
    %175 = vector.shape_cast %174 : vector<16x8xbf16> to vector<2x8x8xbf16>
    %176 = vector.extract_strided_slice %171 {offsets = [0, 16], sizes = [16, 8], strides = [1, 1]} : vector<16x96xbf16> to vector<16x8xbf16>
    %177 = vector.shape_cast %176 : vector<16x8xbf16> to vector<2x8x8xbf16>
    %178 = vector.extract_strided_slice %171 {offsets = [0, 24], sizes = [16, 8], strides = [1, 1]} : vector<16x96xbf16> to vector<16x8xbf16>
    %179 = vector.shape_cast %178 : vector<16x8xbf16> to vector<2x8x8xbf16>
    %180 = vector.shape_cast %173 : vector<2x8x8xbf16> to vector<1x2x8x8xbf16>
    %181 = vector.shape_cast %175 : vector<2x8x8xbf16> to vector<1x2x8x8xbf16>
    %182 = vector.shape_cast %177 : vector<2x8x8xbf16> to vector<1x2x8x8xbf16>
    %183 = vector.shape_cast %179 : vector<2x8x8xbf16> to vector<1x2x8x8xbf16>
    %184 = tpu.concatenate %180, %181, %182, %183 in 0 : vector<1x2x8x8xbf16>, vector<1x2x8x8xbf16>, vector<1x2x8x8xbf16>, vector<1x2x8x8xbf16> -> vector<4x2x8x8xbf16>
    %185 = vector.shape_cast %184 : vector<4x2x8x8xbf16> to vector<8x8x8xbf16>
    %186 = vector.extract_strided_slice %171 {offsets = [0, 32], sizes = [16, 8], strides = [1, 1]} : vector<16x96xbf16> to vector<16x8xbf16>
    %187 = vector.shape_cast %186 : vector<16x8xbf16> to vector<2x8x8xbf16>
    %188 = vector.extract_strided_slice %171 {offsets = [0, 40], sizes = [16, 8], strides = [1, 1]} : vector<16x96xbf16> to vector<16x8xbf16>
    %189 = vector.shape_cast %188 : vector<16x8xbf16> to vector<2x8x8xbf16>
    %190 = vector.extract_strided_slice %171 {offsets = [0, 48], sizes = [16, 8], strides = [1, 1]} : vector<16x96xbf16> to vector<16x8xbf16>
    %191 = vector.shape_cast %190 : vector<16x8xbf16> to vector<2x8x8xbf16>
    %192 = vector.extract_strided_slice %171 {offsets = [0, 56], sizes = [16, 8], strides = [1, 1]} : vector<16x96xbf16> to vector<16x8xbf16>
    %193 = vector.shape_cast %192 : vector<16x8xbf16> to vector<2x8x8xbf16>
    %194 = vector.shape_cast %187 : vector<2x8x8xbf16> to vector<1x2x8x8xbf16>
    %195 = vector.shape_cast %189 : vector<2x8x8xbf16> to vector<1x2x8x8xbf16>
    %196 = vector.shape_cast %191 : vector<2x8x8xbf16> to vector<1x2x8x8xbf16>
    %197 = vector.shape_cast %193 : vector<2x8x8xbf16> to vector<1x2x8x8xbf16>
    %198 = tpu.concatenate %194, %195, %196, %197 in 0 : vector<1x2x8x8xbf16>, vector<1x2x8x8xbf16>, vector<1x2x8x8xbf16>, vector<1x2x8x8xbf16> -> vector<4x2x8x8xbf16>
    %199 = vector.shape_cast %198 : vector<4x2x8x8xbf16> to vector<8x8x8xbf16>
    %200 = vector.extract_strided_slice %171 {offsets = [0, 64], sizes = [16, 8], strides = [1, 1]} : vector<16x96xbf16> to vector<16x8xbf16>
    %201 = vector.shape_cast %200 : vector<16x8xbf16> to vector<2x8x8xbf16>
    %202 = vector.extract_strided_slice %171 {offsets = [0, 72], sizes = [16, 8], strides = [1, 1]} : vector<16x96xbf16> to vector<16x8xbf16>
    %203 = vector.shape_cast %202 : vector<16x8xbf16> to vector<2x8x8xbf16>
    %204 = vector.extract_strided_slice %171 {offsets = [0, 80], sizes = [16, 8], strides = [1, 1]} : vector<16x96xbf16> to vector<16x8xbf16>
    %205 = vector.shape_cast %204 : vector<16x8xbf16> to vector<2x8x8xbf16>
    %206 = vector.extract_strided_slice %171 {offsets = [0, 88], sizes = [16, 8], strides = [1, 1]} : vector<16x96xbf16> to vector<16x8xbf16>
    %207 = vector.shape_cast %206 : vector<16x8xbf16> to vector<2x8x8xbf16>
    %208 = vector.shape_cast %201 : vector<2x8x8xbf16> to vector<1x2x8x8xbf16>
    %209 = vector.shape_cast %203 : vector<2x8x8xbf16> to vector<1x2x8x8xbf16>
    %210 = vector.shape_cast %205 : vector<2x8x8xbf16> to vector<1x2x8x8xbf16>
    %211 = vector.shape_cast %207 : vector<2x8x8xbf16> to vector<1x2x8x8xbf16>
    %212 = tpu.concatenate %208, %209, %210, %211 in 0 : vector<1x2x8x8xbf16>, vector<1x2x8x8xbf16>, vector<1x2x8x8xbf16>, vector<1x2x8x8xbf16> -> vector<4x2x8x8xbf16>
    %213 = vector.shape_cast %212 : vector<4x2x8x8xbf16> to vector<8x8x8xbf16>
    "tpu.trace_start"() <{level = 10 : i32, message = "bqd,bkd->bqk"}> : () -> ()
    %cst_68 = arith.constant dense<0.000000e+00> : vector<8x8x8xf32>
    %214 = tpu.matmul %185, %199, %cst_68 {dimension_numbers = #tpu.dot_dimension_numbers<[2], [2], [1], [1], [0, 0, 0, 1, 1, 1], [0], [0]>} : vector<8x8x8xbf16>, vector<8x8x8xbf16>, vector<8x8x8xf32> -> vector<8x8x8xf32>
    "tpu.trace_stop"() : () -> ()
    %215 = vector.shape_cast %140 : vector<8x8xf32> to vector<1x8x8xf32>
    %216 = vector.broadcast %215 : vector<1x8x8xf32> to vector<8x8x8xf32>
    %217 = arith.addf %214, %216 : vector<8x8x8xf32>
    %cst_69 = arith.constant dense<0xFF800000> : vector<8x8xf32>
    %218 = vector.multi_reduction <maximumf>, %217, %cst_69 [2] : vector<8x8x8xf32> to vector<8x8xf32>
    %219 = vector.shape_cast %218 : vector<8x8xf32> to vector<8x8x1xf32>
    %220 = vector.broadcast %219 : vector<8x8x1xf32> to vector<8x8x8xf32>
    %221 = arith.subf %217, %220 : vector<8x8x8xf32>
    %222 = math.exp %221 : vector<8x8x8xf32>
    %cst_70 = arith.constant dense<0.000000e+00> : vector<8x8xf32>
    %223 = vector.multi_reduction <add>, %222, %cst_70 [2] : vector<8x8x8xf32> to vector<8x8xf32>
    %224 = vector.shape_cast %223 : vector<8x8xf32> to vector<8x8x1xf32>
    %225 = tpu.reciprocal %224 {approx = true} : vector<8x8x1xf32> -> vector<8x8x1xf32>
    %226 = vector.broadcast %225 : vector<8x8x1xf32> to vector<8x8x8xf32>
    %227 = arith.mulf %222, %226 : vector<8x8x8xf32>
    %228 = arith.truncf %227 : vector<8x8x8xf32> to vector<8x8x8xbf16>
    "tpu.trace_start"() <{level = 10 : i32, message = "bqk,bkd->bqd"}> : () -> ()
    %cst_71 = arith.constant dense<0.000000e+00> : vector<8x8x8xf32>
    %229 = tpu.matmul %228, %213, %cst_71 {dimension_numbers = #tpu.dot_dimension_numbers<[2], [1], [1], [2], [0, 0, 0, 1, 1, 2], [0], [0]>} : vector<8x8x8xbf16>, vector<8x8x8xbf16>, vector<8x8x8xf32> -> vector<8x8x8xf32>
    "tpu.trace_stop"() : () -> ()
    %230 = vector.shape_cast %229 : vector<8x8x8xf32> to vector<4x16x8xf32>
    %231 = arith.truncf %230 : vector<4x16x8xf32> to vector<4x16x8xbf16>
    "tpu.trace_start"() <{level = 10 : i32, message = "hnd,hde->hne"}> : () -> ()
    %cst_72 = arith.constant dense<0.000000e+00> : vector<4x16x32xf32>
    %232 = tpu.matmul %231, %166, %cst_72 {dimension_numbers = #tpu.dot_dimension_numbers<[2], [1], [1], [2], [0, 0, 0, 1, 1, 2], [0], [0]>} : vector<4x16x8xbf16>, vector<4x8x32xbf16>, vector<4x16x32xf32> -> vector<4x16x32xf32>
    "tpu.trace_stop"() : () -> ()
    %cst_73 = arith.constant dense<0.000000e+00> : vector<16x32xf32>
    %233 = vector.multi_reduction <add>, %232, %cst_73 [0] : vector<4x16x32xf32> to vector<16x32xf32>
    %234 = vector.broadcast %167 : vector<1x32xf32> to vector<16x32xf32>
    %235 = arith.addf %233, %234 : vector<16x32xf32>
    %236 = arith.addf %134, %235 : vector<16x32xf32>
    %c0_74 = arith.constant 0 : index
    %c0_75 = arith.constant 0 : index
    %237 = vector.load %arg20[%c0_74, %c0_75] : memref<1x32xf32, #tpu.memory_space<vmem>>, vector<1x32xf32>
    %c0_76 = arith.constant 0 : index
    %c0_77 = arith.constant 0 : index
    %238 = vector.load %arg21[%c0_76, %c0_77] : memref<1x32xf32, #tpu.memory_space<vmem>>, vector<1x32xf32>
    %cst_78 = arith.constant dense<0.000000e+00> : vector<16xf32>
    %239 = vector.multi_reduction <add>, %236, %cst_78 [1] : vector<16x32xf32> to vector<16xf32>
    %240 = vector.shape_cast %239 : vector<16xf32> to vector<16x1xf32>
    %cst_79 = arith.constant 3.200000e+01 : f32
    %241 = vector.broadcast %cst_79 : f32 to vector<16x1xf32>
    %242 = arith.divf %240, %241 : vector<16x1xf32>
    %243 = vector.broadcast %242 : vector<16x1xf32> to vector<16x32xf32>
    %244 = arith.subf %236, %243 : vector<16x32xf32>
    %245 = arith.mulf %244, %244 : vector<16x32xf32>
    %cst_80 = arith.constant dense<0.000000e+00> : vector<16xf32>
    %246 = vector.multi_reduction <add>, %245, %cst_80 [1] : vector<16x32xf32> to vector<16xf32>
    %247 = vector.shape_cast %246 : vector<16xf32> to vector<16x1xf32>
    %cst_81 = arith.constant 3.200000e+01 : f32
    %248 = vector.broadcast %cst_81 : f32 to vector<16x1xf32>
    %249 = arith.divf %247, %248 : vector<16x1xf32>
    %cst_82 = arith.constant 9.99999974E-6 : f32
    %250 = vector.broadcast %cst_82 : f32 to vector<16x1xf32>
    %251 = arith.addf %249, %250 : vector<16x1xf32>
    %252 = math.rsqrt %251 : vector<16x1xf32>
    %253 = vector.broadcast %252 : vector<16x1xf32> to vector<16x32xf32>
    %254 = arith.mulf %244, %253 : vector<16x32xf32>
    %255 = vector.broadcast %237 : vector<1x32xf32> to vector<16x32xf32>
    %256 = arith.mulf %254, %255 : vector<16x32xf32>
    %257 = vector.broadcast %238 : vector<1x32xf32> to vector<16x32xf32>
    %258 = arith.addf %256, %257 : vector<16x32xf32>
    %259 = arith.truncf %258 : vector<16x32xf32> to vector<16x32xbf16>
    %c0_83 = arith.constant 0 : index
    %c0_84 = arith.constant 0 : index
    %260 = vector.load %arg22[%c0_83, %c0_84] : memref<32x32xbf16, #tpu.memory_space<vmem>>, vector<32x32xbf16>
    %c0_85 = arith.constant 0 : index
    %c0_86 = arith.constant 0 : index
    %261 = vector.load %arg23[%c0_85, %c0_86] : memref<1x32xf32, #tpu.memory_space<vmem>>, vector<1x32xf32>
    %c0_87 = arith.constant 0 : index
    %c0_88 = arith.constant 0 : index
    %262 = vector.load %arg24[%c0_87, %c0_88] : memref<32x64xbf16, #tpu.memory_space<vmem>>, vector<32x64xbf16>
    %c0_89 = arith.constant 0 : index
    %c0_90 = arith.constant 0 : index
    %263 = vector.load %arg25[%c0_89, %c0_90] : memref<1x64xf32, #tpu.memory_space<vmem>>, vector<1x64xf32>
    %c0_91 = arith.constant 0 : index
    %c0_92 = arith.constant 0 : index
    %c0_93 = arith.constant 0 : index
    %264 = vector.load %arg26[%c0_91, %c0_92, %c0_93] : memref<4x8x32xbf16, #tpu.memory_space<vmem>>, vector<4x8x32xbf16>
    %c0_94 = arith.constant 0 : index
    %c0_95 = arith.constant 0 : index
    %265 = vector.load %arg27[%c0_94, %c0_95] : memref<1x32xf32, #tpu.memory_space<vmem>>, vector<1x32xf32>
    %cst_96 = arith.constant dense<0.000000e+00> : vector<16x32xf32>
    %266 = tpu.matmul %259, %260, %cst_96 {dimension_numbers = #tpu.dot_dimension_numbers<[1], [0], [0], [1], [0, 0, 1, 1], [], []>} : vector<16x32xbf16>, vector<32x32xbf16>, vector<16x32xf32> -> vector<16x32xf32>
    %267 = vector.broadcast %261 : vector<1x32xf32> to vector<16x32xf32>
    %268 = arith.addf %266, %267 : vector<16x32xf32>
    %269 = arith.truncf %268 : vector<16x32xf32> to vector<16x32xbf16>
    %cst_97 = arith.constant dense<0.000000e+00> : vector<16x64xf32>
    %270 = tpu.matmul %132, %262, %cst_97 {dimension_numbers = #tpu.dot_dimension_numbers<[1], [0], [0], [1], [0, 0, 1, 1], [], []>} : vector<16x32xbf16>, vector<32x64xbf16>, vector<16x64xf32> -> vector<16x64xf32>
    %271 = vector.broadcast %263 : vector<1x64xf32> to vector<16x64xf32>
    %272 = arith.addf %270, %271 : vector<16x64xf32>
    %273 = arith.truncf %272 : vector<16x64xf32> to vector<16x64xbf16>
    %274 = vector.extract_strided_slice %269 {offsets = [0, 0], sizes = [16, 8], strides = [1, 1]} : vector<16x32xbf16> to vector<16x8xbf16>
    %275 = vector.shape_cast %274 : vector<16x8xbf16> to vector<2x8x8xbf16>
    %276 = vector.extract_strided_slice %269 {offsets = [0, 8], sizes = [16, 8], strides = [1, 1]} : vector<16x32xbf16> to vector<16x8xbf16>
    %277 = vector.shape_cast %276 : vector<16x8xbf16> to vector<2x8x8xbf16>
    %278 = vector.extract_strided_slice %269 {offsets = [0, 16], sizes = [16, 8], strides = [1, 1]} : vector<16x32xbf16> to vector<16x8xbf16>
    %279 = vector.shape_cast %278 : vector<16x8xbf16> to vector<2x8x8xbf16>
    %280 = vector.extract_strided_slice %269 {offsets = [0, 24], sizes = [16, 8], strides = [1, 1]} : vector<16x32xbf16> to vector<16x8xbf16>
    %281 = vector.shape_cast %280 : vector<16x8xbf16> to vector<2x8x8xbf16>
    %282 = vector.shape_cast %275 : vector<2x8x8xbf16> to vector<1x2x8x8xbf16>
    %283 = vector.shape_cast %277 : vector<2x8x8xbf16> to vector<1x2x8x8xbf16>
    %284 = vector.shape_cast %279 : vector<2x8x8xbf16> to vector<1x2x8x8xbf16>
    %285 = vector.shape_cast %281 : vector<2x8x8xbf16> to vector<1x2x8x8xbf16>
    %286 = tpu.concatenate %282, %283, %284, %285 in 0 : vector<1x2x8x8xbf16>, vector<1x2x8x8xbf16>, vector<1x2x8x8xbf16>, vector<1x2x8x8xbf16> -> vector<4x2x8x8xbf16>
    %287 = vector.shape_cast %286 : vector<4x2x8x8xbf16> to vector<8x8x8xbf16>
    %288 = vector.extract_strided_slice %273 {offsets = [0, 0], sizes = [16, 8], strides = [1, 1]} : vector<16x64xbf16> to vector<16x8xbf16>
    %289 = vector.shape_cast %288 : vector<16x8xbf16> to vector<2x8x8xbf16>
    %290 = vector.extract_strided_slice %273 {offsets = [0, 8], sizes = [16, 8], strides = [1, 1]} : vector<16x64xbf16> to vector<16x8xbf16>
    %291 = vector.shape_cast %290 : vector<16x8xbf16> to vector<2x8x8xbf16>
    %292 = vector.extract_strided_slice %273 {offsets = [0, 16], sizes = [16, 8], strides = [1, 1]} : vector<16x64xbf16> to vector<16x8xbf16>
    %293 = vector.shape_cast %292 : vector<16x8xbf16> to vector<2x8x8xbf16>
    %294 = vector.extract_strided_slice %273 {offsets = [0, 24], sizes = [16, 8], strides = [1, 1]} : vector<16x64xbf16> to vector<16x8xbf16>
    %295 = vector.shape_cast %294 : vector<16x8xbf16> to vector<2x8x8xbf16>
    %296 = vector.shape_cast %289 : vector<2x8x8xbf16> to vector<1x2x8x8xbf16>
    %297 = vector.shape_cast %291 : vector<2x8x8xbf16> to vector<1x2x8x8xbf16>
    %298 = vector.shape_cast %293 : vector<2x8x8xbf16> to vector<1x2x8x8xbf16>
    %299 = vector.shape_cast %295 : vector<2x8x8xbf16> to vector<1x2x8x8xbf16>
    %300 = tpu.concatenate %296, %297, %298, %299 in 0 : vector<1x2x8x8xbf16>, vector<1x2x8x8xbf16>, vector<1x2x8x8xbf16>, vector<1x2x8x8xbf16> -> vector<4x2x8x8xbf16>
    %301 = vector.shape_cast %300 : vector<4x2x8x8xbf16> to vector<8x8x8xbf16>
    %302 = vector.extract_strided_slice %273 {offsets = [0, 32], sizes = [16, 8], strides = [1, 1]} : vector<16x64xbf16> to vector<16x8xbf16>
    %303 = vector.shape_cast %302 : vector<16x8xbf16> to vector<2x8x8xbf16>
    %304 = vector.extract_strided_slice %273 {offsets = [0, 40], sizes = [16, 8], strides = [1, 1]} : vector<16x64xbf16> to vector<16x8xbf16>
    %305 = vector.shape_cast %304 : vector<16x8xbf16> to vector<2x8x8xbf16>
    %306 = vector.extract_strided_slice %273 {offsets = [0, 48], sizes = [16, 8], strides = [1, 1]} : vector<16x64xbf16> to vector<16x8xbf16>
    %307 = vector.shape_cast %306 : vector<16x8xbf16> to vector<2x8x8xbf16>
    %308 = vector.extract_strided_slice %273 {offsets = [0, 56], sizes = [16, 8], strides = [1, 1]} : vector<16x64xbf16> to vector<16x8xbf16>
    %309 = vector.shape_cast %308 : vector<16x8xbf16> to vector<2x8x8xbf16>
    %310 = vector.shape_cast %303 : vector<2x8x8xbf16> to vector<1x2x8x8xbf16>
    %311 = vector.shape_cast %305 : vector<2x8x8xbf16> to vector<1x2x8x8xbf16>
    %312 = vector.shape_cast %307 : vector<2x8x8xbf16> to vector<1x2x8x8xbf16>
    %313 = vector.shape_cast %309 : vector<2x8x8xbf16> to vector<1x2x8x8xbf16>
    %314 = tpu.concatenate %310, %311, %312, %313 in 0 : vector<1x2x8x8xbf16>, vector<1x2x8x8xbf16>, vector<1x2x8x8xbf16>, vector<1x2x8x8xbf16> -> vector<4x2x8x8xbf16>
    %315 = vector.shape_cast %314 : vector<4x2x8x8xbf16> to vector<8x8x8xbf16>
    "tpu.trace_start"() <{level = 10 : i32, message = "bqd,bkd->bqk"}> : () -> ()
    %cst_98 = arith.constant dense<0.000000e+00> : vector<8x8x8xf32>
    %316 = tpu.matmul %287, %301, %cst_98 {dimension_numbers = #tpu.dot_dimension_numbers<[2], [2], [1], [1], [0, 0, 0, 1, 1, 1], [0], [0]>} : vector<8x8x8xbf16>, vector<8x8x8xbf16>, vector<8x8x8xf32> -> vector<8x8x8xf32>
    "tpu.trace_stop"() : () -> ()
    %cst_99 = arith.constant dense<0xFF800000> : vector<8x8xf32>
    %317 = vector.multi_reduction <maximumf>, %316, %cst_99 [2] : vector<8x8x8xf32> to vector<8x8xf32>
    %318 = vector.shape_cast %317 : vector<8x8xf32> to vector<8x8x1xf32>
    %319 = vector.broadcast %318 : vector<8x8x1xf32> to vector<8x8x8xf32>
    %320 = arith.subf %316, %319 : vector<8x8x8xf32>
    %321 = math.exp %320 : vector<8x8x8xf32>
    %cst_100 = arith.constant dense<0.000000e+00> : vector<8x8xf32>
    %322 = vector.multi_reduction <add>, %321, %cst_100 [2] : vector<8x8x8xf32> to vector<8x8xf32>
    %323 = vector.shape_cast %322 : vector<8x8xf32> to vector<8x8x1xf32>
    %324 = tpu.reciprocal %323 {approx = true} : vector<8x8x1xf32> -> vector<8x8x1xf32>
    %325 = vector.broadcast %324 : vector<8x8x1xf32> to vector<8x8x8xf32>
    %326 = arith.mulf %321, %325 : vector<8x8x8xf32>
    %327 = arith.truncf %326 : vector<8x8x8xf32> to vector<8x8x8xbf16>
    "tpu.trace_start"() <{level = 10 : i32, message = "bqk,bkd->bqd"}> : () -> ()
    %cst_101 = arith.constant dense<0.000000e+00> : vector<8x8x8xf32>
    %328 = tpu.matmul %327, %315, %cst_101 {dimension_numbers = #tpu.dot_dimension_numbers<[2], [1], [1], [2], [0, 0, 0, 1, 1, 2], [0], [0]>} : vector<8x8x8xbf16>, vector<8x8x8xbf16>, vector<8x8x8xf32> -> vector<8x8x8xf32>
    "tpu.trace_stop"() : () -> ()
    %329 = vector.shape_cast %328 : vector<8x8x8xf32> to vector<4x16x8xf32>
    %330 = arith.truncf %329 : vector<4x16x8xf32> to vector<4x16x8xbf16>
    "tpu.trace_start"() <{level = 10 : i32, message = "hnd,hde->hne"}> : () -> ()
    %cst_102 = arith.constant dense<0.000000e+00> : vector<4x16x32xf32>
    %331 = tpu.matmul %330, %264, %cst_102 {dimension_numbers = #tpu.dot_dimension_numbers<[2], [1], [1], [2], [0, 0, 0, 1, 1, 2], [0], [0]>} : vector<4x16x8xbf16>, vector<4x8x32xbf16>, vector<4x16x32xf32> -> vector<4x16x32xf32>
    "tpu.trace_stop"() : () -> ()
    %cst_103 = arith.constant dense<0.000000e+00> : vector<16x32xf32>
    %332 = vector.multi_reduction <add>, %331, %cst_103 [0] : vector<4x16x32xf32> to vector<16x32xf32>
    %333 = vector.broadcast %265 : vector<1x32xf32> to vector<16x32xf32>
    %334 = arith.addf %332, %333 : vector<16x32xf32>
    %335 = arith.addf %236, %334 : vector<16x32xf32>
    %c0_104 = arith.constant 0 : index
    %c0_105 = arith.constant 0 : index
    %336 = vector.load %arg28[%c0_104, %c0_105] : memref<1x32xf32, #tpu.memory_space<vmem>>, vector<1x32xf32>
    %c0_106 = arith.constant 0 : index
    %c0_107 = arith.constant 0 : index
    %337 = vector.load %arg29[%c0_106, %c0_107] : memref<1x32xf32, #tpu.memory_space<vmem>>, vector<1x32xf32>
    %cst_108 = arith.constant dense<0.000000e+00> : vector<16xf32>
    %338 = vector.multi_reduction <add>, %335, %cst_108 [1] : vector<16x32xf32> to vector<16xf32>
    %339 = vector.shape_cast %338 : vector<16xf32> to vector<16x1xf32>
    %cst_109 = arith.constant 3.200000e+01 : f32
    %340 = vector.broadcast %cst_109 : f32 to vector<16x1xf32>
    %341 = arith.divf %339, %340 : vector<16x1xf32>
    %342 = vector.broadcast %341 : vector<16x1xf32> to vector<16x32xf32>
    %343 = arith.subf %335, %342 : vector<16x32xf32>
    %344 = arith.mulf %343, %343 : vector<16x32xf32>
    %cst_110 = arith.constant dense<0.000000e+00> : vector<16xf32>
    %345 = vector.multi_reduction <add>, %344, %cst_110 [1] : vector<16x32xf32> to vector<16xf32>
    %346 = vector.shape_cast %345 : vector<16xf32> to vector<16x1xf32>
    %cst_111 = arith.constant 3.200000e+01 : f32
    %347 = vector.broadcast %cst_111 : f32 to vector<16x1xf32>
    %348 = arith.divf %346, %347 : vector<16x1xf32>
    %cst_112 = arith.constant 9.99999974E-6 : f32
    %349 = vector.broadcast %cst_112 : f32 to vector<16x1xf32>
    %350 = arith.addf %348, %349 : vector<16x1xf32>
    %351 = math.rsqrt %350 : vector<16x1xf32>
    %352 = vector.broadcast %351 : vector<16x1xf32> to vector<16x32xf32>
    %353 = arith.mulf %343, %352 : vector<16x32xf32>
    %354 = vector.broadcast %336 : vector<1x32xf32> to vector<16x32xf32>
    %355 = arith.mulf %353, %354 : vector<16x32xf32>
    %356 = vector.broadcast %337 : vector<1x32xf32> to vector<16x32xf32>
    %357 = arith.addf %355, %356 : vector<16x32xf32>
    %358 = arith.truncf %357 : vector<16x32xf32> to vector<16x32xbf16>
    %c0_113 = arith.constant 0 : index
    %c0_114 = arith.constant 0 : index
    %359 = vector.load %arg30[%c0_113, %c0_114] : memref<32x64xbf16, #tpu.memory_space<vmem>>, vector<32x64xbf16>
    %c0_115 = arith.constant 0 : index
    %c0_116 = arith.constant 0 : index
    %360 = vector.load %arg31[%c0_115, %c0_116] : memref<1x64xf32, #tpu.memory_space<vmem>>, vector<1x64xf32>
    %c0_117 = arith.constant 0 : index
    %c0_118 = arith.constant 0 : index
    %361 = vector.load %arg32[%c0_117, %c0_118] : memref<64x32xbf16, #tpu.memory_space<vmem>>, vector<64x32xbf16>
    %c0_119 = arith.constant 0 : index
    %c0_120 = arith.constant 0 : index
    %362 = vector.load %arg33[%c0_119, %c0_120] : memref<1x32xf32, #tpu.memory_space<vmem>>, vector<1x32xf32>
    %cst_121 = arith.constant dense<0.000000e+00> : vector<16x64xf32>
    %363 = tpu.matmul %358, %359, %cst_121 {dimension_numbers = #tpu.dot_dimension_numbers<[1], [0], [0], [1], [0, 0, 1, 1], [], []>} : vector<16x32xbf16>, vector<32x64xbf16>, vector<16x64xf32> -> vector<16x64xf32>
    %364 = vector.broadcast %360 : vector<1x64xf32> to vector<16x64xf32>
    %365 = arith.addf %363, %364 : vector<16x64xf32>
    %cst_122 = arith.constant 0.000000e+00 : f32
    %366 = vector.broadcast %cst_122 : f32 to vector<16x64xf32>
    %367 = arith.maximumf %365, %366 : vector<16x64xf32>
    %368 = arith.truncf %367 : vector<16x64xf32> to vector<16x64xbf16>
    %cst_123 = arith.constant dense<0.000000e+00> : vector<16x32xf32>
    %369 = tpu.matmul %368, %361, %cst_123 {dimension_numbers = #tpu.dot_dimension_numbers<[1], [0], [0], [1], [0, 0, 1, 1], [], []>} : vector<16x64xbf16>, vector<64x32xbf16>, vector<16x32xf32> -> vector<16x32xf32>
    %370 = vector.broadcast %362 : vector<1x32xf32> to vector<16x32xf32>
    %371 = arith.addf %369, %370 : vector<16x32xf32>
    %372 = arith.addf %335, %371 : vector<16x32xf32>
    %c0_124 = arith.constant 0 : index
    %c0_125 = arith.constant 0 : index
    %373 = vector.load %arg34[%c0_124, %c0_125] : memref<16x32xf32, #tpu.memory_space<vmem>>, vector<16x32xf32>
    tpu.vector_store %arg34[%c0_124, %c0_125], %372 {strides = array<i32>} : memref<16x32xf32, #tpu.memory_space<vmem>>, vector<16x32xf32>,
    return
  }
}

</mosaic_0001>

<llo_original>
// kernel: encoder_decoder_forward.1
$region0: #{encoder_decoder_forward.1}
  #allocation0 [shape = 'u32[]', space=smem, size = 0x4, offset = 0x4, fixed_abs, tag = 'smem constant byte address 0x4 - core index']
  #allocation1 [shape = 'u32[144,128]{1,0:T(1,128)}', space=vmem, size = 0x12000, scoped, tag = 'internal scratch']
  %s0 = inlined_call_operand.smem [shape: u32[35], index: -1, kind: input, shape index: {}]
  %s1 = sld [smem:[%s0]]
  %s2 = scalar_lea.smem %s0, 1
  %s3 = sld [smem:[%s2]]
  %s4 = scalar_lea.smem %s0, 2
  %s5 = sld [smem:[%s4]]
  %s6 = scalar_lea.smem %s0, 3
  %s7 = sld [smem:[%s6]]
  %s8 = scalar_lea.smem %s0, 4
  %s9 = sld [smem:[%s8]]
  %s10 = scalar_lea.smem %s0, 5
  %s11 = sld [smem:[%s10]]
  %s12 = scalar_lea.smem %s0, 6
  %s13 = sld [smem:[%s12]]
  %s14 = scalar_lea.smem %s0, 7
  %s15 = sld [smem:[%s14]]
  %s16 = scalar_lea.smem %s0, 8
  %s17 = sld [smem:[%s16]]
  %s18 = scalar_lea.smem %s0, 9
  %s19 = sld [smem:[%s18]]
  %s20 = scalar_lea.smem %s0, 10
  %s21 = sld [smem:[%s20]]
  %s22 = scalar_lea.smem %s0, 11
  %s23 = sld [smem:[%s22]]
  %s24 = scalar_lea.smem %s0, 12
  %s25 = sld [smem:[%s24]]
  %s26 = scalar_lea.smem %s0, 13
  %s27 = sld [smem:[%s26]]
  %s28 = scalar_lea.smem %s0, 14
  %s29 = sld [smem:[%s28]]
  %s30 = scalar_lea.smem %s0, 15
  %s31 = sld [smem:[%s30]]
  %s32 = scalar_lea.smem %s0, 16
  %s33 = sld [smem:[%s32]]
  %s34 = scalar_lea.smem %s0, 17
  %s35 = sld [smem:[%s34]]
  %s36 = scalar_lea.smem %s0, 18
  %s37 = sld [smem:[%s36]]
  %s38 = scalar_lea.smem %s0, 19
  %s39 = sld [smem:[%s38]]
  %s40 = scalar_lea.smem %s0, 20
  %s41 = sld [smem:[%s40]]
  %s42 = scalar_lea.smem %s0, 21
  %s43 = sld [smem:[%s42]]
  %s44 = scalar_lea.smem %s0, 22
  %s45 = sld [smem:[%s44]]
  %s46 = scalar_lea.smem %s0, 23
  %s47 = sld [smem:[%s46]]
  %s48 = scalar_lea.smem %s0, 24
  %s49 = sld [smem:[%s48]]
  %s50 = scalar_lea.smem %s0, 25
  %s51 = sld [smem:[%s50]]
  %s52 = scalar_lea.smem %s0, 26
  %s53 = sld [smem:[%s52]]
  %s54 = scalar_lea.smem %s0, 27
  %s55 = sld [smem:[%s54]]
  %s56 = scalar_lea.smem %s0, 28
  %s57 = sld [smem:[%s56]]
  %s58 = scalar_lea.smem %s0, 29
  %s59 = sld [smem:[%s58]]
  %s60 = scalar_lea.smem %s0, 30
  %s61 = sld [smem:[%s60]]
  %s62 = scalar_lea.smem %s0, 31
  %s63 = sld [smem:[%s62]]
  %s64 = scalar_lea.smem %s0, 32
  %s65 = sld [smem:[%s64]]
  %s66 = scalar_lea.smem %s0, 33
  %s67 = sld [smem:[%s66]]
  %s68 = scalar_lea.smem %s0, 34
  %s69 = sld [smem:[%s68]]
  %s70 = sld [smem:[#allocation0]]
  $region146: #{encoder_decoder_forward.1} parent=0
    _
  %s72 = ssub.s32 1, %s70
  %s73 = scalar_select 0, %s72, %s70
  $region1: #{encoder_decoder_forward.1} parent=0
    #allocation2 [shape = 'u8[8192]{0}', space=vmem, size = 0x2000, scoped, tag = 'output window, operand 0, single buffered']
    #allocation3 [shape = 's32[1]{0}', space=sflag, size = 0x4, scoped, tag = 'scoped memory for encoder_decoder_forward.1']
    %74 = vsyncpa [#allocation3], 0
    // Predicated region
    $region2: #{encoder_decoder_forward.1} parent=1 // pred_check
      _
    $region3: #{encoder_decoder_forward.1} parent=1 // pred_check_branch
      %76 = sbr.rel (0) target = $region5
    $region4: #{encoder_decoder_forward.1} parent=1 // pred_region
      _
    $region5: #{encoder_decoder_forward.1} parent=1 // pred_fallthru
      _
    // Predicated region
    $region6: #{encoder_decoder_forward.1} parent=1 // pred_check
      _
    $region7: #{encoder_decoder_forward.1} parent=1 // pred_check_branch
      %78 = sbr.rel (0) target = $region9
    $region8: #{encoder_decoder_forward.1} parent=1 // pred_region
      _
    $region9: #{encoder_decoder_forward.1} parent=1 // pred_fallthru
      _
    // Predicated region
    $region10: #{encoder_decoder_forward.1} parent=1 // pred_check
      _
    $region11: #{encoder_decoder_forward.1} parent=1 // pred_check_branch
      %80 = sbr.rel (0) target = $region13
    $region12: #{encoder_decoder_forward.1} parent=1 // pred_region
      _
    $region13: #{encoder_decoder_forward.1} parent=1 // pred_fallthru
      _
    // Predicated region
    $region14: #{encoder_decoder_forward.1} parent=1 // pred_check
      _
    $region15: #{encoder_decoder_forward.1} parent=1 // pred_check_branch
      %82 = sbr.rel (0) target = $region17
    $region16: #{encoder_decoder_forward.1} parent=1 // pred_region
      _
    $region17: #{encoder_decoder_forward.1} parent=1 // pred_fallthru
      _
    // Predicated region
    $region18: #{encoder_decoder_forward.1} parent=1 // pred_check
      _
    $region19: #{encoder_decoder_forward.1} parent=1 // pred_check_branch
      %84 = sbr.rel (0) target = $region21
    $region20: #{encoder_decoder_forward.1} parent=1 // pred_region
      _
    $region21: #{encoder_decoder_forward.1} parent=1 // pred_fallthru
      _
    // Predicated region
    $region22: #{encoder_decoder_forward.1} parent=1 // pred_check
      _
    $region23: #{encoder_decoder_forward.1} parent=1 // pred_check_branch
      %86 = sbr.rel (0) target = $region25
    $region24: #{encoder_decoder_forward.1} parent=1 // pred_region
      _
    $region25: #{encoder_decoder_forward.1} parent=1 // pred_fallthru
      _
    // Predicated region
    $region26: #{encoder_decoder_forward.1} parent=1 // pred_check
      _
    $region27: #{encoder_decoder_forward.1} parent=1 // pred_check_branch
      %88 = sbr.rel (0) target = $region29
    $region28: #{encoder_decoder_forward.1} parent=1 // pred_region
      _
    $region29: #{encoder_decoder_forward.1} parent=1 // pred_fallthru
      _
    // Predicated region
    $region30: #{encoder_decoder_forward.1} parent=1 // pred_check
      _
    $region31: #{encoder_decoder_forward.1} parent=1 // pred_check_branch
      %90 = sbr.rel (0) target = $region33
    $region32: #{encoder_decoder_forward.1} parent=1 // pred_region
      _
    $region33: #{encoder_decoder_forward.1} parent=1 // pred_fallthru
      _
    // Predicated region
    $region34: #{encoder_decoder_forward.1} parent=1 // pred_check
      _
    $region35: #{encoder_decoder_forward.1} parent=1 // pred_check_branch
      %92 = sbr.rel (0) target = $region37
    $region36: #{encoder_decoder_forward.1} parent=1 // pred_region
      _
    $region37: #{encoder_decoder_forward.1} parent=1 // pred_fallthru
      _
    // Predicated region
    $region38: #{encoder_decoder_forward.1} parent=1 // pred_check
      _
    $region39: #{encoder_decoder_forward.1} parent=1 // pred_check_branch
      %94 = sbr.rel (0) target = $region41
    $region40: #{encoder_decoder_forward.1} parent=1 // pred_region
      _
    $region41: #{encoder_decoder_forward.1} parent=1 // pred_fallthru
      _
    // Predicated region
    $region42: #{encoder_decoder_forward.1} parent=1 // pred_check
      _
    $region43: #{encoder_decoder_forward.1} parent=1 // pred_check_branch
      %96 = sbr.rel (0) target = $region45
    $region44: #{encoder_decoder_forward.1} parent=1 // pred_region
      _
    $region45: #{encoder_decoder_forward.1} parent=1 // pred_fallthru
      _
    // Predicated region
    $region46: #{encoder_decoder_forward.1} parent=1 // pred_check
      _
    $region47: #{encoder_decoder_forward.1} parent=1 // pred_check_branch
      %98 = sbr.rel (0) target = $region49
    $region48: #{encoder_decoder_forward.1} parent=1 // pred_region
      _
    $region49: #{encoder_decoder_forward.1} parent=1 // pred_fallthru
      _
    // Predicated region
    $region50: #{encoder_decoder_forward.1} parent=1 // pred_check
      _
    $region51: #{encoder_decoder_forward.1} parent=1 // pred_check_branch
      %100 = sbr.rel (0) target = $region53
    $region52: #{encoder_decoder_forward.1} parent=1 // pred_region
      _
    $region53: #{encoder_decoder_forward.1} parent=1 // pred_fallthru
      _
    // Predicated region
    $region54: #{encoder_decoder_forward.1} parent=1 // pred_check
      _
    $region55: #{encoder_decoder_forward.1} parent=1 // pred_check_branch
      %102 = sbr.rel (0) target = $region57
    $region56: #{encoder_decoder_forward.1} parent=1 // pred_region
      _
    $region57: #{encoder_decoder_forward.1} parent=1 // pred_fallthru
      _
    // Predicated region
    $region58: #{encoder_decoder_forward.1} parent=1 // pred_check
      _
    $region59: #{encoder_decoder_forward.1} parent=1 // pred_check_branch
      %104 = sbr.rel (0) target = $region61
    $region60: #{encoder_decoder_forward.1} parent=1 // pred_region
      _
    $region61: #{encoder_decoder_forward.1} parent=1 // pred_fallthru
      _
    // Predicated region
    $region62: #{encoder_decoder_forward.1} parent=1 // pred_check
      _
    $region63: #{encoder_decoder_forward.1} parent=1 // pred_check_branch
      %106 = sbr.rel (0) target = $region65
    $region64: #{encoder_decoder_forward.1} parent=1 // pred_region
      _
    $region65: #{encoder_decoder_forward.1} parent=1 // pred_fallthru
      _
    // Predicated region
    $region66: #{encoder_decoder_forward.1} parent=1 // pred_check
      _
    $region67: #{encoder_decoder_forward.1} parent=1 // pred_check_branch
      %108 = sbr.rel (0) target = $region69
    $region68: #{encoder_decoder_forward.1} parent=1 // pred_region
      _
    $region69: #{encoder_decoder_forward.1} parent=1 // pred_fallthru
      _
    // Predicated region
    $region70: #{encoder_decoder_forward.1} parent=1 // pred_check
      _
    $region71: #{encoder_decoder_forward.1} parent=1 // pred_check_branch
      %110 = sbr.rel (0) target = $region73
    $region72: #{encoder_decoder_forward.1} parent=1 // pred_region
      _
    $region73: #{encoder_decoder_forward.1} parent=1 // pred_fallthru
      _
    // Predicated region
    $region74: #{encoder_decoder_forward.1} parent=1 // pred_check
      _
    $region75: #{encoder_decoder_forward.1} parent=1 // pred_check_branch
      %112 = sbr.rel (0) target = $region77
    $region76: #{encoder_decoder_forward.1} parent=1 // pred_region
      _
    $region77: #{encoder_decoder_forward.1} parent=1 // pred_fallthru
      _
    // Predicated region
    $region78: #{encoder_decoder_forward.1} parent=1 // pred_check
      _
    $region79: #{encoder_decoder_forward.1} parent=1 // pred_check_branch
      %114 = sbr.rel (0) target = $region81
    $region80: #{encoder_decoder_forward.1} parent=1 // pred_region
      _
    $region81: #{encoder_decoder_forward.1} parent=1 // pred_fallthru
      _
    // Predicated region
    $region82: #{encoder_decoder_forward.1} parent=1 // pred_check
      _
    $region83: #{encoder_decoder_forward.1} parent=1 // pred_check_branch
      %116 = sbr.rel (0) target = $region85
    $region84: #{encoder_decoder_forward.1} parent=1 // pred_region
      _
    $region85: #{encoder_decoder_forward.1} parent=1 // pred_fallthru
      _
    // Predicated region
    $region86: #{encoder_decoder_forward.1} parent=1 // pred_check
      _
    $region87: #{encoder_decoder_forward.1} parent=1 // pred_check_branch
      %118 = sbr.rel (0) target = $region89
    $region88: #{encoder_decoder_forward.1} parent=1 // pred_region
      _
    $region89: #{encoder_decoder_forward.1} parent=1 // pred_fallthru
      _
    // Predicated region
    $region90: #{encoder_decoder_forward.1} parent=1 // pred_check
      _
    $region91: #{encoder_decoder_forward.1} parent=1 // pred_check_branch
      %120 = sbr.rel (0) target = $region93
    $region92: #{encoder_decoder_forward.1} parent=1 // pred_region
      _
    $region93: #{encoder_decoder_forward.1} parent=1 // pred_fallthru
      _
    // Predicated region
    $region94: #{encoder_decoder_forward.1} parent=1 // pred_check
      _
    $region95: #{encoder_decoder_forward.1} parent=1 // pred_check_branch
      %122 = sbr.rel (0) target = $region97
    $region96: #{encoder_decoder_forward.1} parent=1 // pred_region
      _
    $region97: #{encoder_decoder_forward.1} parent=1 // pred_fallthru
      _
    // Predicated region
    $region98: #{encoder_decoder_forward.1} parent=1 // pred_check
      _
    $region99: #{encoder_decoder_forward.1} parent=1 // pred_check_branch
      %124 = sbr.rel (0) target = $region101
    $region100: #{encoder_decoder_forward.1} parent=1 // pred_region
      _
    $region101: #{encoder_decoder_forward.1} parent=1 // pred_fallthru
      _
    // Predicated region
    $region102: #{encoder_decoder_forward.1} parent=1 // pred_check
      _
    $region103: #{encoder_decoder_forward.1} parent=1 // pred_check_branch
      %126 = sbr.rel (0) target = $region105
    $region104: #{encoder_decoder_forward.1} parent=1 // pred_region
      _
    $region105: #{encoder_decoder_forward.1} parent=1 // pred_fallthru
      _
    // Predicated region
    $region106: #{encoder_decoder_forward.1} parent=1 // pred_check
      _
    $region107: #{encoder_decoder_forward.1} parent=1 // pred_check_branch
      %128 = sbr.rel (0) target = $region109
    $region108: #{encoder_decoder_forward.1} parent=1 // pred_region
      _
    $region109: #{encoder_decoder_forward.1} parent=1 // pred_fallthru
      _
    // Predicated region
    $region110: #{encoder_decoder_forward.1} parent=1 // pred_check
      _
    $region111: #{encoder_decoder_forward.1} parent=1 // pred_check_branch
      %130 = sbr.rel (0) target = $region113
    $region112: #{encoder_decoder_forward.1} parent=1 // pred_region
      _
    $region113: #{encoder_decoder_forward.1} parent=1 // pred_fallthru
      _
    // Predicated region
    $region114: #{encoder_decoder_forward.1} parent=1 // pred_check
      _
    $region115: #{encoder_decoder_forward.1} parent=1 // pred_check_branch
      %132 = sbr.rel (0) target = $region117
    $region116: #{encoder_decoder_forward.1} parent=1 // pred_region
      _
    $region117: #{encoder_decoder_forward.1} parent=1 // pred_fallthru
      _
    // Predicated region
    $region118: #{encoder_decoder_forward.1} parent=1 // pred_check
      _
    $region119: #{encoder_decoder_forward.1} parent=1 // pred_check_branch
      %134 = sbr.rel (0) target = $region121
    $region120: #{encoder_decoder_forward.1} parent=1 // pred_region
      _
    $region121: #{encoder_decoder_forward.1} parent=1 // pred_fallthru
      _
    // Predicated region
    $region122: #{encoder_decoder_forward.1} parent=1 // pred_check
      _
    $region123: #{encoder_decoder_forward.1} parent=1 // pred_check_branch
      %136 = sbr.rel (0) target = $region125
    $region124: #{encoder_decoder_forward.1} parent=1 // pred_region
      _
    $region125: #{encoder_decoder_forward.1} parent=1 // pred_fallthru
      _
    // Predicated region
    $region126: #{encoder_decoder_forward.1} parent=1 // pred_check
      _
    $region127: #{encoder_decoder_forward.1} parent=1 // pred_check_branch
      %138 = sbr.rel (0) target = $region129
    $region128: #{encoder_decoder_forward.1} parent=1 // pred_region
      _
    $region129: #{encoder_decoder_forward.1} parent=1 // pred_fallthru
      _
    // Predicated region
    $region130: #{encoder_decoder_forward.1} parent=1 // pred_check
      _
    $region131: #{encoder_decoder_forward.1} parent=1 // pred_check_branch
      %140 = sbr.rel (0) target = $region133
    $region132: #{encoder_decoder_forward.1} parent=1 // pred_region
      _
    $region133: #{encoder_decoder_forward.1} parent=1 // pred_fallthru
      _
    // Predicated region
    $region134: #{encoder_decoder_forward.1} parent=1 // pred_check
      _
    $region135: #{encoder_decoder_forward.1} parent=1 // pred_check_branch
      %142 = sbr.rel (0) target = $region137
    $region136: #{encoder_decoder_forward.1} parent=1 // pred_region
      _
    $region137: #{encoder_decoder_forward.1} parent=1 // pred_fallthru
      _
    %v144 = vld [vmem:[%s1] sm:$0xf]
    %v145 = vld [vmem:[%s1 + $0x4] sm:$0xf]
    %v146 = vunpack.c.l.bf16 %v144
    %v147 = vunpack.c.l.bf16 %v145
    %v148 = vld [vmem:[%s3] sm:$0x1]
    %v149 = vld [vmem:[%s5] sm:$0x1]
    %vm150 = vcmask 261120
    %v151 = vsel %vm150, %v146, 0.0
    %152 = vadd.xlane.f32.xlu0 %v151
    %v153 = vpop.xlane.xlu0 %152
    %v154 = vsel %vm150, %v147, 0.0
    %155 = vadd.xlane.f32.xlu0 %v154
    %v156 = vpop.xlane.xlu0 %155
    %v157 = vrcp.pop 32.0
    %v158 = vmul.f32 %v153, %v157
    %v159 = vmul.f32 %v156, %v157
    %v160 = vsub.f32 %v146, %v158
    %v161 = vsub.f32 %v147, %v159
    %v162 = vmul.f32 %v160, %v160
    %v163 = vmul.f32 %v161, %v161
    %v164 = vsel %vm150, %v162, 0.0
    %165 = vadd.xlane.f32.xlu0 %v164
    %v166 = vpop.xlane.xlu0 %165
    %v167 = vsel %vm150, %v163, 0.0
    %168 = vadd.xlane.f32.xlu0 %v167
    %v169 = vpop.xlane.xlu0 %168
    %v170 = vmul.f32 %v166, %v157
    %v171 = vmul.f32 %v169, %v157
    %v172 = vadd.f32 %v170, 1e-05
    %v173 = vadd.f32 %v171, 1e-05
    %v174 = vrsqrt.pop %v172
    %v175 = vrsqrt.pop %v173
    %v176 = vmul.f32 %v160, %v174
    %v177 = vmul.f32 %v161, %v175
    %v179 = vlaneseq
    %v180 = vshrl.u32 %v179, 7
    %v181 = vsub.s32 0, %v180
    %v182 = vrot.slane %v148, %v181
    %v184 = vmul.f32 %v176, %v182
    %v185 = vmul.f32 %v177, %v182
    %v187 = vlaneseq
    %v188 = vshrl.u32 %v187, 7
    %v189 = vsub.s32 0, %v188
    %v190 = vrot.slane %v149, %v189
    %v192 = vadd.f32 %v184, %v190
    %v193 = vadd.f32 %v185, %v190
    %v194 = vpack.c.bf16 %v193, %v192
    %v195 = vld [vmem:[%s7] sm:$0xf]
    %v196 = vld [vmem:[%s7 + $0x4] sm:$0xf]
    %v197 = vld [vmem:[%s7 + $0x8] sm:$0xf]
    %v198 = vld [vmem:[%s7 + $0xc] sm:$0xf]
    %v199 = vld [vmem:[%s9] sm:$0x1]
    %v200 = vld [vmem:[%s11] sm:$0xf]
    %v201 = vld [vmem:[%s11 + $0x4] sm:$0xf]
    %v202 = vld [vmem:[%s11 + $0x8] sm:$0xf]
    %v203 = vld [vmem:[%s11 + $0xc] sm:$0xf]
    %v204 = vld [vmem:[%s13] sm:$0x1]
    %v206 = vlaneseq
    %v207 = vshrl.u32 %v206, 7
    %v208 = vsub.s32 0, %v207
    %v209 = vrot.slane %v199, %v208
    %v215 = vunpack.c.l.b16 %v195
    %v216 = vunpack.c.l.b16 %v196
    %v217 = vunpack.c.l.b16 %v197
    %v218 = vunpack.c.l.b16 %v198
    %v219 = vpack.c.b16 %v216, %v215
    %v220 = vpack.c.b16 %v218, %v217
    %v224 = vsel %vm150, %v194, 0
    %226 = vmatprep.subr.bf16.mxu0 0
    %227 = vmatpush1.bf16.msra.mxu0 %v219
    %228 = vmatprep.subr.bf16.mxu0 0
    %229 = vmatpush1.bf16.msra.mxu0 %v220
    %230 = vmatprep.subr.bf16.mxu0 0
    %231 = vmatpush1.bf16.msra.mxu0 0
    %232 = vmatprep.subr.bf16.mxu0 0
    %233 = vmatpush1.bf16.msra.mxu0 0
    %234 = vmatprep.subr.bf16.mxu0 0
    %235 = vmatpush1.bf16.msra.mxu0 0
    %236 = vmatprep.subr.bf16.mxu0 0
    %237 = vmatpush1.bf16.msra.mxu0 0
    %238 = vmatprep.subr.bf16.mxu0 0
    %239 = vmatpush1.bf16.msra.mxu0 0
    %240 = vmatprep.subr.bf16.mxu0 0
    %241 = vmatpush1.bf16.msra.mxu0 0
    %242 = vmatprep.subr.bf16.mxu0 0
    %243 = vmatpush1.bf16.msra.mxu0 0
    %244 = vmatprep.subr.bf16.mxu0 0
    %245 = vmatpush1.bf16.msra.mxu0 0
    %246 = vmatprep.subr.bf16.mxu0 0
    %247 = vmatpush1.bf16.msra.mxu0 0
    %248 = vmatprep.subr.bf16.mxu0 0
    %249 = vmatpush1.bf16.msra.mxu0 0
    %250 = vmatprep.subr.bf16.mxu0 0
    %251 = vmatpush1.bf16.msra.mxu0 0
    %252 = vmatprep.subr.bf16.mxu0 0
    %253 = vmatpush1.bf16.msra.mxu0 0
    %254 = vmatprep.subr.bf16.mxu0 0
    %255 = vmatpush1.bf16.msra.mxu0 0
    %256 = vmatprep.subr.bf16.mxu0 0
    %257 = vmatpush1.bf16.msra.mxu0 0
    %258 = vmatprep.mubr.bf16.mxu0 0
    %259 = vmatmul.mubr.bf16.gmra.mrb[0].mxu0 %v224
    %v260 = vpop.f32.mrb[0].mxu0
    %v261 = vadd.f32 %v209, %v260
    %v262 = vpop.f32.mrb[0].mxu0
    %v263 = vpop.f32.mrb[0].mxu0
    %v264 = vadd.f32 %v209, %v263
    %v265 = vpop.f32.mrb[0].mxu0
    %266 = vdwg.mxu0
    %v267 = vpack.c.bf16 %v264, %v261
    %v269 = vunpack.c.l.b16 %v267
    %v270 = vunpack.c.h.b16 %v267
    %v271 = vpack.c.b16 %v269, %v269
    %v272 = vpack.c.b16 %v270, %v270
    %273 = vrot.lane.b32.xlu0 %v271, 120
    %v274 = vpop.permute.xlu0 %273
    %275 = vrot.lane.b32.xlu0 %v272, 120
    %v276 = vpop.permute.xlu0 %275
    %277 = vrot.lane.b32.xlu0 %v271, 112
    %v278 = vpop.permute.xlu0 %277
    %279 = vrot.lane.b32.xlu0 %v272, 112
    %v280 = vpop.permute.xlu0 %279
    %281 = vrot.lane.b32.xlu0 %v271, 104
    %v282 = vpop.permute.xlu0 %281
    %283 = vrot.lane.b32.xlu0 %v272, 104
    %v284 = vpop.permute.xlu0 %283
    %285 = vrot.lane.b32.xlu0 %v271, 96
    %v286 = vpop.permute.xlu0 %285
    %vm287 = vcmask 64512
    %v289 = vsel %vm287, %v271, 0
    %v292 = vsel %vm287, %v286, 0
    %294 = vmatprep.subr.bf16.mxu0 0
    %295 = vmatpush1.bf16.xpose.msra.mxu0 %v292
    %296 = vmatprep.subr.bf16.mxu0 0
    %297 = vmatpush1.bf16.xpose.msra.mxu0 0
    %298 = vmatprep.subr.bf16.mxu0 0
    %299 = vmatpush1.bf16.xpose.msra.mxu0 0
    %300 = vmatprep.subr.bf16.mxu0 0
    %301 = vmatpush1.bf16.xpose.msra.mxu0 0
    %302 = vmatprep.subr.bf16.mxu0 0
    %303 = vmatpush1.bf16.xpose.msra.mxu0 0
    %304 = vmatprep.subr.bf16.mxu0 0
    %305 = vmatpush1.bf16.xpose.msra.mxu0 0
    %306 = vmatprep.subr.bf16.mxu0 0
    %307 = vmatpush1.bf16.xpose.msra.mxu0 0
    %308 = vmatprep.subr.bf16.mxu0 0
    %309 = vmatpush1.bf16.xpose.msra.mxu0 0
    %310 = vmatprep.subr.bf16.mxu0 0
    %311 = vmatpush1.bf16.xpose.msra.mxu0 0
    %312 = vmatprep.subr.bf16.mxu0 0
    %313 = vmatpush1.bf16.xpose.msra.mxu0 0
    %314 = vmatprep.subr.bf16.mxu0 0
    %315 = vmatpush1.bf16.xpose.msra.mxu0 0
    %316 = vmatprep.subr.bf16.mxu0 0
    %317 = vmatpush1.bf16.xpose.msra.mxu0 0
    %318 = vmatprep.subr.bf16.mxu0 0
    %319 = vmatpush1.bf16.xpose.msra.mxu0 0
    %320 = vmatprep.subr.bf16.mxu0 0
    %321 = vmatpush1.bf16.xpose.msra.mxu0 0
    %322 = vmatprep.subr.bf16.mxu0 0
    %323 = vmatpush1.bf16.xpose.msra.mxu0 0
    %324 = vmatprep.subr.bf16.mxu0 0
    %325 = vmatpush1.bf16.xpose.msra.mxu0 0
    %326 = vmatprep.mubr.bf16.mxu0 0
    %327 = vmatmul.mubr.bf16.gmra.mrb[0].mxu0 %v289
    %v328 = vpop.f32.mrb[0].mxu0
    %v329 = vadd.f32 0.0, %v328
    %v330 = vpop.f32.mrb[0].mxu0
    %v331 = vpop.f32.mrb[0].mxu0
    %v332 = vpop.f32.mrb[0].mxu0
    %333 = vdwg.mxu0
    %334 = vrot.lane.b32.xlu0 %v272, 96
    %v335 = vpop.permute.xlu0 %334
    %v337 = vsel %vm287, %v272, 0
    %v340 = vsel %vm287, %v335, 0
    %342 = vmatprep.subr.bf16.mxu0 0
    %343 = vmatpush1.bf16.xpose.msra.mxu0 %v340
    %344 = vmatprep.subr.bf16.mxu0 0
    %345 = vmatpush1.bf16.xpose.msra.mxu0 0
    %346 = vmatprep.subr.bf16.mxu0 0
    %347 = vmatpush1.bf16.xpose.msra.mxu0 0
    %348 = vmatprep.subr.bf16.mxu0 0
    %349 = vmatpush1.bf16.xpose.msra.mxu0 0
    %350 = vmatprep.subr.bf16.mxu0 0
    %351 = vmatpush1.bf16.xpose.msra.mxu0 0
    %352 = vmatprep.subr.bf16.mxu0 0
    %353 = vmatpush1.bf16.xpose.msra.mxu0 0
    %354 = vmatprep.subr.bf16.mxu0 0
    %355 = vmatpush1.bf16.xpose.msra.mxu0 0
    %356 = vmatprep.subr.bf16.mxu0 0
    %357 = vmatpush1.bf16.xpose.msra.mxu0 0
    %358 = vmatprep.subr.bf16.mxu0 0
    %359 = vmatpush1.bf16.xpose.msra.mxu0 0
    %360 = vmatprep.subr.bf16.mxu0 0
    %361 = vmatpush1.bf16.xpose.msra.mxu0 0
    %362 = vmatprep.subr.bf16.mxu0 0
    %363 = vmatpush1.bf16.xpose.msra.mxu0 0
    %364 = vmatprep.subr.bf16.mxu0 0
    %365 = vmatpush1.bf16.xpose.msra.mxu0 0
    %366 = vmatprep.subr.bf16.mxu0 0
    %367 = vmatpush1.bf16.xpose.msra.mxu0 0
    %368 = vmatprep.subr.bf16.mxu0 0
    %369 = vmatpush1.bf16.xpose.msra.mxu0 0
    %370 = vmatprep.subr.bf16.mxu0 0
    %371 = vmatpush1.bf16.xpose.msra.mxu0 0
    %372 = vmatprep.subr.bf16.mxu0 0
    %373 = vmatpush1.bf16.xpose.msra.mxu0 0
    %374 = vmatprep.mubr.bf16.mxu0 0
    %375 = vmatmul.mubr.bf16.gmra.mrb[0].mxu0 %v337
    %v376 = vpop.f32.mrb[0].mxu0
    %v377 = vadd.f32 0.0, %v376
    %v378 = vpop.f32.mrb[0].mxu0
    %v379 = vpop.f32.mrb[0].mxu0
    %v380 = vpop.f32.mrb[0].mxu0
    %381 = vdwg.mxu0
    %v382 = vunpack.c.l.b16 %v274
    %v383 = vpack.c.b16 %v382, %v382
    %384 = vrot.lane.b32.xlu0 %v383, 96
    %v385 = vpop.permute.xlu0 %384
    %v387 = vsel %vm287, %v274, 0
    %v390 = vsel %vm287, %v385, 0
    %392 = vmatprep.subr.bf16.mxu0 0
    %393 = vmatpush1.bf16.xpose.msra.mxu0 %v390
    %394 = vmatprep.subr.bf16.mxu0 0
    %395 = vmatpush1.bf16.xpose.msra.mxu0 0
    %396 = vmatprep.subr.bf16.mxu0 0
    %397 = vmatpush1.bf16.xpose.msra.mxu0 0
    %398 = vmatprep.subr.bf16.mxu0 0
    %399 = vmatpush1.bf16.xpose.msra.mxu0 0
    %400 = vmatprep.subr.bf16.mxu0 0
    %401 = vmatpush1.bf16.xpose.msra.mxu0 0
    %402 = vmatprep.subr.bf16.mxu0 0
    %403 = vmatpush1.bf16.xpose.msra.mxu0 0
    %404 = vmatprep.subr.bf16.mxu0 0
    %405 = vmatpush1.bf16.xpose.msra.mxu0 0
    %406 = vmatprep.subr.bf16.mxu0 0
    %407 = vmatpush1.bf16.xpose.msra.mxu0 0
    %408 = vmatprep.subr.bf16.mxu0 0
    %409 = vmatpush1.bf16.xpose.msra.mxu0 0
    %410 = vmatprep.subr.bf16.mxu0 0
    %411 = vmatpush1.bf16.xpose.msra.mxu0 0
    %412 = vmatprep.subr.bf16.mxu0 0
    %413 = vmatpush1.bf16.xpose.msra.mxu0 0
    %414 = vmatprep.subr.bf16.mxu0 0
    %415 = vmatpush1.bf16.xpose.msra.mxu0 0
    %416 = vmatprep.subr.bf16.mxu0 0
    %417 = vmatpush1.bf16.xpose.msra.mxu0 0
    %418 = vmatprep.subr.bf16.mxu0 0
    %419 = vmatpush1.bf16.xpose.msra.mxu0 0
    %420 = vmatprep.subr.bf16.mxu0 0
    %421 = vmatpush1.bf16.xpose.msra.mxu0 0
    %422 = vmatprep.subr.bf16.mxu0 0
    %423 = vmatpush1.bf16.xpose.msra.mxu0 0
    %424 = vmatprep.mubr.bf16.mxu0 0
    %425 = vmatmul.mubr.bf16.gmra.mrb[0].mxu0 %v387
    %v426 = vpop.f32.mrb[0].mxu0
    %v427 = vadd.f32 0.0, %v426
    %v428 = vpop.f32.mrb[0].mxu0
    %v429 = vpop.f32.mrb[0].mxu0
    %v430 = vpop.f32.mrb[0].mxu0
    %431 = vdwg.mxu0
    %v432 = vunpack.c.l.b16 %v276
    %v433 = vpack.c.b16 %v432, %v432
    %434 = vrot.lane.b32.xlu0 %v433, 96
    %v435 = vpop.permute.xlu0 %434
    %v437 = vsel %vm287, %v276, 0
    %v440 = vsel %vm287, %v435, 0
    %442 = vmatprep.subr.bf16.mxu0 0
    %443 = vmatpush1.bf16.xpose.msra.mxu0 %v440
    %444 = vmatprep.subr.bf16.mxu0 0
    %445 = vmatpush1.bf16.xpose.msra.mxu0 0
    %446 = vmatprep.subr.bf16.mxu0 0
    %447 = vmatpush1.bf16.xpose.msra.mxu0 0
    %448 = vmatprep.subr.bf16.mxu0 0
    %449 = vmatpush1.bf16.xpose.msra.mxu0 0
    %450 = vmatprep.subr.bf16.mxu0 0
    %451 = vmatpush1.bf16.xpose.msra.mxu0 0
    %452 = vmatprep.subr.bf16.mxu0 0
    %453 = vmatpush1.bf16.xpose.msra.mxu0 0
    %454 = vmatprep.subr.bf16.mxu0 0
    %455 = vmatpush1.bf16.xpose.msra.mxu0 0
    %456 = vmatprep.subr.bf16.mxu0 0
    %457 = vmatpush1.bf16.xpose.msra.mxu0 0
    %458 = vmatprep.subr.bf16.mxu0 0
    %459 = vmatpush1.bf16.xpose.msra.mxu0 0
    %460 = vmatprep.subr.bf16.mxu0 0
    %461 = vmatpush1.bf16.xpose.msra.mxu0 0
    %462 = vmatprep.subr.bf16.mxu0 0
    %463 = vmatpush1.bf16.xpose.msra.mxu0 0
    %464 = vmatprep.subr.bf16.mxu0 0
    %465 = vmatpush1.bf16.xpose.msra.mxu0 0
    %466 = vmatprep.subr.bf16.mxu0 0
    %467 = vmatpush1.bf16.xpose.msra.mxu0 0
    %468 = vmatprep.subr.bf16.mxu0 0
    %469 = vmatpush1.bf16.xpose.msra.mxu0 0
    %470 = vmatprep.subr.bf16.mxu0 0
    %471 = vmatpush1.bf16.xpose.msra.mxu0 0
    %472 = vmatprep.subr.bf16.mxu0 0
    %473 = vmatpush1.bf16.xpose.msra.mxu0 0
    %474 = vmatprep.mubr.bf16.mxu0 0
    %475 = vmatmul.mubr.bf16.gmra.mrb[0].mxu0 %v437
    %v476 = vpop.f32.mrb[0].mxu0
    %v477 = vadd.f32 0.0, %v476
    %v478 = vpop.f32.mrb[0].mxu0
    %v479 = vpop.f32.mrb[0].mxu0
    %v480 = vpop.f32.mrb[0].mxu0
    %481 = vdwg.mxu0
    %v482 = vunpack.c.l.b16 %v278
    %v483 = vpack.c.b16 %v482, %v482
    %484 = vrot.lane.b32.xlu0 %v483, 96
    %v485 = vpop.permute.xlu0 %484
    %v487 = vsel %vm287, %v278, 0
    %v490 = vsel %vm287, %v485, 0
    %492 = vmatprep.subr.bf16.mxu0 0
    %493 = vmatpush1.bf16.xpose.msra.mxu0 %v490
    %494 = vmatprep.subr.bf16.mxu0 0
    %495 = vmatpush1.bf16.xpose.msra.mxu0 0
    %496 = vmatprep.subr.bf16.mxu0 0
    %497 = vmatpush1.bf16.xpose.msra.mxu0 0
    %498 = vmatprep.subr.bf16.mxu0 0
    %499 = vmatpush1.bf16.xpose.msra.mxu0 0
    %500 = vmatprep.subr.bf16.mxu0 0
    %501 = vmatpush1.bf16.xpose.msra.mxu0 0
    %502 = vmatprep.subr.bf16.mxu0 0
    %503 = vmatpush1.bf16.xpose.msra.mxu0 0
    %504 = vmatprep.subr.bf16.mxu0 0
    %505 = vmatpush1.bf16.xpose.msra.mxu0 0
    %506 = vmatprep.subr.bf16.mxu0 0
    %507 = vmatpush1.bf16.xpose.msra.mxu0 0
    %508 = vmatprep.subr.bf16.mxu0 0
    %509 = vmatpush1.bf16.xpose.msra.mxu0 0
    %510 = vmatprep.subr.bf16.mxu0 0
    %511 = vmatpush1.bf16.xpose.msra.mxu0 0
    %512 = vmatprep.subr.bf16.mxu0 0
    %513 = vmatpush1.bf16.xpose.msra.mxu0 0
    %514 = vmatprep.subr.bf16.mxu0 0
    %515 = vmatpush1.bf16.xpose.msra.mxu0 0
    %516 = vmatprep.subr.bf16.mxu0 0
    %517 = vmatpush1.bf16.xpose.msra.mxu0 0
    %518 = vmatprep.subr.bf16.mxu0 0
    %519 = vmatpush1.bf16.xpose.msra.mxu0 0
    %520 = vmatprep.subr.bf16.mxu0 0
    %521 = vmatpush1.bf16.xpose.msra.mxu0 0
    %522 = vmatprep.subr.bf16.mxu0 0
    %523 = vmatpush1.bf16.xpose.msra.mxu0 0
    %524 = vmatprep.mubr.bf16.mxu0 0
    %525 = vmatmul.mubr.bf16.gmra.mrb[0].mxu0 %v487
    %v526 = vpop.f32.mrb[0].mxu0
    %v527 = vadd.f32 0.0, %v526
    %v528 = vpop.f32.mrb[0].mxu0
    %v529 = vpop.f32.mrb[0].mxu0
    %v530 = vpop.f32.mrb[0].mxu0
    %531 = vdwg.mxu0
    %v532 = vunpack.c.l.b16 %v280
    %v533 = vpack.c.b16 %v532, %v532
    %534 = vrot.lane.b32.xlu0 %v533, 96
    %v535 = vpop.permute.xlu0 %534
    %v537 = vsel %vm287, %v280, 0
    %v540 = vsel %vm287, %v535, 0
    %542 = vmatprep.subr.bf16.mxu0 0
    %543 = vmatpush1.bf16.xpose.msra.mxu0 %v540
    %544 = vmatprep.subr.bf16.mxu0 0
    %545 = vmatpush1.bf16.xpose.msra.mxu0 0
    %546 = vmatprep.subr.bf16.mxu0 0
    %547 = vmatpush1.bf16.xpose.msra.mxu0 0
    %548 = vmatprep.subr.bf16.mxu0 0
    %549 = vmatpush1.bf16.xpose.msra.mxu0 0
    %550 = vmatprep.subr.bf16.mxu0 0
    %551 = vmatpush1.bf16.xpose.msra.mxu0 0
    %552 = vmatprep.subr.bf16.mxu0 0
    %553 = vmatpush1.bf16.xpose.msra.mxu0 0
    %554 = vmatprep.subr.bf16.mxu0 0
    %555 = vmatpush1.bf16.xpose.msra.mxu0 0
    %556 = vmatprep.subr.bf16.mxu0 0
    %557 = vmatpush1.bf16.xpose.msra.mxu0 0
    %558 = vmatprep.subr.bf16.mxu0 0
    %559 = vmatpush1.bf16.xpose.msra.mxu0 0
    %560 = vmatprep.subr.bf16.mxu0 0
    %561 = vmatpush1.bf16.xpose.msra.mxu0 0
    %562 = vmatprep.subr.bf16.mxu0 0
    %563 = vmatpush1.bf16.xpose.msra.mxu0 0
    %564 = vmatprep.subr.bf16.mxu0 0
    %565 = vmatpush1.bf16.xpose.msra.mxu0 0
    %566 = vmatprep.subr.bf16.mxu0 0
    %567 = vmatpush1.bf16.xpose.msra.mxu0 0
    %568 = vmatprep.subr.bf16.mxu0 0
    %569 = vmatpush1.bf16.xpose.msra.mxu0 0
    %570 = vmatprep.subr.bf16.mxu0 0
    %571 = vmatpush1.bf16.xpose.msra.mxu0 0
    %572 = vmatprep.subr.bf16.mxu0 0
    %573 = vmatpush1.bf16.xpose.msra.mxu0 0
    %574 = vmatprep.mubr.bf16.mxu0 0
    %575 = vmatmul.mubr.bf16.gmra.mrb[0].mxu0 %v537
    %v576 = vpop.f32.mrb[0].mxu0
    %v577 = vadd.f32 0.0, %v576
    %v578 = vpop.f32.mrb[0].mxu0
    %v579 = vpop.f32.mrb[0].mxu0
    %v580 = vpop.f32.mrb[0].mxu0
    %581 = vdwg.mxu0
    %v582 = vunpack.c.l.b16 %v282
    %v583 = vpack.c.b16 %v582, %v582
    %584 = vrot.lane.b32.xlu0 %v583, 96
    %v585 = vpop.permute.xlu0 %584
    %v587 = vsel %vm287, %v282, 0
    %v590 = vsel %vm287, %v585, 0
    %592 = vmatprep.subr.bf16.mxu0 0
    %593 = vmatpush1.bf16.xpose.msra.mxu0 %v590
    %594 = vmatprep.subr.bf16.mxu0 0
    %595 = vmatpush1.bf16.xpose.msra.mxu0 0
    %596 = vmatprep.subr.bf16.mxu0 0
    %597 = vmatpush1.bf16.xpose.msra.mxu0 0
    %598 = vmatprep.subr.bf16.mxu0 0
    %599 = vmatpush1.bf16.xpose.msra.mxu0 0
    %600 = vmatprep.subr.bf16.mxu0 0
    %601 = vmatpush1.bf16.xpose.msra.mxu0 0
    %602 = vmatprep.subr.bf16.mxu0 0
    %603 = vmatpush1.bf16.xpose.msra.mxu0 0
    %604 = vmatprep.subr.bf16.mxu0 0
    %605 = vmatpush1.bf16.xpose.msra.mxu0 0
    %606 = vmatprep.subr.bf16.mxu0 0
    %607 = vmatpush1.bf16.xpose.msra.mxu0 0
    %608 = vmatprep.subr.bf16.mxu0 0
    %609 = vmatpush1.bf16.xpose.msra.mxu0 0
    %610 = vmatprep.subr.bf16.mxu0 0
    %611 = vmatpush1.bf16.xpose.msra.mxu0 0
    %612 = vmatprep.subr.bf16.mxu0 0
    %613 = vmatpush1.bf16.xpose.msra.mxu0 0
    %614 = vmatprep.subr.bf16.mxu0 0
    %615 = vmatpush1.bf16.xpose.msra.mxu0 0
    %616 = vmatprep.subr.bf16.mxu0 0
    %617 = vmatpush1.bf16.xpose.msra.mxu0 0
    %618 = vmatprep.subr.bf16.mxu0 0
    %619 = vmatpush1.bf16.xpose.msra.mxu0 0
    %620 = vmatprep.subr.bf16.mxu0 0
    %621 = vmatpush1.bf16.xpose.msra.mxu0 0
    %622 = vmatprep.subr.bf16.mxu0 0
    %623 = vmatpush1.bf16.xpose.msra.mxu0 0
    %624 = vmatprep.mubr.bf16.mxu0 0
    %625 = vmatmul.mubr.bf16.gmra.mrb[0].mxu0 %v587
    %v626 = vpop.f32.mrb[0].mxu0
    %v627 = vadd.f32 0.0, %v626
    %v628 = vpop.f32.mrb[0].mxu0
    %v629 = vpop.f32.mrb[0].mxu0
    %v630 = vpop.f32.mrb[0].mxu0
    %631 = vdwg.mxu0
    %v632 = vunpack.c.l.b16 %v284
    %v633 = vpack.c.b16 %v632, %v632
    %634 = vrot.lane.b32.xlu0 %v633, 96
    %v635 = vpop.permute.xlu0 %634
    %v637 = vsel %vm287, %v284, 0
    %v640 = vsel %vm287, %v635, 0
    %642 = vmatprep.subr.bf16.mxu0 0
    %643 = vmatpush1.bf16.xpose.msra.mxu0 %v640
    %644 = vmatprep.subr.bf16.mxu0 0
    %645 = vmatpush1.bf16.xpose.msra.mxu0 0
    %646 = vmatprep.subr.bf16.mxu0 0
    %647 = vmatpush1.bf16.xpose.msra.mxu0 0
    %648 = vmatprep.subr.bf16.mxu0 0
    %649 = vmatpush1.bf16.xpose.msra.mxu0 0
    %650 = vmatprep.subr.bf16.mxu0 0
    %651 = vmatpush1.bf16.xpose.msra.mxu0 0
    %652 = vmatprep.subr.bf16.mxu0 0
    %653 = vmatpush1.bf16.xpose.msra.mxu0 0
    %654 = vmatprep.subr.bf16.mxu0 0
    %655 = vmatpush1.bf16.xpose.msra.mxu0 0
    %656 = vmatprep.subr.bf16.mxu0 0
    %657 = vmatpush1.bf16.xpose.msra.mxu0 0
    %658 = vmatprep.subr.bf16.mxu0 0
    %659 = vmatpush1.bf16.xpose.msra.mxu0 0
    %660 = vmatprep.subr.bf16.mxu0 0
    %661 = vmatpush1.bf16.xpose.msra.mxu0 0
    %662 = vmatprep.subr.bf16.mxu0 0
    %663 = vmatpush1.bf16.xpose.msra.mxu0 0
    %664 = vmatprep.subr.bf16.mxu0 0
    %665 = vmatpush1.bf16.xpose.msra.mxu0 0
    %666 = vmatprep.subr.bf16.mxu0 0
    %667 = vmatpush1.bf16.xpose.msra.mxu0 0
    %668 = vmatprep.subr.bf16.mxu0 0
    %669 = vmatpush1.bf16.xpose.msra.mxu0 0
    %670 = vmatprep.subr.bf16.mxu0 0
    %671 = vmatpush1.bf16.xpose.msra.mxu0 0
    %672 = vmatprep.subr.bf16.mxu0 0
    %673 = vmatpush1.bf16.xpose.msra.mxu0 0
    %674 = vmatprep.mubr.bf16.mxu0 0
    %675 = vmatmul.mubr.bf16.gmra.mrb[0].mxu0 %v637
    %v676 = vpop.f32.mrb[0].mxu0
    %v677 = vadd.f32 0.0, %v676
    %v678 = vpop.f32.mrb[0].mxu0
    %v679 = vpop.f32.mrb[0].mxu0
    %v680 = vpop.f32.mrb[0].mxu0
    %681 = vdwg.mxu0
    %v682 = vsel %vm287, %v329, -inf
    %683 = vmax.xlane.f32.xlu0 %v682
    %v684 = vpop.xlane.xlu0 %683
    %v685 = vsel %vm287, %v377, -inf
    %686 = vmax.xlane.f32.xlu0 %v685
    %v687 = vpop.xlane.xlu0 %686
    %v688 = vsel %vm287, %v427, -inf
    %689 = vmax.xlane.f32.xlu0 %v688
    %v690 = vpop.xlane.xlu0 %689
    %v691 = vsel %vm287, %v477, -inf
    %692 = vmax.xlane.f32.xlu0 %v691
    %v693 = vpop.xlane.xlu0 %692
    %v694 = vsel %vm287, %v527, -inf
    %695 = vmax.xlane.f32.xlu0 %v694
    %v696 = vpop.xlane.xlu0 %695
    %v697 = vsel %vm287, %v577, -inf
    %698 = vmax.xlane.f32.xlu0 %v697
    %v699 = vpop.xlane.xlu0 %698
    %v700 = vsel %vm287, %v627, -inf
    %701 = vmax.xlane.f32.xlu0 %v700
    %v702 = vpop.xlane.xlu0 %701
    %v703 = vsel %vm287, %v677, -inf
    %704 = vmax.xlane.f32.xlu0 %v703
    %v705 = vpop.xlane.xlu0 %704
    %v706 = vsub.f32 %v329, %v684
    %v707 = vsub.f32 %v377, %v687
    %v708 = vsub.f32 %v427, %v690
    %v709 = vsub.f32 %v477, %v693
    %v710 = vsub.f32 %v527, %v696
    %v711 = vsub.f32 %v577, %v699
    %v712 = vsub.f32 %v627, %v702
    %v713 = vsub.f32 %v677, %v705
    %v714 = vmul.f32 %v706, 1.442695
    %v715 = vpow.pop %v714
    %v716 = vmul.f32 %v707, 1.442695
    %v717 = vpow.pop %v716
    %v718 = vmul.f32 %v708, 1.442695
    %v719 = vpow.pop %v718
    %v720 = vmul.f32 %v709, 1.442695
    %v721 = vpow.pop %v720
    %v722 = vmul.f32 %v710, 1.442695
    %v723 = vpow.pop %v722
    %v724 = vmul.f32 %v711, 1.442695
    %v725 = vpow.pop %v724
    %v726 = vmul.f32 %v712, 1.442695
    %v727 = vpow.pop %v726
    %v728 = vmul.f32 %v713, 1.442695
    %v729 = vpow.pop %v728
    %v730 = vsel %vm287, %v715, 0.0
    %731 = vadd.xlane.f32.xlu0 %v730
    %v732 = vpop.xlane.xlu0 %731
    %v733 = vsel %vm287, %v717, 0.0
    %734 = vadd.xlane.f32.xlu0 %v733
    %v735 = vpop.xlane.xlu0 %734
    %v736 = vsel %vm287, %v719, 0.0
    %737 = vadd.xlane.f32.xlu0 %v736
    %v738 = vpop.xlane.xlu0 %737
    %v739 = vsel %vm287, %v721, 0.0
    %740 = vadd.xlane.f32.xlu0 %v739
    %v741 = vpop.xlane.xlu0 %740
    %v742 = vsel %vm287, %v723, 0.0
    %743 = vadd.xlane.f32.xlu0 %v742
    %v744 = vpop.xlane.xlu0 %743
    %v745 = vsel %vm287, %v725, 0.0
    %746 = vadd.xlane.f32.xlu0 %v745
    %v747 = vpop.xlane.xlu0 %746
    %v748 = vsel %vm287, %v727, 0.0
    %749 = vadd.xlane.f32.xlu0 %v748
    %v750 = vpop.xlane.xlu0 %749
    %v751 = vsel %vm287, %v729, 0.0
    %752 = vadd.xlane.f32.xlu0 %v751
    %v753 = vpop.xlane.xlu0 %752
    %v754 = vrcp.pop %v732
    %v755 = vrcp.pop %v735
    %v756 = vrcp.pop %v738
    %v757 = vrcp.pop %v741
    %v758 = vrcp.pop %v744
    %v759 = vrcp.pop %v747
    %v760 = vrcp.pop %v750
    %v761 = vrcp.pop %v753
    %v762 = vmul.f32 %v715, %v754
    %v763 = vmul.f32 %v717, %v755
    %v764 = vmul.f32 %v719, %v756
    %v765 = vmul.f32 %v721, %v757
    %v766 = vmul.f32 %v723, %v758
    %v767 = vmul.f32 %v725, %v759
    %v768 = vmul.f32 %v727, %v760
    %v769 = vmul.f32 %v729, %v761
    %v770 = vpack.c.bf16 %v762, %v762
    %v771 = vpack.c.bf16 %v763, %v763
    %v772 = vpack.c.bf16 %v764, %v764
    %v773 = vpack.c.bf16 %v765, %v765
    %v774 = vpack.c.bf16 %v766, %v766
    %v775 = vpack.c.bf16 %v767, %v767
    %v776 = vpack.c.bf16 %v768, %v768
    %v777 = vpack.c.bf16 %v769, %v769
    %778 = vrot.lane.b32.xlu0 %v271, 64
    %v779 = vpop.permute.xlu0 %778
    %v781 = vsel %vm287, %v770, 0
    %vm783 = vcmask 1043456
    %v785 = vsel %vm783, %v779, 0
    %787 = vmatprep.subr.bf16.mxu0 0
    %788 = vmatpush1.bf16.msra.mxu0 %v785
    %789 = vmatprep.subr.bf16.mxu0 0
    %790 = vmatpush1.bf16.msra.mxu0 0
    %791 = vmatprep.subr.bf16.mxu0 0
    %792 = vmatpush1.bf16.msra.mxu0 0
    %793 = vmatprep.subr.bf16.mxu0 0
    %794 = vmatpush1.bf16.msra.mxu0 0
    %795 = vmatprep.subr.bf16.mxu0 0
    %796 = vmatpush1.bf16.msra.mxu0 0
    %797 = vmatprep.subr.bf16.mxu0 0
    %798 = vmatpush1.bf16.msra.mxu0 0
    %799 = vmatprep.subr.bf16.mxu0 0
    %800 = vmatpush1.bf16.msra.mxu0 0
    %801 = vmatprep.subr.bf16.mxu0 0
    %802 = vmatpush1.bf16.msra.mxu0 0
    %803 = vmatprep.subr.bf16.mxu0 0
    %804 = vmatpush1.bf16.msra.mxu0 0
    %805 = vmatprep.subr.bf16.mxu0 0
    %806 = vmatpush1.bf16.msra.mxu0 0
    %807 = vmatprep.subr.bf16.mxu0 0
    %808 = vmatpush1.bf16.msra.mxu0 0
    %809 = vmatprep.subr.bf16.mxu0 0
    %810 = vmatpush1.bf16.msra.mxu0 0
    %811 = vmatprep.subr.bf16.mxu0 0
    %812 = vmatpush1.bf16.msra.mxu0 0
    %813 = vmatprep.subr.bf16.mxu0 0
    %814 = vmatpush1.bf16.msra.mxu0 0
    %815 = vmatprep.subr.bf16.mxu0 0
    %816 = vmatpush1.bf16.msra.mxu0 0
    %817 = vmatprep.subr.bf16.mxu0 0
    %818 = vmatpush1.bf16.msra.mxu0 0
    %819 = vmatprep.mubr.bf16.mxu0 0
    %820 = vmatmul.mubr.bf16.gmra.mrb[0].mxu0 %v781
    %v821 = vpop.f32.mrb[0].mxu0
    %v822 = vadd.f32 0.0, %v821
    %v823 = vpop.f32.mrb[0].mxu0
    %v824 = vpop.f32.mrb[0].mxu0
    %v825 = vpop.f32.mrb[0].mxu0
    %826 = vdwg.mxu0
    %827 = vrot.lane.b32.xlu0 %v272, 64
    %v828 = vpop.permute.xlu0 %827
    %v830 = vsel %vm287, %v771, 0
    %v833 = vsel %vm783, %v828, 0
    %835 = vmatprep.subr.bf16.mxu0 0
    %836 = vmatpush1.bf16.msra.mxu0 %v833
    %837 = vmatprep.subr.bf16.mxu0 0
    %838 = vmatpush1.bf16.msra.mxu0 0
    %839 = vmatprep.subr.bf16.mxu0 0
    %840 = vmatpush1.bf16.msra.mxu0 0
    %841 = vmatprep.subr.bf16.mxu0 0
    %842 = vmatpush1.bf16.msra.mxu0 0
    %843 = vmatprep.subr.bf16.mxu0 0
    %844 = vmatpush1.bf16.msra.mxu0 0
    %845 = vmatprep.subr.bf16.mxu0 0
    %846 = vmatpush1.bf16.msra.mxu0 0
    %847 = vmatprep.subr.bf16.mxu0 0
    %848 = vmatpush1.bf16.msra.mxu0 0
    %849 = vmatprep.subr.bf16.mxu0 0
    %850 = vmatpush1.bf16.msra.mxu0 0
    %851 = vmatprep.subr.bf16.mxu0 0
    %852 = vmatpush1.bf16.msra.mxu0 0
    %853 = vmatprep.subr.bf16.mxu0 0
    %854 = vmatpush1.bf16.msra.mxu0 0
    %855 = vmatprep.subr.bf16.mxu0 0
    %856 = vmatpush1.bf16.msra.mxu0 0
    %857 = vmatprep.subr.bf16.mxu0 0
    %858 = vmatpush1.bf16.msra.mxu0 0
    %859 = vmatprep.subr.bf16.mxu0 0
    %860 = vmatpush1.bf16.msra.mxu0 0
    %861 = vmatprep.subr.bf16.mxu0 0
    %862 = vmatpush1.bf16.msra.mxu0 0
    %863 = vmatprep.subr.bf16.mxu0 0
    %864 = vmatpush1.bf16.msra.mxu0 0
    %865 = vmatprep.subr.bf16.mxu0 0
    %866 = vmatpush1.bf16.msra.mxu0 0
    %867 = vmatprep.mubr.bf16.mxu0 0
    %868 = vmatmul.mubr.bf16.gmra.mrb[0].mxu0 %v830
    %v869 = vpop.f32.mrb[0].mxu0
    %v870 = vadd.f32 0.0, %v869
    %v871 = vpop.f32.mrb[0].mxu0
    %v872 = vpop.f32.mrb[0].mxu0
    %v873 = vpop.f32.mrb[0].mxu0
    %874 = vdwg.mxu0
    %875 = vrot.lane.b32.xlu0 %v383, 64
    %v876 = vpop.permute.xlu0 %875
    %v878 = vsel %vm287, %v772, 0
    %v881 = vsel %vm783, %v876, 0
    %883 = vmatprep.subr.bf16.mxu0 0
    %884 = vmatpush1.bf16.msra.mxu0 %v881
    %885 = vmatprep.subr.bf16.mxu0 0
    %886 = vmatpush1.bf16.msra.mxu0 0
    %887 = vmatprep.subr.bf16.mxu0 0
    %888 = vmatpush1.bf16.msra.mxu0 0
    %889 = vmatprep.subr.bf16.mxu0 0
    %890 = vmatpush1.bf16.msra.mxu0 0
    %891 = vmatprep.subr.bf16.mxu0 0
    %892 = vmatpush1.bf16.msra.mxu0 0
    %893 = vmatprep.subr.bf16.mxu0 0
    %894 = vmatpush1.bf16.msra.mxu0 0
    %895 = vmatprep.subr.bf16.mxu0 0
    %896 = vmatpush1.bf16.msra.mxu0 0
    %897 = vmatprep.subr.bf16.mxu0 0
    %898 = vmatpush1.bf16.msra.mxu0 0
    %899 = vmatprep.subr.bf16.mxu0 0
    %900 = vmatpush1.bf16.msra.mxu0 0
    %901 = vmatprep.subr.bf16.mxu0 0
    %902 = vmatpush1.bf16.msra.mxu0 0
    %903 = vmatprep.subr.bf16.mxu0 0
    %904 = vmatpush1.bf16.msra.mxu0 0
    %905 = vmatprep.subr.bf16.mxu0 0
    %906 = vmatpush1.bf16.msra.mxu0 0
    %907 = vmatprep.subr.bf16.mxu0 0
    %908 = vmatpush1.bf16.msra.mxu0 0
    %909 = vmatprep.subr.bf16.mxu0 0
    %910 = vmatpush1.bf16.msra.mxu0 0
    %911 = vmatprep.subr.bf16.mxu0 0
    %912 = vmatpush1.bf16.msra.mxu0 0
    %913 = vmatprep.subr.bf16.mxu0 0
    %914 = vmatpush1.bf16.msra.mxu0 0
    %915 = vmatprep.mubr.bf16.mxu0 0
    %916 = vmatmul.mubr.bf16.gmra.mrb[0].mxu0 %v878
    %v917 = vpop.f32.mrb[0].mxu0
    %v918 = vadd.f32 0.0, %v917
    %v919 = vpop.f32.mrb[0].mxu0
    %v920 = vpop.f32.mrb[0].mxu0
    %v921 = vpop.f32.mrb[0].mxu0
    %922 = vdwg.mxu0
    %923 = vrot.lane.b32.xlu0 %v433, 64
    %v924 = vpop.permute.xlu0 %923
    %v926 = vsel %vm287, %v773, 0
    %v929 = vsel %vm783, %v924, 0
    %931 = vmatprep.subr.bf16.mxu0 0
    %932 = vmatpush1.bf16.msra.mxu0 %v929
    %933 = vmatprep.subr.bf16.mxu0 0
    %934 = vmatpush1.bf16.msra.mxu0 0
    %935 = vmatprep.subr.bf16.mxu0 0
    %936 = vmatpush1.bf16.msra.mxu0 0
    %937 = vmatprep.subr.bf16.mxu0 0
    %938 = vmatpush1.bf16.msra.mxu0 0
    %939 = vmatprep.subr.bf16.mxu0 0
    %940 = vmatpush1.bf16.msra.mxu0 0
    %941 = vmatprep.subr.bf16.mxu0 0
    %942 = vmatpush1.bf16.msra.mxu0 0
    %943 = vmatprep.subr.bf16.mxu0 0
    %944 = vmatpush1.bf16.msra.mxu0 0
    %945 = vmatprep.subr.bf16.mxu0 0
    %946 = vmatpush1.bf16.msra.mxu0 0
    %947 = vmatprep.subr.bf16.mxu0 0
    %948 = vmatpush1.bf16.msra.mxu0 0
    %949 = vmatprep.subr.bf16.mxu0 0
    %950 = vmatpush1.bf16.msra.mxu0 0
    %951 = vmatprep.subr.bf16.mxu0 0
    %952 = vmatpush1.bf16.msra.mxu0 0
    %953 = vmatprep.subr.bf16.mxu0 0
    %954 = vmatpush1.bf16.msra.mxu0 0
    %955 = vmatprep.subr.bf16.mxu0 0
    %956 = vmatpush1.bf16.msra.mxu0 0
    %957 = vmatprep.subr.bf16.mxu0 0
    %958 = vmatpush1.bf16.msra.mxu0 0
    %959 = vmatprep.subr.bf16.mxu0 0
    %960 = vmatpush1.bf16.msra.mxu0 0
    %961 = vmatprep.subr.bf16.mxu0 0
    %962 = vmatpush1.bf16.msra.mxu0 0
    %963 = vmatprep.mubr.bf16.mxu0 0
    %964 = vmatmul.mubr.bf16.gmra.mrb[0].mxu0 %v926
    %v965 = vpop.f32.mrb[0].mxu0
    %v966 = vadd.f32 0.0, %v965
    %v967 = vpop.f32.mrb[0].mxu0
    %v968 = vpop.f32.mrb[0].mxu0
    %v969 = vpop.f32.mrb[0].mxu0
    %970 = vdwg.mxu0
    %971 = vrot.lane.b32.xlu0 %v483, 64
    %v972 = vpop.permute.xlu0 %971
    %v974 = vsel %vm287, %v774, 0
    %v977 = vsel %vm783, %v972, 0
    %979 = vmatprep.subr.bf16.mxu0 0
    %980 = vmatpush1.bf16.msra.mxu0 %v977
    %981 = vmatprep.subr.bf16.mxu0 0
    %982 = vmatpush1.bf16.msra.mxu0 0
    %983 = vmatprep.subr.bf16.mxu0 0
    %984 = vmatpush1.bf16.msra.mxu0 0
    %985 = vmatprep.subr.bf16.mxu0 0
    %986 = vmatpush1.bf16.msra.mxu0 0
    %987 = vmatprep.subr.bf16.mxu0 0
    %988 = vmatpush1.bf16.msra.mxu0 0
    %989 = vmatprep.subr.bf16.mxu0 0
    %990 = vmatpush1.bf16.msra.mxu0 0
    %991 = vmatprep.subr.bf16.mxu0 0
    %992 = vmatpush1.bf16.msra.mxu0 0
    %993 = vmatprep.subr.bf16.mxu0 0
    %994 = vmatpush1.bf16.msra.mxu0 0
    %995 = vmatprep.subr.bf16.mxu0 0
    %996 = vmatpush1.bf16.msra.mxu0 0
    %997 = vmatprep.subr.bf16.mxu0 0
    %998 = vmatpush1.bf16.msra.mxu0 0
    %999 = vmatprep.subr.bf16.mxu0 0
    %1000 = vmatpush1.bf16.msra.mxu0 0
    %1001 = vmatprep.subr.bf16.mxu0 0
    %1002 = vmatpush1.bf16.msra.mxu0 0
    %1003 = vmatprep.subr.bf16.mxu0 0
    %1004 = vmatpush1.bf16.msra.mxu0 0
    %1005 = vmatprep.subr.bf16.mxu0 0
    %1006 = vmatpush1.bf16.msra.mxu0 0
    %1007 = vmatprep.subr.bf16.mxu0 0
    %1008 = vmatpush1.bf16.msra.mxu0 0
    %1009 = vmatprep.subr.bf16.mxu0 0
    %1010 = vmatpush1.bf16.msra.mxu0 0
    %1011 = vmatprep.mubr.bf16.mxu0 0
    %1012 = vmatmul.mubr.bf16.gmra.mrb[0].mxu0 %v974
    %v1013 = vpop.f32.mrb[0].mxu0
    %v1014 = vadd.f32 0.0, %v1013
    %v1015 = vpop.f32.mrb[0].mxu0
    %v1016 = vpop.f32.mrb[0].mxu0
    %v1017 = vpop.f32.mrb[0].mxu0
    %1018 = vdwg.mxu0
    %1019 = vrot.lane.b32.xlu0 %v533, 64
    %v1020 = vpop.permute.xlu0 %1019
    %v1022 = vsel %vm287, %v775, 0
    %v1025 = vsel %vm783, %v1020, 0
    %1027 = vmatprep.subr.bf16.mxu0 0
    %1028 = vmatpush1.bf16.msra.mxu0 %v1025
    %1029 = vmatprep.subr.bf16.mxu0 0
    %1030 = vmatpush1.bf16.msra.mxu0 0
    %1031 = vmatprep.subr.bf16.mxu0 0
    %1032 = vmatpush1.bf16.msra.mxu0 0
    %1033 = vmatprep.subr.bf16.mxu0 0
    %1034 = vmatpush1.bf16.msra.mxu0 0
    %1035 = vmatprep.subr.bf16.mxu0 0
    %1036 = vmatpush1.bf16.msra.mxu0 0
    %1037 = vmatprep.subr.bf16.mxu0 0
    %1038 = vmatpush1.bf16.msra.mxu0 0
    %1039 = vmatprep.subr.bf16.mxu0 0
    %1040 = vmatpush1.bf16.msra.mxu0 0
    %1041 = vmatprep.subr.bf16.mxu0 0
    %1042 = vmatpush1.bf16.msra.mxu0 0
    %1043 = vmatprep.subr.bf16.mxu0 0
    %1044 = vmatpush1.bf16.msra.mxu0 0
    %1045 = vmatprep.subr.bf16.mxu0 0
    %1046 = vmatpush1.bf16.msra.mxu0 0
    %1047 = vmatprep.subr.bf16.mxu0 0
    %1048 = vmatpush1.bf16.msra.mxu0 0
    %1049 = vmatprep.subr.bf16.mxu0 0
    %1050 = vmatpush1.bf16.msra.mxu0 0
    %1051 = vmatprep.subr.bf16.mxu0 0
    %1052 = vmatpush1.bf16.msra.mxu0 0
    %1053 = vmatprep.subr.bf16.mxu0 0
    %1054 = vmatpush1.bf16.msra.mxu0 0
    %1055 = vmatprep.subr.bf16.mxu0 0
    %1056 = vmatpush1.bf16.msra.mxu0 0
    %1057 = vmatprep.subr.bf16.mxu0 0
    %1058 = vmatpush1.bf16.msra.mxu0 0
    %1059 = vmatprep.mubr.bf16.mxu0 0
    %1060 = vmatmul.mubr.bf16.gmra.mrb[0].mxu0 %v1022
    %v1061 = vpop.f32.mrb[0].mxu0
    %v1062 = vadd.f32 0.0, %v1061
    %v1063 = vpop.f32.mrb[0].mxu0
    %v1064 = vpop.f32.mrb[0].mxu0
    %v1065 = vpop.f32.mrb[0].mxu0
    %1066 = vdwg.mxu0
    %1067 = vrot.lane.b32.xlu0 %v583, 64
    %v1068 = vpop.permute.xlu0 %1067
    %v1070 = vsel %vm287, %v776, 0
    %v1073 = vsel %vm783, %v1068, 0
    %1075 = vmatprep.subr.bf16.mxu0 0
    %1076 = vmatpush1.bf16.msra.mxu0 %v1073
    %1077 = vmatprep.subr.bf16.mxu0 0
    %1078 = vmatpush1.bf16.msra.mxu0 0
    %1079 = vmatprep.subr.bf16.mxu0 0
    %1080 = vmatpush1.bf16.msra.mxu0 0
    %1081 = vmatprep.subr.bf16.mxu0 0
    %1082 = vmatpush1.bf16.msra.mxu0 0
    %1083 = vmatprep.subr.bf16.mxu0 0
    %1084 = vmatpush1.bf16.msra.mxu0 0
    %1085 = vmatprep.subr.bf16.mxu0 0
    %1086 = vmatpush1.bf16.msra.mxu0 0
    %1087 = vmatprep.subr.bf16.mxu0 0
    %1088 = vmatpush1.bf16.msra.mxu0 0
    %1089 = vmatprep.subr.bf16.mxu0 0
    %1090 = vmatpush1.bf16.msra.mxu0 0
    %1091 = vmatprep.subr.bf16.mxu0 0
    %1092 = vmatpush1.bf16.msra.mxu0 0
    %1093 = vmatprep.subr.bf16.mxu0 0
    %1094 = vmatpush1.bf16.msra.mxu0 0
    %1095 = vmatprep.subr.bf16.mxu0 0
    %1096 = vmatpush1.bf16.msra.mxu0 0
    %1097 = vmatprep.subr.bf16.mxu0 0
    %1098 = vmatpush1.bf16.msra.mxu0 0
    %1099 = vmatprep.subr.bf16.mxu0 0
    %1100 = vmatpush1.bf16.msra.mxu0 0
    %1101 = vmatprep.subr.bf16.mxu0 0
    %1102 = vmatpush1.bf16.msra.mxu0 0
    %1103 = vmatprep.subr.bf16.mxu0 0
    %1104 = vmatpush1.bf16.msra.mxu0 0
    %1105 = vmatprep.subr.bf16.mxu0 0
    %1106 = vmatpush1.bf16.msra.mxu0 0
    %1107 = vmatprep.mubr.bf16.mxu0 0
    %1108 = vmatmul.mubr.bf16.gmra.mrb[0].mxu0 %v1070
    %v1109 = vpop.f32.mrb[0].mxu0
    %v1110 = vadd.f32 0.0, %v1109
    %v1111 = vpop.f32.mrb[0].mxu0
    %v1112 = vpop.f32.mrb[0].mxu0
    %v1113 = vpop.f32.mrb[0].mxu0
    %1114 = vdwg.mxu0
    %1115 = vrot.lane.b32.xlu0 %v633, 64
    %v1116 = vpop.permute.xlu0 %1115
    %v1118 = vsel %vm287, %v777, 0
    %v1121 = vsel %vm783, %v1116, 0
    %1123 = vmatprep.subr.bf16.mxu0 0
    %1124 = vmatpush1.bf16.msra.mxu0 %v1121
    %1125 = vmatprep.subr.bf16.mxu0 0
    %1126 = vmatpush1.bf16.msra.mxu0 0
    %1127 = vmatprep.subr.bf16.mxu0 0
    %1128 = vmatpush1.bf16.msra.mxu0 0
    %1129 = vmatprep.subr.bf16.mxu0 0
    %1130 = vmatpush1.bf16.msra.mxu0 0
    %1131 = vmatprep.subr.bf16.mxu0 0
    %1132 = vmatpush1.bf16.msra.mxu0 0
    %1133 = vmatprep.subr.bf16.mxu0 0
    %1134 = vmatpush1.bf16.msra.mxu0 0
    %1135 = vmatprep.subr.bf16.mxu0 0
    %1136 = vmatpush1.bf16.msra.mxu0 0
    %1137 = vmatprep.subr.bf16.mxu0 0
    %1138 = vmatpush1.bf16.msra.mxu0 0
    %1139 = vmatprep.subr.bf16.mxu0 0
    %1140 = vmatpush1.bf16.msra.mxu0 0
    %1141 = vmatprep.subr.bf16.mxu0 0
    %1142 = vmatpush1.bf16.msra.mxu0 0
    %1143 = vmatprep.subr.bf16.mxu0 0
    %1144 = vmatpush1.bf16.msra.mxu0 0
    %1145 = vmatprep.subr.bf16.mxu0 0
    %1146 = vmatpush1.bf16.msra.mxu0 0
    %1147 = vmatprep.subr.bf16.mxu0 0
    %1148 = vmatpush1.bf16.msra.mxu0 0
    %1149 = vmatprep.subr.bf16.mxu0 0
    %1150 = vmatpush1.bf16.msra.mxu0 0
    %1151 = vmatprep.subr.bf16.mxu0 0
    %1152 = vmatpush1.bf16.msra.mxu0 0
    %1153 = vmatprep.subr.bf16.mxu0 0
    %1154 = vmatpush1.bf16.msra.mxu0 0
    %1155 = vmatprep.mubr.bf16.mxu0 0
    %1156 = vmatmul.mubr.bf16.gmra.mrb[0].mxu0 %v1118
    %v1157 = vpop.f32.mrb[0].mxu0
    %v1158 = vadd.f32 0.0, %v1157
    %v1159 = vpop.f32.mrb[0].mxu0
    %v1160 = vpop.f32.mrb[0].mxu0
    %v1161 = vpop.f32.mrb[0].mxu0
    %1162 = vdwg.mxu0
    %v1163 = vpack.c.bf16 %v870, %v822
    %v1164 = vpack.c.bf16 %v966, %v918
    %v1165 = vpack.c.bf16 %v1062, %v1014
    %v1166 = vpack.c.bf16 %v1158, %v1110
    %v1168 = vsel %vm287, %v1163, 0
    %v1171 = vsel %vm783, %v200, 0
    %1173 = vmatprep.subr.bf16.mxu0 0
    %1174 = vmatpush1.bf16.msra.mxu0 %v1171
    %1175 = vmatprep.subr.bf16.mxu0 0
    %1176 = vmatpush1.bf16.msra.mxu0 0
    %1177 = vmatprep.subr.bf16.mxu0 0
    %1178 = vmatpush1.bf16.msra.mxu0 0
    %1179 = vmatprep.subr.bf16.mxu0 0
    %1180 = vmatpush1.bf16.msra.mxu0 0
    %1181 = vmatprep.subr.bf16.mxu0 0
    %1182 = vmatpush1.bf16.msra.mxu0 0
    %1183 = vmatprep.subr.bf16.mxu0 0
    %1184 = vmatpush1.bf16.msra.mxu0 0
    %1185 = vmatprep.subr.bf16.mxu0 0
    %1186 = vmatpush1.bf16.msra.mxu0 0
    %1187 = vmatprep.subr.bf16.mxu0 0
    %1188 = vmatpush1.bf16.msra.mxu0 0
    %1189 = vmatprep.subr.bf16.mxu0 0
    %1190 = vmatpush1.bf16.msra.mxu0 0
    %1191 = vmatprep.subr.bf16.mxu0 0
    %1192 = vmatpush1.bf16.msra.mxu0 0
    %1193 = vmatprep.subr.bf16.mxu0 0
    %1194 = vmatpush1.bf16.msra.mxu0 0
    %1195 = vmatprep.subr.bf16.mxu0 0
    %1196 = vmatpush1.bf16.msra.mxu0 0
    %1197 = vmatprep.subr.bf16.mxu0 0
    %1198 = vmatpush1.bf16.msra.mxu0 0
    %1199 = vmatprep.subr.bf16.mxu0 0
    %1200 = vmatpush1.bf16.msra.mxu0 0
    %1201 = vmatprep.subr.bf16.mxu0 0
    %1202 = vmatpush1.bf16.msra.mxu0 0
    %1203 = vmatprep.subr.bf16.mxu0 0
    %1204 = vmatpush1.bf16.msra.mxu0 0
    %1205 = vmatprep.mubr.bf16.mxu0 0
    %1206 = vmatmul.mubr.bf16.gmra.mrb[0].mxu0 %v1168
    %v1207 = vpop.f32.mrb[0].mxu0
    %v1208 = vadd.f32 0.0, %v1207
    %v1209 = vpop.f32.mrb[0].mxu0
    %v1210 = vpop.f32.mrb[0].mxu0
    %v1211 = vadd.f32 0.0, %v1210
    %v1212 = vpop.f32.mrb[0].mxu0
    %1213 = vdwg.mxu0
    %v1215 = vsel %vm287, %v1164, 0
    %v1218 = vsel %vm783, %v201, 0
    %1220 = vmatprep.subr.bf16.mxu0 0
    %1221 = vmatpush1.bf16.msra.mxu0 %v1218
    %1222 = vmatprep.subr.bf16.mxu0 0
    %1223 = vmatpush1.bf16.msra.mxu0 0
    %1224 = vmatprep.subr.bf16.mxu0 0
    %1225 = vmatpush1.bf16.msra.mxu0 0
    %1226 = vmatprep.subr.bf16.mxu0 0
    %1227 = vmatpush1.bf16.msra.mxu0 0
    %1228 = vmatprep.subr.bf16.mxu0 0
    %1229 = vmatpush1.bf16.msra.mxu0 0
    %1230 = vmatprep.subr.bf16.mxu0 0
    %1231 = vmatpush1.bf16.msra.mxu0 0
    %1232 = vmatprep.subr.bf16.mxu0 0
    %1233 = vmatpush1.bf16.msra.mxu0 0
    %1234 = vmatprep.subr.bf16.mxu0 0
    %1235 = vmatpush1.bf16.msra.mxu0 0
    %1236 = vmatprep.subr.bf16.mxu0 0
    %1237 = vmatpush1.bf16.msra.mxu0 0
    %1238 = vmatprep.subr.bf16.mxu0 0
    %1239 = vmatpush1.bf16.msra.mxu0 0
    %1240 = vmatprep.subr.bf16.mxu0 0
    %1241 = vmatpush1.bf16.msra.mxu0 0
    %1242 = vmatprep.subr.bf16.mxu0 0
    %1243 = vmatpush1.bf16.msra.mxu0 0
    %1244 = vmatprep.subr.bf16.mxu0 0
    %1245 = vmatpush1.bf16.msra.mxu0 0
    %1246 = vmatprep.subr.bf16.mxu0 0
    %1247 = vmatpush1.bf16.msra.mxu0 0
    %1248 = vmatprep.subr.bf16.mxu0 0
    %1249 = vmatpush1.bf16.msra.mxu0 0
    %1250 = vmatprep.subr.bf16.mxu0 0
    %1251 = vmatpush1.bf16.msra.mxu0 0
    %1252 = vmatprep.mubr.bf16.mxu0 0
    %1253 = vmatmul.mubr.bf16.gmra.mrb[0].mxu0 %v1215
    %v1254 = vpop.f32.mrb[0].mxu0
    %v1255 = vadd.f32 0.0, %v1254
    %v1256 = vpop.f32.mrb[0].mxu0
    %v1257 = vpop.f32.mrb[0].mxu0
    %v1258 = vadd.f32 0.0, %v1257
    %v1259 = vpop.f32.mrb[0].mxu0
    %1260 = vdwg.mxu0
    %v1262 = vsel %vm287, %v1165, 0
    %v1265 = vsel %vm783, %v202, 0
    %1267 = vmatprep.subr.bf16.mxu0 0
    %1268 = vmatpush1.bf16.msra.mxu0 %v1265
    %1269 = vmatprep.subr.bf16.mxu0 0
    %1270 = vmatpush1.bf16.msra.mxu0 0
    %1271 = vmatprep.subr.bf16.mxu0 0
    %1272 = vmatpush1.bf16.msra.mxu0 0
    %1273 = vmatprep.subr.bf16.mxu0 0
    %1274 = vmatpush1.bf16.msra.mxu0 0
    %1275 = vmatprep.subr.bf16.mxu0 0
    %1276 = vmatpush1.bf16.msra.mxu0 0
    %1277 = vmatprep.subr.bf16.mxu0 0
    %1278 = vmatpush1.bf16.msra.mxu0 0
    %1279 = vmatprep.subr.bf16.mxu0 0
    %1280 = vmatpush1.bf16.msra.mxu0 0
    %1281 = vmatprep.subr.bf16.mxu0 0
    %1282 = vmatpush1.bf16.msra.mxu0 0
    %1283 = vmatprep.subr.bf16.mxu0 0
    %1284 = vmatpush1.bf16.msra.mxu0 0
    %1285 = vmatprep.subr.bf16.mxu0 0
    %1286 = vmatpush1.bf16.msra.mxu0 0
    %1287 = vmatprep.subr.bf16.mxu0 0
    %1288 = vmatpush1.bf16.msra.mxu0 0
    %1289 = vmatprep.subr.bf16.mxu0 0
    %1290 = vmatpush1.bf16.msra.mxu0 0
    %1291 = vmatprep.subr.bf16.mxu0 0
    %1292 = vmatpush1.bf16.msra.mxu0 0
    %1293 = vmatprep.subr.bf16.mxu0 0
    %1294 = vmatpush1.bf16.msra.mxu0 0
    %1295 = vmatprep.subr.bf16.mxu0 0
    %1296 = vmatpush1.bf16.msra.mxu0 0
    %1297 = vmatprep.subr.bf16.mxu0 0
    %1298 = vmatpush1.bf16.msra.mxu0 0
    %1299 = vmatprep.mubr.bf16.mxu0 0
    %1300 = vmatmul.mubr.bf16.gmra.mrb[0].mxu0 %v1262
    %v1301 = vpop.f32.mrb[0].mxu0
    %v1302 = vadd.f32 0.0, %v1301
    %v1303 = vpop.f32.mrb[0].mxu0
    %v1304 = vpop.f32.mrb[0].mxu0
    %v1305 = vadd.f32 0.0, %v1304
    %v1306 = vpop.f32.mrb[0].mxu0
    %1307 = vdwg.mxu0
    %v1309 = vsel %vm287, %v1166, 0
    %v1312 = vsel %vm783, %v203, 0
    %1314 = vmatprep.subr.bf16.mxu0 0
    %1315 = vmatpush1.bf16.msra.mxu0 %v1312
    %1316 = vmatprep.subr.bf16.mxu0 0
    %1317 = vmatpush1.bf16.msra.mxu0 0
    %1318 = vmatprep.subr.bf16.mxu0 0
    %1319 = vmatpush1.bf16.msra.mxu0 0
    %1320 = vmatprep.subr.bf16.mxu0 0
    %1321 = vmatpush1.bf16.msra.mxu0 0
    %1322 = vmatprep.subr.bf16.mxu0 0
    %1323 = vmatpush1.bf16.msra.mxu0 0
    %1324 = vmatprep.subr.bf16.mxu0 0
    %1325 = vmatpush1.bf16.msra.mxu0 0
    %1326 = vmatprep.subr.bf16.mxu0 0
    %1327 = vmatpush1.bf16.msra.mxu0 0
    %1328 = vmatprep.subr.bf16.mxu0 0
    %1329 = vmatpush1.bf16.msra.mxu0 0
    %1330 = vmatprep.subr.bf16.mxu0 0
    %1331 = vmatpush1.bf16.msra.mxu0 0
    %1332 = vmatprep.subr.bf16.mxu0 0
    %1333 = vmatpush1.bf16.msra.mxu0 0
    %1334 = vmatprep.subr.bf16.mxu0 0
    %1335 = vmatpush1.bf16.msra.mxu0 0
    %1336 = vmatprep.subr.bf16.mxu0 0
    %1337 = vmatpush1.bf16.msra.mxu0 0
    %1338 = vmatprep.subr.bf16.mxu0 0
    %1339 = vmatpush1.bf16.msra.mxu0 0
    %1340 = vmatprep.subr.bf16.mxu0 0
    %1341 = vmatpush1.bf16.msra.mxu0 0
    %1342 = vmatprep.subr.bf16.mxu0 0
    %1343 = vmatpush1.bf16.msra.mxu0 0
    %1344 = vmatprep.subr.bf16.mxu0 0
    %1345 = vmatpush1.bf16.msra.mxu0 0
    %1346 = vmatprep.mubr.bf16.mxu0 0
    %1347 = vmatmul.mubr.bf16.gmra.mrb[0].mxu0 %v1309
    %v1348 = vpop.f32.mrb[0].mxu0
    %v1349 = vadd.f32 0.0, %v1348
    %v1350 = vpop.f32.mrb[0].mxu0
    %v1351 = vpop.f32.mrb[0].mxu0
    %v1352 = vadd.f32 0.0, %v1351
    %v1353 = vpop.f32.mrb[0].mxu0
    %1354 = vdwg.mxu0
    %v1355 = vsel %vm150, %v1208, 0.0
    %v1356 = vsel %vm150, %v1255, 0.0
    %v1357 = vadd.f32 %v1355, %v1356
    %v1358 = vsel %vm150, %v1302, 0.0
    %v1359 = vadd.f32 %v1357, %v1358
    %v1360 = vsel %vm150, %v1349, 0.0
    %v1361 = vadd.f32 %v1359, %v1360
    %v1362 = vsel %vm150, %v1211, 0.0
    %v1363 = vsel %vm150, %v1258, 0.0
    %v1364 = vadd.f32 %v1362, %v1363
    %v1365 = vsel %vm150, %v1305, 0.0
    %v1366 = vadd.f32 %v1364, %v1365
    %v1367 = vsel %vm150, %v1352, 0.0
    %v1368 = vadd.f32 %v1366, %v1367
    %v1370 = vlaneseq
    %v1371 = vshrl.u32 %v1370, 7
    %v1372 = vsub.s32 0, %v1371
    %v1373 = vrot.slane %v204, %v1372
    %v1375 = vadd.f32 %v1361, %v1373
    %v1376 = vadd.f32 %v1368, %v1373
    %v1377 = vadd.f32 %v146, %v1375
    %v1378 = vadd.f32 %v147, %v1376
    %v1379 = vld [vmem:[%s15] sm:$0x1]
    %v1380 = vld [vmem:[%s17] sm:$0x1]
    %v1381 = vsel %vm150, %v1377, 0.0
    %1382 = vadd.xlane.f32.xlu0 %v1381
    %v1383 = vpop.xlane.xlu0 %1382
    %v1384 = vsel %vm150, %v1378, 0.0
    %1385 = vadd.xlane.f32.xlu0 %v1384
    %v1386 = vpop.xlane.xlu0 %1385
    %v1387 = vmul.f32 %v1383, %v157
    %v1388 = vmul.f32 %v1386, %v157
    %v1389 = vsub.f32 %v1377, %v1387
    %v1390 = vsub.f32 %v1378, %v1388
    %v1391 = vmul.f32 %v1389, %v1389
    %v1392 = vmul.f32 %v1390, %v1390
    %v1393 = vsel %vm150, %v1391, 0.0
    %1394 = vadd.xlane.f32.xlu0 %v1393
    %v1395 = vpop.xlane.xlu0 %1394
    %v1396 = vsel %vm150, %v1392, 0.0
    %1397 = vadd.xlane.f32.xlu0 %v1396
    %v1398 = vpop.xlane.xlu0 %1397
    %v1399 = vmul.f32 %v1395, %v157
    %v1400 = vmul.f32 %v1398, %v157
    %v1401 = vadd.f32 %v1399, 1e-05
    %v1402 = vadd.f32 %v1400, 1e-05
    %v1403 = vrsqrt.pop %v1401
    %v1404 = vrsqrt.pop %v1402
    %v1405 = vmul.f32 %v1389, %v1403
    %v1406 = vmul.f32 %v1390, %v1404
    %v1408 = vlaneseq
    %v1409 = vshrl.u32 %v1408, 7
    %v1410 = vsub.s32 0, %v1409
    %v1411 = vrot.slane %v1379, %v1410
    %v1413 = vmul.f32 %v1405, %v1411
    %v1414 = vmul.f32 %v1406, %v1411
    %v1416 = vlaneseq
    %v1417 = vshrl.u32 %v1416, 7
    %v1418 = vsub.s32 0, %v1417
    %v1419 = vrot.slane %v1380, %v1418
    %v1421 = vadd.f32 %v1413, %v1419
    %v1422 = vadd.f32 %v1414, %v1419
    %v1423 = vpack.c.bf16 %v1422, %v1421
    %v1424 = vld [vmem:[%s19] sm:$0xf]
    %v1425 = vld [vmem:[%s19 + $0x4] sm:$0xf]
    %v1426 = vld [vmem:[%s19 + $0x8] sm:$0xf]
    %v1427 = vld [vmem:[%s19 + $0xc] sm:$0xf]
    %v1428 = vld [vmem:[%s21] sm:$0x1]
    %v1429 = vld [vmem:[%s23] sm:$0xf]
    %v1430 = vld [vmem:[%s23 + $0x4] sm:$0xf]
    %v1431 = vld [vmem:[%s23 + $0x8] sm:$0xf]
    %v1432 = vld [vmem:[%s23 + $0xc] sm:$0xf]
    %v1433 = vld [vmem:[%s23 + $0x10] sm:$0xf]
    %v1434 = vld [vmem:[%s23 + $0x14] sm:$0xf]
    %v1435 = vld [vmem:[%s23 + $0x18] sm:$0xf]
    %v1436 = vld [vmem:[%s23 + $0x1c] sm:$0xf]
    %v1437 = vld [vmem:[%s25] sm:$0x1]
    %v1439 = vlaneseq
    %v1440 = vshrl.u32 %v1439, 7
    %v1441 = vsub.s32 0, %v1440
    %v1442 = vrot.slane %v1428, %v1441
    %v1448 = vunpack.c.l.b16 %v1424
    %v1449 = vunpack.c.l.b16 %v1425
    %v1450 = vunpack.c.l.b16 %v1426
    %v1451 = vunpack.c.l.b16 %v1427
    %v1452 = vpack.c.b16 %v1449, %v1448
    %v1453 = vpack.c.b16 %v1451, %v1450
    %v1457 = vsel %vm150, %v1423, 0
    %1459 = vmatprep.subr.bf16.mxu0 0
    %1460 = vmatpush1.bf16.msra.mxu0 %v1452
    %1461 = vmatprep.subr.bf16.mxu0 0
    %1462 = vmatpush1.bf16.msra.mxu0 %v1453
    %1463 = vmatprep.subr.bf16.mxu0 0
    %1464 = vmatpush1.bf16.msra.mxu0 0
    %1465 = vmatprep.subr.bf16.mxu0 0
    %1466 = vmatpush1.bf16.msra.mxu0 0
    %1467 = vmatprep.subr.bf16.mxu0 0
    %1468 = vmatpush1.bf16.msra.mxu0 0
    %1469 = vmatprep.subr.bf16.mxu0 0
    %1470 = vmatpush1.bf16.msra.mxu0 0
    %1471 = vmatprep.subr.bf16.mxu0 0
    %1472 = vmatpush1.bf16.msra.mxu0 0
    %1473 = vmatprep.subr.bf16.mxu0 0
    %1474 = vmatpush1.bf16.msra.mxu0 0
    %1475 = vmatprep.subr.bf16.mxu0 0
    %1476 = vmatpush1.bf16.msra.mxu0 0
    %1477 = vmatprep.subr.bf16.mxu0 0
    %1478 = vmatpush1.bf16.msra.mxu0 0
    %1479 = vmatprep.subr.bf16.mxu0 0
    %1480 = vmatpush1.bf16.msra.mxu0 0
    %1481 = vmatprep.subr.bf16.mxu0 0
    %1482 = vmatpush1.bf16.msra.mxu0 0
    %1483 = vmatprep.subr.bf16.mxu0 0
    %1484 = vmatpush1.bf16.msra.mxu0 0
    %1485 = vmatprep.subr.bf16.mxu0 0
    %1486 = vmatpush1.bf16.msra.mxu0 0
    %1487 = vmatprep.subr.bf16.mxu0 0
    %1488 = vmatpush1.bf16.msra.mxu0 0
    %1489 = vmatprep.subr.bf16.mxu0 0
    %1490 = vmatpush1.bf16.msra.mxu0 0
    %1491 = vmatprep.mubr.bf16.mxu0 0
    %1492 = vmatmul.mubr.bf16.gmra.mrb[0].mxu0 %v1457
    %v1493 = vpop.f32.mrb[0].mxu0
    %v1494 = vadd.f32 %v1442, %v1493
    %v1495 = vpop.f32.mrb[0].mxu0
    %v1496 = vpop.f32.mrb[0].mxu0
    %v1497 = vadd.f32 %v1442, %v1496
    %v1498 = vpop.f32.mrb[0].mxu0
    %1499 = vdwg.mxu0
    %v1500 = vmax.f32 %v1494, 0.0
    %v1501 = vmax.f32 %v1497, 0.0
    %v1502 = vpack.c.bf16 %v1501, %v1500
    %v1504 = vlaneseq
    %v1505 = vshrl.u32 %v1504, 7
    %v1506 = vsub.s32 0, %v1505
    %v1507 = vrot.slane %v1437, %v1506
    %v1517 = vunpack.c.l.b16 %v1429
    %v1518 = vunpack.c.l.b16 %v1430
    %v1519 = vunpack.c.l.b16 %v1431
    %v1520 = vunpack.c.l.b16 %v1432
    %v1521 = vunpack.c.l.b16 %v1433
    %v1522 = vunpack.c.l.b16 %v1434
    %v1523 = vunpack.c.l.b16 %v1435
    %v1524 = vunpack.c.l.b16 %v1436
    %v1525 = vpack.c.b16 %v1518, %v1517
    %v1526 = vpack.c.b16 %v1520, %v1519
    %v1527 = vpack.c.b16 %v1522, %v1521
    %v1528 = vpack.c.b16 %v1524, %v1523
    %vm1533 = vcmask 523264
    %v1535 = vsel %vm1533, %v1502, 0
    %1537 = vmatprep.subr.bf16.mxu0 0
    %1538 = vmatpush1.bf16.msra.mxu0 %v1525
    %1539 = vmatprep.subr.bf16.mxu0 0
    %1540 = vmatpush1.bf16.msra.mxu0 %v1526
    %1541 = vmatprep.subr.bf16.mxu0 0
    %1542 = vmatpush1.bf16.msra.mxu0 %v1527
    %1543 = vmatprep.subr.bf16.mxu0 0
    %1544 = vmatpush1.bf16.msra.mxu0 %v1528
    %1545 = vmatprep.subr.bf16.mxu0 0
    %1546 = vmatpush1.bf16.msra.mxu0 0
    %1547 = vmatprep.subr.bf16.mxu0 0
    %1548 = vmatpush1.bf16.msra.mxu0 0
    %1549 = vmatprep.subr.bf16.mxu0 0
    %1550 = vmatpush1.bf16.msra.mxu0 0
    %1551 = vmatprep.subr.bf16.mxu0 0
    %1552 = vmatpush1.bf16.msra.mxu0 0
    %1553 = vmatprep.subr.bf16.mxu0 0
    %1554 = vmatpush1.bf16.msra.mxu0 0
    %1555 = vmatprep.subr.bf16.mxu0 0
    %1556 = vmatpush1.bf16.msra.mxu0 0
    %1557 = vmatprep.subr.bf16.mxu0 0
    %1558 = vmatpush1.bf16.msra.mxu0 0
    %1559 = vmatprep.subr.bf16.mxu0 0
    %1560 = vmatpush1.bf16.msra.mxu0 0
    %1561 = vmatprep.subr.bf16.mxu0 0
    %1562 = vmatpush1.bf16.msra.mxu0 0
    %1563 = vmatprep.subr.bf16.mxu0 0
    %1564 = vmatpush1.bf16.msra.mxu0 0
    %1565 = vmatprep.subr.bf16.mxu0 0
    %1566 = vmatpush1.bf16.msra.mxu0 0
    %1567 = vmatprep.subr.bf16.mxu0 0
    %1568 = vmatpush1.bf16.msra.mxu0 0
    %1569 = vmatprep.mubr.bf16.mxu0 0
    %1570 = vmatmul.mubr.bf16.gmra.mrb[0].mxu0 %v1535
    %v1571 = vpop.f32.mrb[0].mxu0
    %v1572 = vadd.f32 %v1507, %v1571
    %v1573 = vpop.f32.mrb[0].mxu0
    %v1574 = vpop.f32.mrb[0].mxu0
    %v1575 = vadd.f32 %v1507, %v1574
    %v1576 = vpop.f32.mrb[0].mxu0
    %1577 = vdwg.mxu0
    %v1578 = vadd.f32 %v1377, %v1572
    %v1579 = vadd.f32 %v1378, %v1575
    %v1580 = vpack.c.bf16 %v1579, %v1578
    %v1581 = vld [vmem:[%s27] sm:$0xf]
    %v1582 = vld [vmem:[%s27 + $0x4] sm:$0xf]
    %v1583 = vunpack.c.l.bf16 %v1581
    %v1584 = vunpack.c.l.bf16 %v1582
    %v1585 = vlaneseq
    %v1586 = vshrl.u32 %v1585, 7
    %v1587 = vlaneseq
    %v1588 = vand.u32 %v1587, 127
    %vm1589 = vcmp.le.s32.totalorder %v1588, %v1586
    %v1590 = vsel %vm1589, 0.0, -1e+30
    %v1591 = vld [vmem:[%s29] sm:$0x1]
    %v1592 = vld [vmem:[%s31] sm:$0x1]
    %v1593 = vsel %vm150, %v1583, 0.0
    %1594 = vadd.xlane.f32.xlu0 %v1593
    %v1595 = vpop.xlane.xlu0 %1594
    %v1596 = vsel %vm150, %v1584, 0.0
    %1597 = vadd.xlane.f32.xlu0 %v1596
    %v1598 = vpop.xlane.xlu0 %1597
    %v1599 = vmul.f32 %v1595, %v157
    %v1600 = vmul.f32 %v1598, %v157
    %v1601 = vsub.f32 %v1583, %v1599
    %v1602 = vsub.f32 %v1584, %v1600
    %v1603 = vmul.f32 %v1601, %v1601
    %v1604 = vmul.f32 %v1602, %v1602
    %v1605 = vsel %vm150, %v1603, 0.0
    %1606 = vadd.xlane.f32.xlu0 %v1605
    %v1607 = vpop.xlane.xlu0 %1606
    %v1608 = vsel %vm150, %v1604, 0.0
    %1609 = vadd.xlane.f32.xlu0 %v1608
    %v1610 = vpop.xlane.xlu0 %1609
    %v1611 = vmul.f32 %v1607, %v157
    %v1612 = vmul.f32 %v1610, %v157
    %v1613 = vadd.f32 %v1611, 1e-05
    %v1614 = vadd.f32 %v1612, 1e-05
    %v1615 = vrsqrt.pop %v1613
    %v1616 = vrsqrt.pop %v1614
    %v1617 = vmul.f32 %v1601, %v1615
    %v1618 = vmul.f32 %v1602, %v1616
    %v1620 = vlaneseq
    %v1621 = vshrl.u32 %v1620, 7
    %v1622 = vsub.s32 0, %v1621
    %v1623 = vrot.slane %v1591, %v1622
    %v1625 = vmul.f32 %v1617, %v1623
    %v1626 = vmul.f32 %v1618, %v1623
    %v1628 = vlaneseq
    %v1629 = vshrl.u32 %v1628, 7
    %v1630 = vsub.s32 0, %v1629
    %v1631 = vrot.slane %v1592, %v1630
    %v1633 = vadd.f32 %v1625, %v1631
    %v1634 = vadd.f32 %v1626, %v1631
    %v1635 = vpack.c.bf16 %v1634, %v1633
    %v1636 = vld [vmem:[%s33] sm:$0xf]
    %v1637 = vld [vmem:[%s33 + $0x4] sm:$0xf]
    %v1638 = vld [vmem:[%s33 + $0x8] sm:$0xf]
    %v1639 = vld [vmem:[%s33 + $0xc] sm:$0xf]
    %v1640 = vld [vmem:[%s35] sm:$0x1]
    %v1641 = vld [vmem:[%s37] sm:$0xf]
    %v1642 = vld [vmem:[%s37 + $0x4] sm:$0xf]
    %v1643 = vld [vmem:[%s37 + $0x8] sm:$0xf]
    %v1644 = vld [vmem:[%s37 + $0xc] sm:$0xf]
    %v1645 = vld [vmem:[%s39] sm:$0x1]
    %v1647 = vlaneseq
    %v1648 = vshrl.u32 %v1647, 7
    %v1649 = vsub.s32 0, %v1648
    %v1650 = vrot.slane %v1640, %v1649
    %v1656 = vunpack.c.l.b16 %v1636
    %v1657 = vunpack.c.l.b16 %v1637
    %v1658 = vunpack.c.l.b16 %v1638
    %v1659 = vunpack.c.l.b16 %v1639
    %v1660 = vpack.c.b16 %v1657, %v1656
    %v1661 = vpack.c.b16 %v1659, %v1658
    %v1665 = vsel %vm150, %v1635, 0
    %1667 = vmatprep.subr.bf16.mxu0 0
    %1668 = vmatpush1.bf16.msra.mxu0 %v1660
    %1669 = vmatprep.subr.bf16.mxu0 0
    %1670 = vmatpush1.bf16.msra.mxu0 %v1661
    %1671 = vmatprep.subr.bf16.mxu0 0
    %1672 = vmatpush1.bf16.msra.mxu0 0
    %1673 = vmatprep.subr.bf16.mxu0 0
    %1674 = vmatpush1.bf16.msra.mxu0 0
    %1675 = vmatprep.subr.bf16.mxu0 0
    %1676 = vmatpush1.bf16.msra.mxu0 0
    %1677 = vmatprep.subr.bf16.mxu0 0
    %1678 = vmatpush1.bf16.msra.mxu0 0
    %1679 = vmatprep.subr.bf16.mxu0 0
    %1680 = vmatpush1.bf16.msra.mxu0 0
    %1681 = vmatprep.subr.bf16.mxu0 0
    %1682 = vmatpush1.bf16.msra.mxu0 0
    %1683 = vmatprep.subr.bf16.mxu0 0
    %1684 = vmatpush1.bf16.msra.mxu0 0
    %1685 = vmatprep.subr.bf16.mxu0 0
    %1686 = vmatpush1.bf16.msra.mxu0 0
    %1687 = vmatprep.subr.bf16.mxu0 0
    %1688 = vmatpush1.bf16.msra.mxu0 0
    %1689 = vmatprep.subr.bf16.mxu0 0
    %1690 = vmatpush1.bf16.msra.mxu0 0
    %1691 = vmatprep.subr.bf16.mxu0 0
    %1692 = vmatpush1.bf16.msra.mxu0 0
    %1693 = vmatprep.subr.bf16.mxu0 0
    %1694 = vmatpush1.bf16.msra.mxu0 0
    %1695 = vmatprep.subr.bf16.mxu0 0
    %1696 = vmatpush1.bf16.msra.mxu0 0
    %1697 = vmatprep.subr.bf16.mxu0 0
    %1698 = vmatpush1.bf16.msra.mxu0 0
    %1699 = vmatprep.mubr.bf16.mxu0 0
    %1700 = vmatmul.mubr.bf16.gmra.mrb[0].mxu0 %v1665
    %v1701 = vpop.f32.mrb[0].mxu0
    %v1702 = vadd.f32 %v1650, %v1701
    %v1703 = vpop.f32.mrb[0].mxu0
    %v1704 = vpop.f32.mrb[0].mxu0
    %v1705 = vadd.f32 %v1650, %v1704
    %v1706 = vpop.f32.mrb[0].mxu0
    %1707 = vdwg.mxu0
    %v1708 = vpack.c.bf16 %v1705, %v1702
    %v1710 = vunpack.c.l.b16 %v1708
    %v1711 = vunpack.c.h.b16 %v1708
    %v1712 = vpack.c.b16 %v1710, %v1710
    %v1713 = vpack.c.b16 %v1711, %v1711
    %1714 = vrot.lane.b32.xlu0 %v1712, 120
    %v1715 = vpop.permute.xlu0 %1714
    %1716 = vrot.lane.b32.xlu0 %v1713, 120
    %v1717 = vpop.permute.xlu0 %1716
    %1718 = vrot.lane.b32.xlu0 %v1712, 112
    %v1719 = vpop.permute.xlu0 %1718
    %1720 = vrot.lane.b32.xlu0 %v1713, 112
    %v1721 = vpop.permute.xlu0 %1720
    %1722 = vrot.lane.b32.xlu0 %v1712, 104
    %v1723 = vpop.permute.xlu0 %1722
    %1724 = vrot.lane.b32.xlu0 %v1713, 104
    %v1725 = vpop.permute.xlu0 %1724
    %1726 = vrot.lane.b32.xlu0 %v1712, 96
    %v1727 = vpop.permute.xlu0 %1726
    %v1729 = vsel %vm287, %v1712, 0
    %v1732 = vsel %vm287, %v1727, 0
    %1734 = vmatprep.subr.bf16.mxu0 0
    %1735 = vmatpush1.bf16.xpose.msra.mxu0 %v1732
    %1736 = vmatprep.subr.bf16.mxu0 0
    %1737 = vmatpush1.bf16.xpose.msra.mxu0 0
    %1738 = vmatprep.subr.bf16.mxu0 0
    %1739 = vmatpush1.bf16.xpose.msra.mxu0 0
    %1740 = vmatprep.subr.bf16.mxu0 0
    %1741 = vmatpush1.bf16.xpose.msra.mxu0 0
    %1742 = vmatprep.subr.bf16.mxu0 0
    %1743 = vmatpush1.bf16.xpose.msra.mxu0 0
    %1744 = vmatprep.subr.bf16.mxu0 0
    %1745 = vmatpush1.bf16.xpose.msra.mxu0 0
    %1746 = vmatprep.subr.bf16.mxu0 0
    %1747 = vmatpush1.bf16.xpose.msra.mxu0 0
    %1748 = vmatprep.subr.bf16.mxu0 0
    %1749 = vmatpush1.bf16.xpose.msra.mxu0 0
    %1750 = vmatprep.subr.bf16.mxu0 0
    %1751 = vmatpush1.bf16.xpose.msra.mxu0 0
    %1752 = vmatprep.subr.bf16.mxu0 0
    %1753 = vmatpush1.bf16.xpose.msra.mxu0 0
    %1754 = vmatprep.subr.bf16.mxu0 0
    %1755 = vmatpush1.bf16.xpose.msra.mxu0 0
    %1756 = vmatprep.subr.bf16.mxu0 0
    %1757 = vmatpush1.bf16.xpose.msra.mxu0 0
    %1758 = vmatprep.subr.bf16.mxu0 0
    %1759 = vmatpush1.bf16.xpose.msra.mxu0 0
    %1760 = vmatprep.subr.bf16.mxu0 0
    %1761 = vmatpush1.bf16.xpose.msra.mxu0 0
    %1762 = vmatprep.subr.bf16.mxu0 0
    %1763 = vmatpush1.bf16.xpose.msra.mxu0 0
    %1764 = vmatprep.subr.bf16.mxu0 0
    %1765 = vmatpush1.bf16.xpose.msra.mxu0 0
    %1766 = vmatprep.mubr.bf16.mxu0 0
    %1767 = vmatmul.mubr.bf16.gmra.mrb[0].mxu0 %v1729
    %v1768 = vpop.f32.mrb[0].mxu0
    %v1769 = vadd.f32 %v1590, %v1768
    %v1770 = vpop.f32.mrb[0].mxu0
    %v1771 = vpop.f32.mrb[0].mxu0
    %v1772 = vpop.f32.mrb[0].mxu0
    %1773 = vdwg.mxu0
    %1774 = vrot.lane.b32.xlu0 %v1713, 96
    %v1775 = vpop.permute.xlu0 %1774
    %v1777 = vsel %vm287, %v1713, 0
    %v1780 = vsel %vm287, %v1775, 0
    %1782 = vmatprep.subr.bf16.mxu0 0
    %1783 = vmatpush1.bf16.xpose.msra.mxu0 %v1780
    %1784 = vmatprep.subr.bf16.mxu0 0
    %1785 = vmatpush1.bf16.xpose.msra.mxu0 0
    %1786 = vmatprep.subr.bf16.mxu0 0
    %1787 = vmatpush1.bf16.xpose.msra.mxu0 0
    %1788 = vmatprep.subr.bf16.mxu0 0
    %1789 = vmatpush1.bf16.xpose.msra.mxu0 0
    %1790 = vmatprep.subr.bf16.mxu0 0
    %1791 = vmatpush1.bf16.xpose.msra.mxu0 0
    %1792 = vmatprep.subr.bf16.mxu0 0
    %1793 = vmatpush1.bf16.xpose.msra.mxu0 0
    %1794 = vmatprep.subr.bf16.mxu0 0
    %1795 = vmatpush1.bf16.xpose.msra.mxu0 0
    %1796 = vmatprep.subr.bf16.mxu0 0
    %1797 = vmatpush1.bf16.xpose.msra.mxu0 0
    %1798 = vmatprep.subr.bf16.mxu0 0
    %1799 = vmatpush1.bf16.xpose.msra.mxu0 0
    %1800 = vmatprep.subr.bf16.mxu0 0
    %1801 = vmatpush1.bf16.xpose.msra.mxu0 0
    %1802 = vmatprep.subr.bf16.mxu0 0
    %1803 = vmatpush1.bf16.xpose.msra.mxu0 0
    %1804 = vmatprep.subr.bf16.mxu0 0
    %1805 = vmatpush1.bf16.xpose.msra.mxu0 0
    %1806 = vmatprep.subr.bf16.mxu0 0
    %1807 = vmatpush1.bf16.xpose.msra.mxu0 0
    %1808 = vmatprep.subr.bf16.mxu0 0
    %1809 = vmatpush1.bf16.xpose.msra.mxu0 0
    %1810 = vmatprep.subr.bf16.mxu0 0
    %1811 = vmatpush1.bf16.xpose.msra.mxu0 0
    %1812 = vmatprep.subr.bf16.mxu0 0
    %1813 = vmatpush1.bf16.xpose.msra.mxu0 0
    %1814 = vmatprep.mubr.bf16.mxu0 0
    %1815 = vmatmul.mubr.bf16.gmra.mrb[0].mxu0 %v1777
    %v1816 = vpop.f32.mrb[0].mxu0
    %v1817 = vadd.f32 %v1590, %v1816
    %v1818 = vpop.f32.mrb[0].mxu0
    %v1819 = vpop.f32.mrb[0].mxu0
    %v1820 = vpop.f32.mrb[0].mxu0
    %1821 = vdwg.mxu0
    %v1822 = vunpack.c.l.b16 %v1715
    %v1823 = vpack.c.b16 %v1822, %v1822
    %1824 = vrot.lane.b32.xlu0 %v1823, 96
    %v1825 = vpop.permute.xlu0 %1824
    %v1827 = vsel %vm287, %v1715, 0
    %v1830 = vsel %vm287, %v1825, 0
    %1832 = vmatprep.subr.bf16.mxu0 0
    %1833 = vmatpush1.bf16.xpose.msra.mxu0 %v1830
    %1834 = vmatprep.subr.bf16.mxu0 0
    %1835 = vmatpush1.bf16.xpose.msra.mxu0 0
    %1836 = vmatprep.subr.bf16.mxu0 0
    %1837 = vmatpush1.bf16.xpose.msra.mxu0 0
    %1838 = vmatprep.subr.bf16.mxu0 0
    %1839 = vmatpush1.bf16.xpose.msra.mxu0 0
    %1840 = vmatprep.subr.bf16.mxu0 0
    %1841 = vmatpush1.bf16.xpose.msra.mxu0 0
    %1842 = vmatprep.subr.bf16.mxu0 0
    %1843 = vmatpush1.bf16.xpose.msra.mxu0 0
    %1844 = vmatprep.subr.bf16.mxu0 0
    %1845 = vmatpush1.bf16.xpose.msra.mxu0 0
    %1846 = vmatprep.subr.bf16.mxu0 0
    %1847 = vmatpush1.bf16.xpose.msra.mxu0 0
    %1848 = vmatprep.subr.bf16.mxu0 0
    %1849 = vmatpush1.bf16.xpose.msra.mxu0 0
    %1850 = vmatprep.subr.bf16.mxu0 0
    %1851 = vmatpush1.bf16.xpose.msra.mxu0 0
    %1852 = vmatprep.subr.bf16.mxu0 0
    %1853 = vmatpush1.bf16.xpose.msra.mxu0 0
    %1854 = vmatprep.subr.bf16.mxu0 0
    %1855 = vmatpush1.bf16.xpose.msra.mxu0 0
    %1856 = vmatprep.subr.bf16.mxu0 0
    %1857 = vmatpush1.bf16.xpose.msra.mxu0 0
    %1858 = vmatprep.subr.bf16.mxu0 0
    %1859 = vmatpush1.bf16.xpose.msra.mxu0 0
    %1860 = vmatprep.subr.bf16.mxu0 0
    %1861 = vmatpush1.bf16.xpose.msra.mxu0 0
    %1862 = vmatprep.subr.bf16.mxu0 0
    %1863 = vmatpush1.bf16.xpose.msra.mxu0 0
    %1864 = vmatprep.mubr.bf16.mxu0 0
    %1865 = vmatmul.mubr.bf16.gmra.mrb[0].mxu0 %v1827
    %v1866 = vpop.f32.mrb[0].mxu0
    %v1867 = vadd.f32 %v1590, %v1866
    %v1868 = vpop.f32.mrb[0].mxu0
    %v1869 = vpop.f32.mrb[0].mxu0
    %v1870 = vpop.f32.mrb[0].mxu0
    %1871 = vdwg.mxu0
    %v1872 = vunpack.c.l.b16 %v1717
    %v1873 = vpack.c.b16 %v1872, %v1872
    %1874 = vrot.lane.b32.xlu0 %v1873, 96
    %v1875 = vpop.permute.xlu0 %1874
    %v1877 = vsel %vm287, %v1717, 0
    %v1880 = vsel %vm287, %v1875, 0
    %1882 = vmatprep.subr.bf16.mxu0 0
    %1883 = vmatpush1.bf16.xpose.msra.mxu0 %v1880
    %1884 = vmatprep.subr.bf16.mxu0 0
    %1885 = vmatpush1.bf16.xpose.msra.mxu0 0
    %1886 = vmatprep.subr.bf16.mxu0 0
    %1887 = vmatpush1.bf16.xpose.msra.mxu0 0
    %1888 = vmatprep.subr.bf16.mxu0 0
    %1889 = vmatpush1.bf16.xpose.msra.mxu0 0
    %1890 = vmatprep.subr.bf16.mxu0 0
    %1891 = vmatpush1.bf16.xpose.msra.mxu0 0
    %1892 = vmatprep.subr.bf16.mxu0 0
    %1893 = vmatpush1.bf16.xpose.msra.mxu0 0
    %1894 = vmatprep.subr.bf16.mxu0 0
    %1895 = vmatpush1.bf16.xpose.msra.mxu0 0
    %1896 = vmatprep.subr.bf16.mxu0 0
    %1897 = vmatpush1.bf16.xpose.msra.mxu0 0
    %1898 = vmatprep.subr.bf16.mxu0 0
    %1899 = vmatpush1.bf16.xpose.msra.mxu0 0
    %1900 = vmatprep.subr.bf16.mxu0 0
    %1901 = vmatpush1.bf16.xpose.msra.mxu0 0
    %1902 = vmatprep.subr.bf16.mxu0 0
    %1903 = vmatpush1.bf16.xpose.msra.mxu0 0
    %1904 = vmatprep.subr.bf16.mxu0 0
    %1905 = vmatpush1.bf16.xpose.msra.mxu0 0
    %1906 = vmatprep.subr.bf16.mxu0 0
    %1907 = vmatpush1.bf16.xpose.msra.mxu0 0
    %1908 = vmatprep.subr.bf16.mxu0 0
    %1909 = vmatpush1.bf16.xpose.msra.mxu0 0
    %1910 = vmatprep.subr.bf16.mxu0 0
    %1911 = vmatpush1.bf16.xpose.msra.mxu0 0
    %1912 = vmatprep.subr.bf16.mxu0 0
    %1913 = vmatpush1.bf16.xpose.msra.mxu0 0
    %1914 = vmatprep.mubr.bf16.mxu0 0
    %1915 = vmatmul.mubr.bf16.gmra.mrb[0].mxu0 %v1877
    %v1916 = vpop.f32.mrb[0].mxu0
    %v1917 = vadd.f32 %v1590, %v1916
    %v1918 = vpop.f32.mrb[0].mxu0
    %v1919 = vpop.f32.mrb[0].mxu0
    %v1920 = vpop.f32.mrb[0].mxu0
    %1921 = vdwg.mxu0
    %v1922 = vunpack.c.l.b16 %v1719
    %v1923 = vpack.c.b16 %v1922, %v1922
    %1924 = vrot.lane.b32.xlu0 %v1923, 96
    %v1925 = vpop.permute.xlu0 %1924
    %v1927 = vsel %vm287, %v1719, 0
    %v1930 = vsel %vm287, %v1925, 0
    %1932 = vmatprep.subr.bf16.mxu0 0
    %1933 = vmatpush1.bf16.xpose.msra.mxu0 %v1930
    %1934 = vmatprep.subr.bf16.mxu0 0
    %1935 = vmatpush1.bf16.xpose.msra.mxu0 0
    %1936 = vmatprep.subr.bf16.mxu0 0
    %1937 = vmatpush1.bf16.xpose.msra.mxu0 0
    %1938 = vmatprep.subr.bf16.mxu0 0
    %1939 = vmatpush1.bf16.xpose.msra.mxu0 0
    %1940 = vmatprep.subr.bf16.mxu0 0
    %1941 = vmatpush1.bf16.xpose.msra.mxu0 0
    %1942 = vmatprep.subr.bf16.mxu0 0
    %1943 = vmatpush1.bf16.xpose.msra.mxu0 0
    %1944 = vmatprep.subr.bf16.mxu0 0
    %1945 = vmatpush1.bf16.xpose.msra.mxu0 0
    %1946 = vmatprep.subr.bf16.mxu0 0
    %1947 = vmatpush1.bf16.xpose.msra.mxu0 0
    %1948 = vmatprep.subr.bf16.mxu0 0
    %1949 = vmatpush1.bf16.xpose.msra.mxu0 0
    %1950 = vmatprep.subr.bf16.mxu0 0
    %1951 = vmatpush1.bf16.xpose.msra.mxu0 0
    %1952 = vmatprep.subr.bf16.mxu0 0
    %1953 = vmatpush1.bf16.xpose.msra.mxu0 0
    %1954 = vmatprep.subr.bf16.mxu0 0
    %1955 = vmatpush1.bf16.xpose.msra.mxu0 0
    %1956 = vmatprep.subr.bf16.mxu0 0
    %1957 = vmatpush1.bf16.xpose.msra.mxu0 0
    %1958 = vmatprep.subr.bf16.mxu0 0
    %1959 = vmatpush1.bf16.xpose.msra.mxu0 0
    %1960 = vmatprep.subr.bf16.mxu0 0
    %1961 = vmatpush1.bf16.xpose.msra.mxu0 0
    %1962 = vmatprep.subr.bf16.mxu0 0
    %1963 = vmatpush1.bf16.xpose.msra.mxu0 0
    %1964 = vmatprep.mubr.bf16.mxu0 0
    %1965 = vmatmul.mubr.bf16.gmra.mrb[0].mxu0 %v1927
    %v1966 = vpop.f32.mrb[0].mxu0
    %v1967 = vadd.f32 %v1590, %v1966
    %v1968 = vpop.f32.mrb[0].mxu0
    %v1969 = vpop.f32.mrb[0].mxu0
    %v1970 = vpop.f32.mrb[0].mxu0
    %1971 = vdwg.mxu0
    %v1972 = vunpack.c.l.b16 %v1721
    %v1973 = vpack.c.b16 %v1972, %v1972
    %1974 = vrot.lane.b32.xlu0 %v1973, 96
    %v1975 = vpop.permute.xlu0 %1974
    %v1977 = vsel %vm287, %v1721, 0
    %v1980 = vsel %vm287, %v1975, 0
    %1982 = vmatprep.subr.bf16.mxu0 0
    %1983 = vmatpush1.bf16.xpose.msra.mxu0 %v1980
    %1984 = vmatprep.subr.bf16.mxu0 0
    %1985 = vmatpush1.bf16.xpose.msra.mxu0 0
    %1986 = vmatprep.subr.bf16.mxu0 0
    %1987 = vmatpush1.bf16.xpose.msra.mxu0 0
    %1988 = vmatprep.subr.bf16.mxu0 0
    %1989 = vmatpush1.bf16.xpose.msra.mxu0 0
    %1990 = vmatprep.subr.bf16.mxu0 0
    %1991 = vmatpush1.bf16.xpose.msra.mxu0 0
    %1992 = vmatprep.subr.bf16.mxu0 0
    %1993 = vmatpush1.bf16.xpose.msra.mxu0 0
    %1994 = vmatprep.subr.bf16.mxu0 0
    %1995 = vmatpush1.bf16.xpose.msra.mxu0 0
    %1996 = vmatprep.subr.bf16.mxu0 0
    %1997 = vmatpush1.bf16.xpose.msra.mxu0 0
    %1998 = vmatprep.subr.bf16.mxu0 0
    %1999 = vmatpush1.bf16.xpose.msra.mxu0 0
    %2000 = vmatprep.subr.bf16.mxu0 0
    %2001 = vmatpush1.bf16.xpose.msra.mxu0 0
    %2002 = vmatprep.subr.bf16.mxu0 0
    %2003 = vmatpush1.bf16.xpose.msra.mxu0 0
    %2004 = vmatprep.subr.bf16.mxu0 0
    %2005 = vmatpush1.bf16.xpose.msra.mxu0 0
    %2006 = vmatprep.subr.bf16.mxu0 0
    %2007 = vmatpush1.bf16.xpose.msra.mxu0 0
    %2008 = vmatprep.subr.bf16.mxu0 0
    %2009 = vmatpush1.bf16.xpose.msra.mxu0 0
    %2010 = vmatprep.subr.bf16.mxu0 0
    %2011 = vmatpush1.bf16.xpose.msra.mxu0 0
    %2012 = vmatprep.subr.bf16.mxu0 0
    %2013 = vmatpush1.bf16.xpose.msra.mxu0 0
    %2014 = vmatprep.mubr.bf16.mxu0 0
    %2015 = vmatmul.mubr.bf16.gmra.mrb[0].mxu0 %v1977
    %v2016 = vpop.f32.mrb[0].mxu0
    %v2017 = vadd.f32 %v1590, %v2016
    %v2018 = vpop.f32.mrb[0].mxu0
    %v2019 = vpop.f32.mrb[0].mxu0
    %v2020 = vpop.f32.mrb[0].mxu0
    %2021 = vdwg.mxu0
    %v2022 = vunpack.c.l.b16 %v1723
    %v2023 = vpack.c.b16 %v2022, %v2022
    %2024 = vrot.lane.b32.xlu0 %v2023, 96
    %v2025 = vpop.permute.xlu0 %2024
    %v2027 = vsel %vm287, %v1723, 0
    %v2030 = vsel %vm287, %v2025, 0
    %2032 = vmatprep.subr.bf16.mxu0 0
    %2033 = vmatpush1.bf16.xpose.msra.mxu0 %v2030
    %2034 = vmatprep.subr.bf16.mxu0 0
    %2035 = vmatpush1.bf16.xpose.msra.mxu0 0
    %2036 = vmatprep.subr.bf16.mxu0 0
    %2037 = vmatpush1.bf16.xpose.msra.mxu0 0
    %2038 = vmatprep.subr.bf16.mxu0 0
    %2039 = vmatpush1.bf16.xpose.msra.mxu0 0
    %2040 = vmatprep.subr.bf16.mxu0 0
    %2041 = vmatpush1.bf16.xpose.msra.mxu0 0
    %2042 = vmatprep.subr.bf16.mxu0 0
    %2043 = vmatpush1.bf16.xpose.msra.mxu0 0
    %2044 = vmatprep.subr.bf16.mxu0 0
    %2045 = vmatpush1.bf16.xpose.msra.mxu0 0
    %2046 = vmatprep.subr.bf16.mxu0 0
    %2047 = vmatpush1.bf16.xpose.msra.mxu0 0
    %2048 = vmatprep.subr.bf16.mxu0 0
    %2049 = vmatpush1.bf16.xpose.msra.mxu0 0
    %2050 = vmatprep.subr.bf16.mxu0 0
    %2051 = vmatpush1.bf16.xpose.msra.mxu0 0
    %2052 = vmatprep.subr.bf16.mxu0 0
    %2053 = vmatpush1.bf16.xpose.msra.mxu0 0
    %2054 = vmatprep.subr.bf16.mxu0 0
    %2055 = vmatpush1.bf16.xpose.msra.mxu0 0
    %2056 = vmatprep.subr.bf16.mxu0 0
    %2057 = vmatpush1.bf16.xpose.msra.mxu0 0
    %2058 = vmatprep.subr.bf16.mxu0 0
    %2059 = vmatpush1.bf16.xpose.msra.mxu0 0
    %2060 = vmatprep.subr.bf16.mxu0 0
    %2061 = vmatpush1.bf16.xpose.msra.mxu0 0
    %2062 = vmatprep.subr.bf16.mxu0 0
    %2063 = vmatpush1.bf16.xpose.msra.mxu0 0
    %2064 = vmatprep.mubr.bf16.mxu0 0
    %2065 = vmatmul.mubr.bf16.gmra.mrb[0].mxu0 %v2027
    %v2066 = vpop.f32.mrb[0].mxu0
    %v2067 = vadd.f32 %v1590, %v2066
    %v2068 = vpop.f32.mrb[0].mxu0
    %v2069 = vpop.f32.mrb[0].mxu0
    %v2070 = vpop.f32.mrb[0].mxu0
    %2071 = vdwg.mxu0
    %v2072 = vunpack.c.l.b16 %v1725
    %v2073 = vpack.c.b16 %v2072, %v2072
    %2074 = vrot.lane.b32.xlu0 %v2073, 96
    %v2075 = vpop.permute.xlu0 %2074
    %v2077 = vsel %vm287, %v1725, 0
    %v2080 = vsel %vm287, %v2075, 0
    %2082 = vmatprep.subr.bf16.mxu0 0
    %2083 = vmatpush1.bf16.xpose.msra.mxu0 %v2080
    %2084 = vmatprep.subr.bf16.mxu0 0
    %2085 = vmatpush1.bf16.xpose.msra.mxu0 0
    %2086 = vmatprep.subr.bf16.mxu0 0
    %2087 = vmatpush1.bf16.xpose.msra.mxu0 0
    %2088 = vmatprep.subr.bf16.mxu0 0
    %2089 = vmatpush1.bf16.xpose.msra.mxu0 0
    %2090 = vmatprep.subr.bf16.mxu0 0
    %2091 = vmatpush1.bf16.xpose.msra.mxu0 0
    %2092 = vmatprep.subr.bf16.mxu0 0
    %2093 = vmatpush1.bf16.xpose.msra.mxu0 0
    %2094 = vmatprep.subr.bf16.mxu0 0
    %2095 = vmatpush1.bf16.xpose.msra.mxu0 0
    %2096 = vmatprep.subr.bf16.mxu0 0
    %2097 = vmatpush1.bf16.xpose.msra.mxu0 0
    %2098 = vmatprep.subr.bf16.mxu0 0
    %2099 = vmatpush1.bf16.xpose.msra.mxu0 0
    %2100 = vmatprep.subr.bf16.mxu0 0
    %2101 = vmatpush1.bf16.xpose.msra.mxu0 0
    %2102 = vmatprep.subr.bf16.mxu0 0
    %2103 = vmatpush1.bf16.xpose.msra.mxu0 0
    %2104 = vmatprep.subr.bf16.mxu0 0
    %2105 = vmatpush1.bf16.xpose.msra.mxu0 0
    %2106 = vmatprep.subr.bf16.mxu0 0
    %2107 = vmatpush1.bf16.xpose.msra.mxu0 0
    %2108 = vmatprep.subr.bf16.mxu0 0
    %2109 = vmatpush1.bf16.xpose.msra.mxu0 0
    %2110 = vmatprep.subr.bf16.mxu0 0
    %2111 = vmatpush1.bf16.xpose.msra.mxu0 0
    %2112 = vmatprep.subr.bf16.mxu0 0
    %2113 = vmatpush1.bf16.xpose.msra.mxu0 0
    %2114 = vmatprep.mubr.bf16.mxu0 0
    %2115 = vmatmul.mubr.bf16.gmra.mrb[0].mxu0 %v2077
    %v2116 = vpop.f32.mrb[0].mxu0
    %v2117 = vadd.f32 %v1590, %v2116
    %v2118 = vpop.f32.mrb[0].mxu0
    %v2119 = vpop.f32.mrb[0].mxu0
    %v2120 = vpop.f32.mrb[0].mxu0
    %2121 = vdwg.mxu0
    %v2122 = vsel %vm287, %v1769, -inf
    %2123 = vmax.xlane.f32.xlu0 %v2122
    %v2124 = vpop.xlane.xlu0 %2123
    %v2125 = vsel %vm287, %v1817, -inf
    %2126 = vmax.xlane.f32.xlu0 %v2125
    %v2127 = vpop.xlane.xlu0 %2126
    %v2128 = vsel %vm287, %v1867, -inf
    %2129 = vmax.xlane.f32.xlu0 %v2128
    %v2130 = vpop.xlane.xlu0 %2129
    %v2131 = vsel %vm287, %v1917, -inf
    %2132 = vmax.xlane.f32.xlu0 %v2131
    %v2133 = vpop.xlane.xlu0 %2132
    %v2134 = vsel %vm287, %v1967, -inf
    %2135 = vmax.xlane.f32.xlu0 %v2134
    %v2136 = vpop.xlane.xlu0 %2135
    %v2137 = vsel %vm287, %v2017, -inf
    %2138 = vmax.xlane.f32.xlu0 %v2137
    %v2139 = vpop.xlane.xlu0 %2138
    %v2140 = vsel %vm287, %v2067, -inf
    %2141 = vmax.xlane.f32.xlu0 %v2140
    %v2142 = vpop.xlane.xlu0 %2141
    %v2143 = vsel %vm287, %v2117, -inf
    %2144 = vmax.xlane.f32.xlu0 %v2143
    %v2145 = vpop.xlane.xlu0 %2144
    %v2146 = vsub.f32 %v1769, %v2124
    %v2147 = vsub.f32 %v1817, %v2127
    %v2148 = vsub.f32 %v1867, %v2130
    %v2149 = vsub.f32 %v1917, %v2133
    %v2150 = vsub.f32 %v1967, %v2136
    %v2151 = vsub.f32 %v2017, %v2139
    %v2152 = vsub.f32 %v2067, %v2142
    %v2153 = vsub.f32 %v2117, %v2145
    %v2154 = vmul.f32 %v2146, 1.442695
    %v2155 = vpow.pop %v2154
    %v2156 = vmul.f32 %v2147, 1.442695
    %v2157 = vpow.pop %v2156
    %v2158 = vmul.f32 %v2148, 1.442695
    %v2159 = vpow.pop %v2158
    %v2160 = vmul.f32 %v2149, 1.442695
    %v2161 = vpow.pop %v2160
    %v2162 = vmul.f32 %v2150, 1.442695
    %v2163 = vpow.pop %v2162
    %v2164 = vmul.f32 %v2151, 1.442695
    %v2165 = vpow.pop %v2164
    %v2166 = vmul.f32 %v2152, 1.442695
    %v2167 = vpow.pop %v2166
    %v2168 = vmul.f32 %v2153, 1.442695
    %v2169 = vpow.pop %v2168
    %v2170 = vsel %vm287, %v2155, 0.0
    %2171 = vadd.xlane.f32.xlu0 %v2170
    %v2172 = vpop.xlane.xlu0 %2171
    %v2173 = vsel %vm287, %v2157, 0.0
    %2174 = vadd.xlane.f32.xlu0 %v2173
    %v2175 = vpop.xlane.xlu0 %2174
    %v2176 = vsel %vm287, %v2159, 0.0
    %2177 = vadd.xlane.f32.xlu0 %v2176
    %v2178 = vpop.xlane.xlu0 %2177
    %v2179 = vsel %vm287, %v2161, 0.0
    %2180 = vadd.xlane.f32.xlu0 %v2179
    %v2181 = vpop.xlane.xlu0 %2180
    %v2182 = vsel %vm287, %v2163, 0.0
    %2183 = vadd.xlane.f32.xlu0 %v2182
    %v2184 = vpop.xlane.xlu0 %2183
    %v2185 = vsel %vm287, %v2165, 0.0
    %2186 = vadd.xlane.f32.xlu0 %v2185
    %v2187 = vpop.xlane.xlu0 %2186
    %v2188 = vsel %vm287, %v2167, 0.0
    %2189 = vadd.xlane.f32.xlu0 %v2188
    %v2190 = vpop.xlane.xlu0 %2189
    %v2191 = vsel %vm287, %v2169, 0.0
    %2192 = vadd.xlane.f32.xlu0 %v2191
    %v2193 = vpop.xlane.xlu0 %2192
    %v2194 = vrcp.pop %v2172
    %v2195 = vrcp.pop %v2175
    %v2196 = vrcp.pop %v2178
    %v2197 = vrcp.pop %v2181
    %v2198 = vrcp.pop %v2184
    %v2199 = vrcp.pop %v2187
    %v2200 = vrcp.pop %v2190
    %v2201 = vrcp.pop %v2193
    %v2202 = vmul.f32 %v2155, %v2194
    %v2203 = vmul.f32 %v2157, %v2195
    %v2204 = vmul.f32 %v2159, %v2196
    %v2205 = vmul.f32 %v2161, %v2197
    %v2206 = vmul.f32 %v2163, %v2198
    %v2207 = vmul.f32 %v2165, %v2199
    %v2208 = vmul.f32 %v2167, %v2200
    %v2209 = vmul.f32 %v2169, %v2201
    %v2210 = vpack.c.bf16 %v2202, %v2202
    %v2211 = vpack.c.bf16 %v2203, %v2203
    %v2212 = vpack.c.bf16 %v2204, %v2204
    %v2213 = vpack.c.bf16 %v2205, %v2205
    %v2214 = vpack.c.bf16 %v2206, %v2206
    %v2215 = vpack.c.bf16 %v2207, %v2207
    %v2216 = vpack.c.bf16 %v2208, %v2208
    %v2217 = vpack.c.bf16 %v2209, %v2209
    %2218 = vrot.lane.b32.xlu0 %v1712, 64
    %v2219 = vpop.permute.xlu0 %2218
    %v2221 = vsel %vm287, %v2210, 0
    %v2224 = vsel %vm783, %v2219, 0
    %2226 = vmatprep.subr.bf16.mxu0 0
    %2227 = vmatpush1.bf16.msra.mxu0 %v2224
    %2228 = vmatprep.subr.bf16.mxu0 0
    %2229 = vmatpush1.bf16.msra.mxu0 0
    %2230 = vmatprep.subr.bf16.mxu0 0
    %2231 = vmatpush1.bf16.msra.mxu0 0
    %2232 = vmatprep.subr.bf16.mxu0 0
    %2233 = vmatpush1.bf16.msra.mxu0 0
    %2234 = vmatprep.subr.bf16.mxu0 0
    %2235 = vmatpush1.bf16.msra.mxu0 0
    %2236 = vmatprep.subr.bf16.mxu0 0
    %2237 = vmatpush1.bf16.msra.mxu0 0
    %2238 = vmatprep.subr.bf16.mxu0 0
    %2239 = vmatpush1.bf16.msra.mxu0 0
    %2240 = vmatprep.subr.bf16.mxu0 0
    %2241 = vmatpush1.bf16.msra.mxu0 0
    %2242 = vmatprep.subr.bf16.mxu0 0
    %2243 = vmatpush1.bf16.msra.mxu0 0
    %2244 = vmatprep.subr.bf16.mxu0 0
    %2245 = vmatpush1.bf16.msra.mxu0 0
    %2246 = vmatprep.subr.bf16.mxu0 0
    %2247 = vmatpush1.bf16.msra.mxu0 0
    %2248 = vmatprep.subr.bf16.mxu0 0
    %2249 = vmatpush1.bf16.msra.mxu0 0
    %2250 = vmatprep.subr.bf16.mxu0 0
    %2251 = vmatpush1.bf16.msra.mxu0 0
    %2252 = vmatprep.subr.bf16.mxu0 0
    %2253 = vmatpush1.bf16.msra.mxu0 0
    %2254 = vmatprep.subr.bf16.mxu0 0
    %2255 = vmatpush1.bf16.msra.mxu0 0
    %2256 = vmatprep.subr.bf16.mxu0 0
    %2257 = vmatpush1.bf16.msra.mxu0 0
    %2258 = vmatprep.mubr.bf16.mxu0 0
    %2259 = vmatmul.mubr.bf16.gmra.mrb[0].mxu0 %v2221
    %v2260 = vpop.f32.mrb[0].mxu0
    %v2261 = vadd.f32 0.0, %v2260
    %v2262 = vpop.f32.mrb[0].mxu0
    %v2263 = vpop.f32.mrb[0].mxu0
    %v2264 = vpop.f32.mrb[0].mxu0
    %2265 = vdwg.mxu0
    %2266 = vrot.lane.b32.xlu0 %v1713, 64
    %v2267 = vpop.permute.xlu0 %2266
    %v2269 = vsel %vm287, %v2211, 0
    %v2272 = vsel %vm783, %v2267, 0
    %2274 = vmatprep.subr.bf16.mxu0 0
    %2275 = vmatpush1.bf16.msra.mxu0 %v2272
    %2276 = vmatprep.subr.bf16.mxu0 0
    %2277 = vmatpush1.bf16.msra.mxu0 0
    %2278 = vmatprep.subr.bf16.mxu0 0
    %2279 = vmatpush1.bf16.msra.mxu0 0
    %2280 = vmatprep.subr.bf16.mxu0 0
    %2281 = vmatpush1.bf16.msra.mxu0 0
    %2282 = vmatprep.subr.bf16.mxu0 0
    %2283 = vmatpush1.bf16.msra.mxu0 0
    %2284 = vmatprep.subr.bf16.mxu0 0
    %2285 = vmatpush1.bf16.msra.mxu0 0
    %2286 = vmatprep.subr.bf16.mxu0 0
    %2287 = vmatpush1.bf16.msra.mxu0 0
    %2288 = vmatprep.subr.bf16.mxu0 0
    %2289 = vmatpush1.bf16.msra.mxu0 0
    %2290 = vmatprep.subr.bf16.mxu0 0
    %2291 = vmatpush1.bf16.msra.mxu0 0
    %2292 = vmatprep.subr.bf16.mxu0 0
    %2293 = vmatpush1.bf16.msra.mxu0 0
    %2294 = vmatprep.subr.bf16.mxu0 0
    %2295 = vmatpush1.bf16.msra.mxu0 0
    %2296 = vmatprep.subr.bf16.mxu0 0
    %2297 = vmatpush1.bf16.msra.mxu0 0
    %2298 = vmatprep.subr.bf16.mxu0 0
    %2299 = vmatpush1.bf16.msra.mxu0 0
    %2300 = vmatprep.subr.bf16.mxu0 0
    %2301 = vmatpush1.bf16.msra.mxu0 0
    %2302 = vmatprep.subr.bf16.mxu0 0
    %2303 = vmatpush1.bf16.msra.mxu0 0
    %2304 = vmatprep.subr.bf16.mxu0 0
    %2305 = vmatpush1.bf16.msra.mxu0 0
    %2306 = vmatprep.mubr.bf16.mxu0 0
    %2307 = vmatmul.mubr.bf16.gmra.mrb[0].mxu0 %v2269
    %v2308 = vpop.f32.mrb[0].mxu0
    %v2309 = vadd.f32 0.0, %v2308
    %v2310 = vpop.f32.mrb[0].mxu0
    %v2311 = vpop.f32.mrb[0].mxu0
    %v2312 = vpop.f32.mrb[0].mxu0
    %2313 = vdwg.mxu0
    %2314 = vrot.lane.b32.xlu0 %v1823, 64
    %v2315 = vpop.permute.xlu0 %2314
    %v2317 = vsel %vm287, %v2212, 0
    %v2320 = vsel %vm783, %v2315, 0
    %2322 = vmatprep.subr.bf16.mxu0 0
    %2323 = vmatpush1.bf16.msra.mxu0 %v2320
    %2324 = vmatprep.subr.bf16.mxu0 0
    %2325 = vmatpush1.bf16.msra.mxu0 0
    %2326 = vmatprep.subr.bf16.mxu0 0
    %2327 = vmatpush1.bf16.msra.mxu0 0
    %2328 = vmatprep.subr.bf16.mxu0 0
    %2329 = vmatpush1.bf16.msra.mxu0 0
    %2330 = vmatprep.subr.bf16.mxu0 0
    %2331 = vmatpush1.bf16.msra.mxu0 0
    %2332 = vmatprep.subr.bf16.mxu0 0
    %2333 = vmatpush1.bf16.msra.mxu0 0
    %2334 = vmatprep.subr.bf16.mxu0 0
    %2335 = vmatpush1.bf16.msra.mxu0 0
    %2336 = vmatprep.subr.bf16.mxu0 0
    %2337 = vmatpush1.bf16.msra.mxu0 0
    %2338 = vmatprep.subr.bf16.mxu0 0
    %2339 = vmatpush1.bf16.msra.mxu0 0
    %2340 = vmatprep.subr.bf16.mxu0 0
    %2341 = vmatpush1.bf16.msra.mxu0 0
    %2342 = vmatprep.subr.bf16.mxu0 0
    %2343 = vmatpush1.bf16.msra.mxu0 0
    %2344 = vmatprep.subr.bf16.mxu0 0
    %2345 = vmatpush1.bf16.msra.mxu0 0
    %2346 = vmatprep.subr.bf16.mxu0 0
    %2347 = vmatpush1.bf16.msra.mxu0 0
    %2348 = vmatprep.subr.bf16.mxu0 0
    %2349 = vmatpush1.bf16.msra.mxu0 0
    %2350 = vmatprep.subr.bf16.mxu0 0
    %2351 = vmatpush1.bf16.msra.mxu0 0
    %2352 = vmatprep.subr.bf16.mxu0 0
    %2353 = vmatpush1.bf16.msra.mxu0 0
    %2354 = vmatprep.mubr.bf16.mxu0 0
    %2355 = vmatmul.mubr.bf16.gmra.mrb[0].mxu0 %v2317
    %v2356 = vpop.f32.mrb[0].mxu0
    %v2357 = vadd.f32 0.0, %v2356
    %v2358 = vpop.f32.mrb[0].mxu0
    %v2359 = vpop.f32.mrb[0].mxu0
    %v2360 = vpop.f32.mrb[0].mxu0
    %2361 = vdwg.mxu0
    %2362 = vrot.lane.b32.xlu0 %v1873, 64
    %v2363 = vpop.permute.xlu0 %2362
    %v2365 = vsel %vm287, %v2213, 0
    %v2368 = vsel %vm783, %v2363, 0
    %2370 = vmatprep.subr.bf16.mxu0 0
    %2371 = vmatpush1.bf16.msra.mxu0 %v2368
    %2372 = vmatprep.subr.bf16.mxu0 0
    %2373 = vmatpush1.bf16.msra.mxu0 0
    %2374 = vmatprep.subr.bf16.mxu0 0
    %2375 = vmatpush1.bf16.msra.mxu0 0
    %2376 = vmatprep.subr.bf16.mxu0 0
    %2377 = vmatpush1.bf16.msra.mxu0 0
    %2378 = vmatprep.subr.bf16.mxu0 0
    %2379 = vmatpush1.bf16.msra.mxu0 0
    %2380 = vmatprep.subr.bf16.mxu0 0
    %2381 = vmatpush1.bf16.msra.mxu0 0
    %2382 = vmatprep.subr.bf16.mxu0 0
    %2383 = vmatpush1.bf16.msra.mxu0 0
    %2384 = vmatprep.subr.bf16.mxu0 0
    %2385 = vmatpush1.bf16.msra.mxu0 0
    %2386 = vmatprep.subr.bf16.mxu0 0
    %2387 = vmatpush1.bf16.msra.mxu0 0
    %2388 = vmatprep.subr.bf16.mxu0 0
    %2389 = vmatpush1.bf16.msra.mxu0 0
    %2390 = vmatprep.subr.bf16.mxu0 0
    %2391 = vmatpush1.bf16.msra.mxu0 0
    %2392 = vmatprep.subr.bf16.mxu0 0
    %2393 = vmatpush1.bf16.msra.mxu0 0
    %2394 = vmatprep.subr.bf16.mxu0 0
    %2395 = vmatpush1.bf16.msra.mxu0 0
    %2396 = vmatprep.subr.bf16.mxu0 0
    %2397 = vmatpush1.bf16.msra.mxu0 0
    %2398 = vmatprep.subr.bf16.mxu0 0
    %2399 = vmatpush1.bf16.msra.mxu0 0
    %2400 = vmatprep.subr.bf16.mxu0 0
    %2401 = vmatpush1.bf16.msra.mxu0 0
    %2402 = vmatprep.mubr.bf16.mxu0 0
    %2403 = vmatmul.mubr.bf16.gmra.mrb[0].mxu0 %v2365
    %v2404 = vpop.f32.mrb[0].mxu0
    %v2405 = vadd.f32 0.0, %v2404
    %v2406 = vpop.f32.mrb[0].mxu0
    %v2407 = vpop.f32.mrb[0].mxu0
    %v2408 = vpop.f32.mrb[0].mxu0
    %2409 = vdwg.mxu0
    %2410 = vrot.lane.b32.xlu0 %v1923, 64
    %v2411 = vpop.permute.xlu0 %2410
    %v2413 = vsel %vm287, %v2214, 0
    %v2416 = vsel %vm783, %v2411, 0
    %2418 = vmatprep.subr.bf16.mxu0 0
    %2419 = vmatpush1.bf16.msra.mxu0 %v2416
    %2420 = vmatprep.subr.bf16.mxu0 0
    %2421 = vmatpush1.bf16.msra.mxu0 0
    %2422 = vmatprep.subr.bf16.mxu0 0
    %2423 = vmatpush1.bf16.msra.mxu0 0
    %2424 = vmatprep.subr.bf16.mxu0 0
    %2425 = vmatpush1.bf16.msra.mxu0 0
    %2426 = vmatprep.subr.bf16.mxu0 0
    %2427 = vmatpush1.bf16.msra.mxu0 0
    %2428 = vmatprep.subr.bf16.mxu0 0
    %2429 = vmatpush1.bf16.msra.mxu0 0
    %2430 = vmatprep.subr.bf16.mxu0 0
    %2431 = vmatpush1.bf16.msra.mxu0 0
    %2432 = vmatprep.subr.bf16.mxu0 0
    %2433 = vmatpush1.bf16.msra.mxu0 0
    %2434 = vmatprep.subr.bf16.mxu0 0
    %2435 = vmatpush1.bf16.msra.mxu0 0
    %2436 = vmatprep.subr.bf16.mxu0 0
    %2437 = vmatpush1.bf16.msra.mxu0 0
    %2438 = vmatprep.subr.bf16.mxu0 0
    %2439 = vmatpush1.bf16.msra.mxu0 0
    %2440 = vmatprep.subr.bf16.mxu0 0
    %2441 = vmatpush1.bf16.msra.mxu0 0
    %2442 = vmatprep.subr.bf16.mxu0 0
    %2443 = vmatpush1.bf16.msra.mxu0 0
    %2444 = vmatprep.subr.bf16.mxu0 0
    %2445 = vmatpush1.bf16.msra.mxu0 0
    %2446 = vmatprep.subr.bf16.mxu0 0
    %2447 = vmatpush1.bf16.msra.mxu0 0
    %2448 = vmatprep.subr.bf16.mxu0 0
    %2449 = vmatpush1.bf16.msra.mxu0 0
    %2450 = vmatprep.mubr.bf16.mxu0 0
    %2451 = vmatmul.mubr.bf16.gmra.mrb[0].mxu0 %v2413
    %v2452 = vpop.f32.mrb[0].mxu0
    %v2453 = vadd.f32 0.0, %v2452
    %v2454 = vpop.f32.mrb[0].mxu0
    %v2455 = vpop.f32.mrb[0].mxu0
    %v2456 = vpop.f32.mrb[0].mxu0
    %2457 = vdwg.mxu0
    %2458 = vrot.lane.b32.xlu0 %v1973, 64
    %v2459 = vpop.permute.xlu0 %2458
    %v2461 = vsel %vm287, %v2215, 0
    %v2464 = vsel %vm783, %v2459, 0
    %2466 = vmatprep.subr.bf16.mxu0 0
    %2467 = vmatpush1.bf16.msra.mxu0 %v2464
    %2468 = vmatprep.subr.bf16.mxu0 0
    %2469 = vmatpush1.bf16.msra.mxu0 0
    %2470 = vmatprep.subr.bf16.mxu0 0
    %2471 = vmatpush1.bf16.msra.mxu0 0
    %2472 = vmatprep.subr.bf16.mxu0 0
    %2473 = vmatpush1.bf16.msra.mxu0 0
    %2474 = vmatprep.subr.bf16.mxu0 0
    %2475 = vmatpush1.bf16.msra.mxu0 0
    %2476 = vmatprep.subr.bf16.mxu0 0
    %2477 = vmatpush1.bf16.msra.mxu0 0
    %2478 = vmatprep.subr.bf16.mxu0 0
    %2479 = vmatpush1.bf16.msra.mxu0 0
    %2480 = vmatprep.subr.bf16.mxu0 0
    %2481 = vmatpush1.bf16.msra.mxu0 0
    %2482 = vmatprep.subr.bf16.mxu0 0
    %2483 = vmatpush1.bf16.msra.mxu0 0
    %2484 = vmatprep.subr.bf16.mxu0 0
    %2485 = vmatpush1.bf16.msra.mxu0 0
    %2486 = vmatprep.subr.bf16.mxu0 0
    %2487 = vmatpush1.bf16.msra.mxu0 0
    %2488 = vmatprep.subr.bf16.mxu0 0
    %2489 = vmatpush1.bf16.msra.mxu0 0
    %2490 = vmatprep.subr.bf16.mxu0 0
    %2491 = vmatpush1.bf16.msra.mxu0 0
    %2492 = vmatprep.subr.bf16.mxu0 0
    %2493 = vmatpush1.bf16.msra.mxu0 0
    %2494 = vmatprep.subr.bf16.mxu0 0
    %2495 = vmatpush1.bf16.msra.mxu0 0
    %2496 = vmatprep.subr.bf16.mxu0 0
    %2497 = vmatpush1.bf16.msra.mxu0 0
    %2498 = vmatprep.mubr.bf16.mxu0 0
    %2499 = vmatmul.mubr.bf16.gmra.mrb[0].mxu0 %v2461
    %v2500 = vpop.f32.mrb[0].mxu0
    %v2501 = vadd.f32 0.0, %v2500
    %v2502 = vpop.f32.mrb[0].mxu0
    %v2503 = vpop.f32.mrb[0].mxu0
    %v2504 = vpop.f32.mrb[0].mxu0
    %2505 = vdwg.mxu0
    %2506 = vrot.lane.b32.xlu0 %v2023, 64
    %v2507 = vpop.permute.xlu0 %2506
    %v2509 = vsel %vm287, %v2216, 0
    %v2512 = vsel %vm783, %v2507, 0
    %2514 = vmatprep.subr.bf16.mxu0 0
    %2515 = vmatpush1.bf16.msra.mxu0 %v2512
    %2516 = vmatprep.subr.bf16.mxu0 0
    %2517 = vmatpush1.bf16.msra.mxu0 0
    %2518 = vmatprep.subr.bf16.mxu0 0
    %2519 = vmatpush1.bf16.msra.mxu0 0
    %2520 = vmatprep.subr.bf16.mxu0 0
    %2521 = vmatpush1.bf16.msra.mxu0 0
    %2522 = vmatprep.subr.bf16.mxu0 0
    %2523 = vmatpush1.bf16.msra.mxu0 0
    %2524 = vmatprep.subr.bf16.mxu0 0
    %2525 = vmatpush1.bf16.msra.mxu0 0
    %2526 = vmatprep.subr.bf16.mxu0 0
    %2527 = vmatpush1.bf16.msra.mxu0 0
    %2528 = vmatprep.subr.bf16.mxu0 0
    %2529 = vmatpush1.bf16.msra.mxu0 0
    %2530 = vmatprep.subr.bf16.mxu0 0
    %2531 = vmatpush1.bf16.msra.mxu0 0
    %2532 = vmatprep.subr.bf16.mxu0 0
    %2533 = vmatpush1.bf16.msra.mxu0 0
    %2534 = vmatprep.subr.bf16.mxu0 0
    %2535 = vmatpush1.bf16.msra.mxu0 0
    %2536 = vmatprep.subr.bf16.mxu0 0
    %2537 = vmatpush1.bf16.msra.mxu0 0
    %2538 = vmatprep.subr.bf16.mxu0 0
    %2539 = vmatpush1.bf16.msra.mxu0 0
    %2540 = vmatprep.subr.bf16.mxu0 0
    %2541 = vmatpush1.bf16.msra.mxu0 0
    %2542 = vmatprep.subr.bf16.mxu0 0
    %2543 = vmatpush1.bf16.msra.mxu0 0
    %2544 = vmatprep.subr.bf16.mxu0 0
    %2545 = vmatpush1.bf16.msra.mxu0 0
    %2546 = vmatprep.mubr.bf16.mxu0 0
    %2547 = vmatmul.mubr.bf16.gmra.mrb[0].mxu0 %v2509
    %v2548 = vpop.f32.mrb[0].mxu0
    %v2549 = vadd.f32 0.0, %v2548
    %v2550 = vpop.f32.mrb[0].mxu0
    %v2551 = vpop.f32.mrb[0].mxu0
    %v2552 = vpop.f32.mrb[0].mxu0
    %2553 = vdwg.mxu0
    %2554 = vrot.lane.b32.xlu0 %v2073, 64
    %v2555 = vpop.permute.xlu0 %2554
    %v2557 = vsel %vm287, %v2217, 0
    %v2560 = vsel %vm783, %v2555, 0
    %2562 = vmatprep.subr.bf16.mxu0 0
    %2563 = vmatpush1.bf16.msra.mxu0 %v2560
    %2564 = vmatprep.subr.bf16.mxu0 0
    %2565 = vmatpush1.bf16.msra.mxu0 0
    %2566 = vmatprep.subr.bf16.mxu0 0
    %2567 = vmatpush1.bf16.msra.mxu0 0
    %2568 = vmatprep.subr.bf16.mxu0 0
    %2569 = vmatpush1.bf16.msra.mxu0 0
    %2570 = vmatprep.subr.bf16.mxu0 0
    %2571 = vmatpush1.bf16.msra.mxu0 0
    %2572 = vmatprep.subr.bf16.mxu0 0
    %2573 = vmatpush1.bf16.msra.mxu0 0
    %2574 = vmatprep.subr.bf16.mxu0 0
    %2575 = vmatpush1.bf16.msra.mxu0 0
    %2576 = vmatprep.subr.bf16.mxu0 0
    %2577 = vmatpush1.bf16.msra.mxu0 0
    %2578 = vmatprep.subr.bf16.mxu0 0
    %2579 = vmatpush1.bf16.msra.mxu0 0
    %2580 = vmatprep.subr.bf16.mxu0 0
    %2581 = vmatpush1.bf16.msra.mxu0 0
    %2582 = vmatprep.subr.bf16.mxu0 0
    %2583 = vmatpush1.bf16.msra.mxu0 0
    %2584 = vmatprep.subr.bf16.mxu0 0
    %2585 = vmatpush1.bf16.msra.mxu0 0
    %2586 = vmatprep.subr.bf16.mxu0 0
    %2587 = vmatpush1.bf16.msra.mxu0 0
    %2588 = vmatprep.subr.bf16.mxu0 0
    %2589 = vmatpush1.bf16.msra.mxu0 0
    %2590 = vmatprep.subr.bf16.mxu0 0
    %2591 = vmatpush1.bf16.msra.mxu0 0
    %2592 = vmatprep.subr.bf16.mxu0 0
    %2593 = vmatpush1.bf16.msra.mxu0 0
    %2594 = vmatprep.mubr.bf16.mxu0 0
    %2595 = vmatmul.mubr.bf16.gmra.mrb[0].mxu0 %v2557
    %v2596 = vpop.f32.mrb[0].mxu0
    %v2597 = vadd.f32 0.0, %v2596
    %v2598 = vpop.f32.mrb[0].mxu0
    %v2599 = vpop.f32.mrb[0].mxu0
    %v2600 = vpop.f32.mrb[0].mxu0
    %2601 = vdwg.mxu0
    %v2602 = vpack.c.bf16 %v2309, %v2261
    %v2603 = vpack.c.bf16 %v2405, %v2357
    %v2604 = vpack.c.bf16 %v2501, %v2453
    %v2605 = vpack.c.bf16 %v2597, %v2549
    %v2607 = vsel %vm287, %v2602, 0
    %v2610 = vsel %vm783, %v1641, 0
    %2612 = vmatprep.subr.bf16.mxu0 0
    %2613 = vmatpush1.bf16.msra.mxu0 %v2610
    %2614 = vmatprep.subr.bf16.mxu0 0
    %2615 = vmatpush1.bf16.msra.mxu0 0
    %2616 = vmatprep.subr.bf16.mxu0 0
    %2617 = vmatpush1.bf16.msra.mxu0 0
    %2618 = vmatprep.subr.bf16.mxu0 0
    %2619 = vmatpush1.bf16.msra.mxu0 0
    %2620 = vmatprep.subr.bf16.mxu0 0
    %2621 = vmatpush1.bf16.msra.mxu0 0
    %2622 = vmatprep.subr.bf16.mxu0 0
    %2623 = vmatpush1.bf16.msra.mxu0 0
    %2624 = vmatprep.subr.bf16.mxu0 0
    %2625 = vmatpush1.bf16.msra.mxu0 0
    %2626 = vmatprep.subr.bf16.mxu0 0
    %2627 = vmatpush1.bf16.msra.mxu0 0
    %2628 = vmatprep.subr.bf16.mxu0 0
    %2629 = vmatpush1.bf16.msra.mxu0 0
    %2630 = vmatprep.subr.bf16.mxu0 0
    %2631 = vmatpush1.bf16.msra.mxu0 0
    %2632 = vmatprep.subr.bf16.mxu0 0
    %2633 = vmatpush1.bf16.msra.mxu0 0
    %2634 = vmatprep.subr.bf16.mxu0 0
    %2635 = vmatpush1.bf16.msra.mxu0 0
    %2636 = vmatprep.subr.bf16.mxu0 0
    %2637 = vmatpush1.bf16.msra.mxu0 0
    %2638 = vmatprep.subr.bf16.mxu0 0
    %2639 = vmatpush1.bf16.msra.mxu0 0
    %2640 = vmatprep.subr.bf16.mxu0 0
    %2641 = vmatpush1.bf16.msra.mxu0 0
    %2642 = vmatprep.subr.bf16.mxu0 0
    %2643 = vmatpush1.bf16.msra.mxu0 0
    %2644 = vmatprep.mubr.bf16.mxu0 0
    %2645 = vmatmul.mubr.bf16.gmra.mrb[0].mxu0 %v2607
    %v2646 = vpop.f32.mrb[0].mxu0
    %v2647 = vadd.f32 0.0, %v2646
    %v2648 = vpop.f32.mrb[0].mxu0
    %v2649 = vpop.f32.mrb[0].mxu0
    %v2650 = vadd.f32 0.0, %v2649
    %v2651 = vpop.f32.mrb[0].mxu0
    %2652 = vdwg.mxu0
    %v2654 = vsel %vm287, %v2603, 0
    %v2657 = vsel %vm783, %v1642, 0
    %2659 = vmatprep.subr.bf16.mxu0 0
    %2660 = vmatpush1.bf16.msra.mxu0 %v2657
    %2661 = vmatprep.subr.bf16.mxu0 0
    %2662 = vmatpush1.bf16.msra.mxu0 0
    %2663 = vmatprep.subr.bf16.mxu0 0
    %2664 = vmatpush1.bf16.msra.mxu0 0
    %2665 = vmatprep.subr.bf16.mxu0 0
    %2666 = vmatpush1.bf16.msra.mxu0 0
    %2667 = vmatprep.subr.bf16.mxu0 0
    %2668 = vmatpush1.bf16.msra.mxu0 0
    %2669 = vmatprep.subr.bf16.mxu0 0
    %2670 = vmatpush1.bf16.msra.mxu0 0
    %2671 = vmatprep.subr.bf16.mxu0 0
    %2672 = vmatpush1.bf16.msra.mxu0 0
    %2673 = vmatprep.subr.bf16.mxu0 0
    %2674 = vmatpush1.bf16.msra.mxu0 0
    %2675 = vmatprep.subr.bf16.mxu0 0
    %2676 = vmatpush1.bf16.msra.mxu0 0
    %2677 = vmatprep.subr.bf16.mxu0 0
    %2678 = vmatpush1.bf16.msra.mxu0 0
    %2679 = vmatprep.subr.bf16.mxu0 0
    %2680 = vmatpush1.bf16.msra.mxu0 0
    %2681 = vmatprep.subr.bf16.mxu0 0
    %2682 = vmatpush1.bf16.msra.mxu0 0
    %2683 = vmatprep.subr.bf16.mxu0 0
    %2684 = vmatpush1.bf16.msra.mxu0 0
    %2685 = vmatprep.subr.bf16.mxu0 0
    %2686 = vmatpush1.bf16.msra.mxu0 0
    %2687 = vmatprep.subr.bf16.mxu0 0
    %2688 = vmatpush1.bf16.msra.mxu0 0
    %2689 = vmatprep.subr.bf16.mxu0 0
    %2690 = vmatpush1.bf16.msra.mxu0 0
    %2691 = vmatprep.mubr.bf16.mxu0 0
    %2692 = vmatmul.mubr.bf16.gmra.mrb[0].mxu0 %v2654
    %v2693 = vpop.f32.mrb[0].mxu0
    %v2694 = vadd.f32 0.0, %v2693
    %v2695 = vpop.f32.mrb[0].mxu0
    %v2696 = vpop.f32.mrb[0].mxu0
    %v2697 = vadd.f32 0.0, %v2696
    %v2698 = vpop.f32.mrb[0].mxu0
    %2699 = vdwg.mxu0
    %v2701 = vsel %vm287, %v2604, 0
    %v2704 = vsel %vm783, %v1643, 0
    %2706 = vmatprep.subr.bf16.mxu0 0
    %2707 = vmatpush1.bf16.msra.mxu0 %v2704
    %2708 = vmatprep.subr.bf16.mxu0 0
    %2709 = vmatpush1.bf16.msra.mxu0 0
    %2710 = vmatprep.subr.bf16.mxu0 0
    %2711 = vmatpush1.bf16.msra.mxu0 0
    %2712 = vmatprep.subr.bf16.mxu0 0
    %2713 = vmatpush1.bf16.msra.mxu0 0
    %2714 = vmatprep.subr.bf16.mxu0 0
    %2715 = vmatpush1.bf16.msra.mxu0 0
    %2716 = vmatprep.subr.bf16.mxu0 0
    %2717 = vmatpush1.bf16.msra.mxu0 0
    %2718 = vmatprep.subr.bf16.mxu0 0
    %2719 = vmatpush1.bf16.msra.mxu0 0
    %2720 = vmatprep.subr.bf16.mxu0 0
    %2721 = vmatpush1.bf16.msra.mxu0 0
    %2722 = vmatprep.subr.bf16.mxu0 0
    %2723 = vmatpush1.bf16.msra.mxu0 0
    %2724 = vmatprep.subr.bf16.mxu0 0
    %2725 = vmatpush1.bf16.msra.mxu0 0
    %2726 = vmatprep.subr.bf16.mxu0 0
    %2727 = vmatpush1.bf16.msra.mxu0 0
    %2728 = vmatprep.subr.bf16.mxu0 0
    %2729 = vmatpush1.bf16.msra.mxu0 0
    %2730 = vmatprep.subr.bf16.mxu0 0
    %2731 = vmatpush1.bf16.msra.mxu0 0
    %2732 = vmatprep.subr.bf16.mxu0 0
    %2733 = vmatpush1.bf16.msra.mxu0 0
    %2734 = vmatprep.subr.bf16.mxu0 0
    %2735 = vmatpush1.bf16.msra.mxu0 0
    %2736 = vmatprep.subr.bf16.mxu0 0
    %2737 = vmatpush1.bf16.msra.mxu0 0
    %2738 = vmatprep.mubr.bf16.mxu0 0
    %2739 = vmatmul.mubr.bf16.gmra.mrb[0].mxu0 %v2701
    %v2740 = vpop.f32.mrb[0].mxu0
    %v2741 = vadd.f32 0.0, %v2740
    %v2742 = vpop.f32.mrb[0].mxu0
    %v2743 = vpop.f32.mrb[0].mxu0
    %v2744 = vadd.f32 0.0, %v2743
    %v2745 = vpop.f32.mrb[0].mxu0
    %2746 = vdwg.mxu0
    %v2748 = vsel %vm287, %v2605, 0
    %v2751 = vsel %vm783, %v1644, 0
    %2753 = vmatprep.subr.bf16.mxu0 0
    %2754 = vmatpush1.bf16.msra.mxu0 %v2751
    %2755 = vmatprep.subr.bf16.mxu0 0
    %2756 = vmatpush1.bf16.msra.mxu0 0
    %2757 = vmatprep.subr.bf16.mxu0 0
    %2758 = vmatpush1.bf16.msra.mxu0 0
    %2759 = vmatprep.subr.bf16.mxu0 0
    %2760 = vmatpush1.bf16.msra.mxu0 0
    %2761 = vmatprep.subr.bf16.mxu0 0
    %2762 = vmatpush1.bf16.msra.mxu0 0
    %2763 = vmatprep.subr.bf16.mxu0 0
    %2764 = vmatpush1.bf16.msra.mxu0 0
    %2765 = vmatprep.subr.bf16.mxu0 0
    %2766 = vmatpush1.bf16.msra.mxu0 0
    %2767 = vmatprep.subr.bf16.mxu0 0
    %2768 = vmatpush1.bf16.msra.mxu0 0
    %2769 = vmatprep.subr.bf16.mxu0 0
    %2770 = vmatpush1.bf16.msra.mxu0 0
    %2771 = vmatprep.subr.bf16.mxu0 0
    %2772 = vmatpush1.bf16.msra.mxu0 0
    %2773 = vmatprep.subr.bf16.mxu0 0
    %2774 = vmatpush1.bf16.msra.mxu0 0
    %2775 = vmatprep.subr.bf16.mxu0 0
    %2776 = vmatpush1.bf16.msra.mxu0 0
    %2777 = vmatprep.subr.bf16.mxu0 0
    %2778 = vmatpush1.bf16.msra.mxu0 0
    %2779 = vmatprep.subr.bf16.mxu0 0
    %2780 = vmatpush1.bf16.msra.mxu0 0
    %2781 = vmatprep.subr.bf16.mxu0 0
    %2782 = vmatpush1.bf16.msra.mxu0 0
    %2783 = vmatprep.subr.bf16.mxu0 0
    %2784 = vmatpush1.bf16.msra.mxu0 0
    %2785 = vmatprep.mubr.bf16.mxu0 0
    %2786 = vmatmul.mubr.bf16.gmra.mrb[0].mxu0 %v2748
    %v2787 = vpop.f32.mrb[0].mxu0
    %v2788 = vadd.f32 0.0, %v2787
    %v2789 = vpop.f32.mrb[0].mxu0
    %v2790 = vpop.f32.mrb[0].mxu0
    %v2791 = vadd.f32 0.0, %v2790
    %v2792 = vpop.f32.mrb[0].mxu0
    %2793 = vdwg.mxu0
    %v2794 = vsel %vm150, %v2647, 0.0
    %v2795 = vsel %vm150, %v2694, 0.0
    %v2796 = vadd.f32 %v2794, %v2795
    %v2797 = vsel %vm150, %v2741, 0.0
    %v2798 = vadd.f32 %v2796, %v2797
    %v2799 = vsel %vm150, %v2788, 0.0
    %v2800 = vadd.f32 %v2798, %v2799
    %v2801 = vsel %vm150, %v2650, 0.0
    %v2802 = vsel %vm150, %v2697, 0.0
    %v2803 = vadd.f32 %v2801, %v2802
    %v2804 = vsel %vm150, %v2744, 0.0
    %v2805 = vadd.f32 %v2803, %v2804
    %v2806 = vsel %vm150, %v2791, 0.0
    %v2807 = vadd.f32 %v2805, %v2806
    %v2809 = vlaneseq
    %v2810 = vshrl.u32 %v2809, 7
    %v2811 = vsub.s32 0, %v2810
    %v2812 = vrot.slane %v1645, %v2811
    %v2814 = vadd.f32 %v2800, %v2812
    %v2815 = vadd.f32 %v2807, %v2812
    %v2816 = vadd.f32 %v1583, %v2814
    %v2817 = vadd.f32 %v1584, %v2815
    %v2818 = vld [vmem:[%s41] sm:$0x1]
    %v2819 = vld [vmem:[%s43] sm:$0x1]
    %v2820 = vsel %vm150, %v2816, 0.0
    %2821 = vadd.xlane.f32.xlu0 %v2820
    %v2822 = vpop.xlane.xlu0 %2821
    %v2823 = vsel %vm150, %v2817, 0.0
    %2824 = vadd.xlane.f32.xlu0 %v2823
    %v2825 = vpop.xlane.xlu0 %2824
    %v2826 = vmul.f32 %v2822, %v157
    %v2827 = vmul.f32 %v2825, %v157
    %v2828 = vsub.f32 %v2816, %v2826
    %v2829 = vsub.f32 %v2817, %v2827
    %v2830 = vmul.f32 %v2828, %v2828
    %v2831 = vmul.f32 %v2829, %v2829
    %v2832 = vsel %vm150, %v2830, 0.0
    %2833 = vadd.xlane.f32.xlu0 %v2832
    %v2834 = vpop.xlane.xlu0 %2833
    %v2835 = vsel %vm150, %v2831, 0.0
    %2836 = vadd.xlane.f32.xlu0 %v2835
    %v2837 = vpop.xlane.xlu0 %2836
    %v2838 = vmul.f32 %v2834, %v157
    %v2839 = vmul.f32 %v2837, %v157
    %v2840 = vadd.f32 %v2838, 1e-05
    %v2841 = vadd.f32 %v2839, 1e-05
    %v2842 = vrsqrt.pop %v2840
    %v2843 = vrsqrt.pop %v2841
    %v2844 = vmul.f32 %v2828, %v2842
    %v2845 = vmul.f32 %v2829, %v2843
    %v2847 = vlaneseq
    %v2848 = vshrl.u32 %v2847, 7
    %v2849 = vsub.s32 0, %v2848
    %v2850 = vrot.slane %v2818, %v2849
    %v2852 = vmul.f32 %v2844, %v2850
    %v2853 = vmul.f32 %v2845, %v2850
    %v2855 = vlaneseq
    %v2856 = vshrl.u32 %v2855, 7
    %v2857 = vsub.s32 0, %v2856
    %v2858 = vrot.slane %v2819, %v2857
    %v2860 = vadd.f32 %v2852, %v2858
    %v2861 = vadd.f32 %v2853, %v2858
    %v2862 = vpack.c.bf16 %v2861, %v2860
    %v2863 = vld [vmem:[%s45] sm:$0xf]
    %v2864 = vld [vmem:[%s45 + $0x4] sm:$0xf]
    %v2865 = vld [vmem:[%s45 + $0x8] sm:$0xf]
    %v2866 = vld [vmem:[%s45 + $0xc] sm:$0xf]
    %v2867 = vld [vmem:[%s47] sm:$0x1]
    %v2868 = vld [vmem:[%s49] sm:$0xf]
    %v2869 = vld [vmem:[%s49 + $0x4] sm:$0xf]
    %v2870 = vld [vmem:[%s49 + $0x8] sm:$0xf]
    %v2871 = vld [vmem:[%s49 + $0xc] sm:$0xf]
    %v2872 = vld [vmem:[%s51] sm:$0x1]
    %v2873 = vld [vmem:[%s53] sm:$0xf]
    %v2874 = vld [vmem:[%s53 + $0x4] sm:$0xf]
    %v2875 = vld [vmem:[%s53 + $0x8] sm:$0xf]
    %v2876 = vld [vmem:[%s53 + $0xc] sm:$0xf]
    %v2877 = vld [vmem:[%s55] sm:$0x1]
    %v2879 = vlaneseq
    %v2880 = vshrl.u32 %v2879, 7
    %v2881 = vsub.s32 0, %v2880
    %v2882 = vrot.slane %v2867, %v2881
    %v2888 = vunpack.c.l.b16 %v2863
    %v2889 = vunpack.c.l.b16 %v2864
    %v2890 = vunpack.c.l.b16 %v2865
    %v2891 = vunpack.c.l.b16 %v2866
    %v2892 = vpack.c.b16 %v2889, %v2888
    %v2893 = vpack.c.b16 %v2891, %v2890
    %v2897 = vsel %vm150, %v2862, 0
    %2899 = vmatprep.subr.bf16.mxu0 0
    %2900 = vmatpush1.bf16.msra.mxu0 %v2892
    %2901 = vmatprep.subr.bf16.mxu0 0
    %2902 = vmatpush1.bf16.msra.mxu0 %v2893
    %2903 = vmatprep.subr.bf16.mxu0 0
    %2904 = vmatpush1.bf16.msra.mxu0 0
    %2905 = vmatprep.subr.bf16.mxu0 0
    %2906 = vmatpush1.bf16.msra.mxu0 0
    %2907 = vmatprep.subr.bf16.mxu0 0
    %2908 = vmatpush1.bf16.msra.mxu0 0
    %2909 = vmatprep.subr.bf16.mxu0 0
    %2910 = vmatpush1.bf16.msra.mxu0 0
    %2911 = vmatprep.subr.bf16.mxu0 0
    %2912 = vmatpush1.bf16.msra.mxu0 0
    %2913 = vmatprep.subr.bf16.mxu0 0
    %2914 = vmatpush1.bf16.msra.mxu0 0
    %2915 = vmatprep.subr.bf16.mxu0 0
    %2916 = vmatpush1.bf16.msra.mxu0 0
    %2917 = vmatprep.subr.bf16.mxu0 0
    %2918 = vmatpush1.bf16.msra.mxu0 0
    %2919 = vmatprep.subr.bf16.mxu0 0
    %2920 = vmatpush1.bf16.msra.mxu0 0
    %2921 = vmatprep.subr.bf16.mxu0 0
    %2922 = vmatpush1.bf16.msra.mxu0 0
    %2923 = vmatprep.subr.bf16.mxu0 0
    %2924 = vmatpush1.bf16.msra.mxu0 0
    %2925 = vmatprep.subr.bf16.mxu0 0
    %2926 = vmatpush1.bf16.msra.mxu0 0
    %2927 = vmatprep.subr.bf16.mxu0 0
    %2928 = vmatpush1.bf16.msra.mxu0 0
    %2929 = vmatprep.subr.bf16.mxu0 0
    %2930 = vmatpush1.bf16.msra.mxu0 0
    %2931 = vmatprep.mubr.bf16.mxu0 0
    %2932 = vmatmul.mubr.bf16.gmra.mrb[0].mxu0 %v2897
    %v2933 = vpop.f32.mrb[0].mxu0
    %v2934 = vadd.f32 %v2882, %v2933
    %v2935 = vpop.f32.mrb[0].mxu0
    %v2936 = vpop.f32.mrb[0].mxu0
    %v2937 = vadd.f32 %v2882, %v2936
    %v2938 = vpop.f32.mrb[0].mxu0
    %2939 = vdwg.mxu0
    %v2940 = vpack.c.bf16 %v2937, %v2934
    %v2942 = vlaneseq
    %v2943 = vshrl.u32 %v2942, 7
    %v2944 = vsub.s32 0, %v2943
    %v2945 = vrot.slane %v2872, %v2944
    %v2951 = vunpack.c.l.b16 %v2868
    %v2952 = vunpack.c.l.b16 %v2869
    %v2953 = vunpack.c.l.b16 %v2870
    %v2954 = vunpack.c.l.b16 %v2871
    %v2955 = vpack.c.b16 %v2952, %v2951
    %v2956 = vpack.c.b16 %v2954, %v2953
    %v2960 = vsel %vm150, %v1580, 0
    %2962 = vmatprep.subr.bf16.mxu0 0
    %2963 = vmatpush1.bf16.msra.mxu0 %v2955
    %2964 = vmatprep.subr.bf16.mxu0 0
    %2965 = vmatpush1.bf16.msra.mxu0 %v2956
    %2966 = vmatprep.subr.bf16.mxu0 0
    %2967 = vmatpush1.bf16.msra.mxu0 0
    %2968 = vmatprep.subr.bf16.mxu0 0
    %2969 = vmatpush1.bf16.msra.mxu0 0
    %2970 = vmatprep.subr.bf16.mxu0 0
    %2971 = vmatpush1.bf16.msra.mxu0 0
    %2972 = vmatprep.subr.bf16.mxu0 0
    %2973 = vmatpush1.bf16.msra.mxu0 0
    %2974 = vmatprep.subr.bf16.mxu0 0
    %2975 = vmatpush1.bf16.msra.mxu0 0
    %2976 = vmatprep.subr.bf16.mxu0 0
    %2977 = vmatpush1.bf16.msra.mxu0 0
    %2978 = vmatprep.subr.bf16.mxu0 0
    %2979 = vmatpush1.bf16.msra.mxu0 0
    %2980 = vmatprep.subr.bf16.mxu0 0
    %2981 = vmatpush1.bf16.msra.mxu0 0
    %2982 = vmatprep.subr.bf16.mxu0 0
    %2983 = vmatpush1.bf16.msra.mxu0 0
    %2984 = vmatprep.subr.bf16.mxu0 0
    %2985 = vmatpush1.bf16.msra.mxu0 0
    %2986 = vmatprep.subr.bf16.mxu0 0
    %2987 = vmatpush1.bf16.msra.mxu0 0
    %2988 = vmatprep.subr.bf16.mxu0 0
    %2989 = vmatpush1.bf16.msra.mxu0 0
    %2990 = vmatprep.subr.bf16.mxu0 0
    %2991 = vmatpush1.bf16.msra.mxu0 0
    %2992 = vmatprep.subr.bf16.mxu0 0
    %2993 = vmatpush1.bf16.msra.mxu0 0
    %2994 = vmatprep.mubr.bf16.mxu0 0
    %2995 = vmatmul.mubr.bf16.gmra.mrb[0].mxu0 %v2960
    %v2996 = vpop.f32.mrb[0].mxu0
    %v2997 = vadd.f32 %v2945, %v2996
    %v2998 = vpop.f32.mrb[0].mxu0
    %v2999 = vpop.f32.mrb[0].mxu0
    %v3000 = vadd.f32 %v2945, %v2999
    %v3001 = vpop.f32.mrb[0].mxu0
    %3002 = vdwg.mxu0
    %v3003 = vpack.c.bf16 %v3000, %v2997
    %v3005 = vunpack.c.l.b16 %v2940
    %v3006 = vunpack.c.h.b16 %v2940
    %v3007 = vpack.c.b16 %v3005, %v3005
    %v3008 = vpack.c.b16 %v3006, %v3006
    %3009 = vrot.lane.b32.xlu0 %v3007, 120
    %v3010 = vpop.permute.xlu0 %3009
    %3011 = vrot.lane.b32.xlu0 %v3008, 120
    %v3012 = vpop.permute.xlu0 %3011
    %3013 = vrot.lane.b32.xlu0 %v3007, 112
    %v3014 = vpop.permute.xlu0 %3013
    %3015 = vrot.lane.b32.xlu0 %v3008, 112
    %v3016 = vpop.permute.xlu0 %3015
    %3017 = vrot.lane.b32.xlu0 %v3007, 104
    %v3018 = vpop.permute.xlu0 %3017
    %3019 = vrot.lane.b32.xlu0 %v3008, 104
    %v3020 = vpop.permute.xlu0 %3019
    %v3022 = vunpack.c.l.b16 %v3003
    %v3023 = vunpack.c.h.b16 %v3003
    %v3024 = vpack.c.b16 %v3022, %v3022
    %v3025 = vpack.c.b16 %v3023, %v3023
    %3026 = vrot.lane.b32.xlu0 %v3024, 120
    %v3027 = vpop.permute.xlu0 %3026
    %3028 = vrot.lane.b32.xlu0 %v3025, 120
    %v3029 = vpop.permute.xlu0 %3028
    %3030 = vrot.lane.b32.xlu0 %v3024, 112
    %v3031 = vpop.permute.xlu0 %3030
    %3032 = vrot.lane.b32.xlu0 %v3025, 112
    %v3033 = vpop.permute.xlu0 %3032
    %3034 = vrot.lane.b32.xlu0 %v3024, 104
    %v3035 = vpop.permute.xlu0 %3034
    %3036 = vrot.lane.b32.xlu0 %v3025, 104
    %v3037 = vpop.permute.xlu0 %3036
    %v3039 = vsel %vm287, %v3007, 0
    %v3042 = vsel %vm287, %v3024, 0
    %3044 = vmatprep.subr.bf16.mxu0 0
    %3045 = vmatpush1.bf16.xpose.msra.mxu0 %v3042
    %3046 = vmatprep.subr.bf16.mxu0 0
    %3047 = vmatpush1.bf16.xpose.msra.mxu0 0
    %3048 = vmatprep.subr.bf16.mxu0 0
    %3049 = vmatpush1.bf16.xpose.msra.mxu0 0
    %3050 = vmatprep.subr.bf16.mxu0 0
    %3051 = vmatpush1.bf16.xpose.msra.mxu0 0
    %3052 = vmatprep.subr.bf16.mxu0 0
    %3053 = vmatpush1.bf16.xpose.msra.mxu0 0
    %3054 = vmatprep.subr.bf16.mxu0 0
    %3055 = vmatpush1.bf16.xpose.msra.mxu0 0
    %3056 = vmatprep.subr.bf16.mxu0 0
    %3057 = vmatpush1.bf16.xpose.msra.mxu0 0
    %3058 = vmatprep.subr.bf16.mxu0 0
    %3059 = vmatpush1.bf16.xpose.msra.mxu0 0
    %3060 = vmatprep.subr.bf16.mxu0 0
    %3061 = vmatpush1.bf16.xpose.msra.mxu0 0
    %3062 = vmatprep.subr.bf16.mxu0 0
    %3063 = vmatpush1.bf16.xpose.msra.mxu0 0
    %3064 = vmatprep.subr.bf16.mxu0 0
    %3065 = vmatpush1.bf16.xpose.msra.mxu0 0
    %3066 = vmatprep.subr.bf16.mxu0 0
    %3067 = vmatpush1.bf16.xpose.msra.mxu0 0
    %3068 = vmatprep.subr.bf16.mxu0 0
    %3069 = vmatpush1.bf16.xpose.msra.mxu0 0
    %3070 = vmatprep.subr.bf16.mxu0 0
    %3071 = vmatpush1.bf16.xpose.msra.mxu0 0
    %3072 = vmatprep.subr.bf16.mxu0 0
    %3073 = vmatpush1.bf16.xpose.msra.mxu0 0
    %3074 = vmatprep.subr.bf16.mxu0 0
    %3075 = vmatpush1.bf16.xpose.msra.mxu0 0
    %3076 = vmatprep.mubr.bf16.mxu0 0
    %3077 = vmatmul.mubr.bf16.gmra.mrb[0].mxu0 %v3039
    %v3078 = vpop.f32.mrb[0].mxu0
    %v3079 = vadd.f32 0.0, %v3078
    %v3080 = vpop.f32.mrb[0].mxu0
    %v3081 = vpop.f32.mrb[0].mxu0
    %v3082 = vpop.f32.mrb[0].mxu0
    %3083 = vdwg.mxu0
    %v3085 = vsel %vm287, %v3008, 0
    %v3088 = vsel %vm287, %v3025, 0
    %3090 = vmatprep.subr.bf16.mxu0 0
    %3091 = vmatpush1.bf16.xpose.msra.mxu0 %v3088
    %3092 = vmatprep.subr.bf16.mxu0 0
    %3093 = vmatpush1.bf16.xpose.msra.mxu0 0
    %3094 = vmatprep.subr.bf16.mxu0 0
    %3095 = vmatpush1.bf16.xpose.msra.mxu0 0
    %3096 = vmatprep.subr.bf16.mxu0 0
    %3097 = vmatpush1.bf16.xpose.msra.mxu0 0
    %3098 = vmatprep.subr.bf16.mxu0 0
    %3099 = vmatpush1.bf16.xpose.msra.mxu0 0
    %3100 = vmatprep.subr.bf16.mxu0 0
    %3101 = vmatpush1.bf16.xpose.msra.mxu0 0
    %3102 = vmatprep.subr.bf16.mxu0 0
    %3103 = vmatpush1.bf16.xpose.msra.mxu0 0
    %3104 = vmatprep.subr.bf16.mxu0 0
    %3105 = vmatpush1.bf16.xpose.msra.mxu0 0
    %3106 = vmatprep.subr.bf16.mxu0 0
    %3107 = vmatpush1.bf16.xpose.msra.mxu0 0
    %3108 = vmatprep.subr.bf16.mxu0 0
    %3109 = vmatpush1.bf16.xpose.msra.mxu0 0
    %3110 = vmatprep.subr.bf16.mxu0 0
    %3111 = vmatpush1.bf16.xpose.msra.mxu0 0
    %3112 = vmatprep.subr.bf16.mxu0 0
    %3113 = vmatpush1.bf16.xpose.msra.mxu0 0
    %3114 = vmatprep.subr.bf16.mxu0 0
    %3115 = vmatpush1.bf16.xpose.msra.mxu0 0
    %3116 = vmatprep.subr.bf16.mxu0 0
    %3117 = vmatpush1.bf16.xpose.msra.mxu0 0
    %3118 = vmatprep.subr.bf16.mxu0 0
    %3119 = vmatpush1.bf16.xpose.msra.mxu0 0
    %3120 = vmatprep.subr.bf16.mxu0 0
    %3121 = vmatpush1.bf16.xpose.msra.mxu0 0
    %3122 = vmatprep.mubr.bf16.mxu0 0
    %3123 = vmatmul.mubr.bf16.gmra.mrb[0].mxu0 %v3085
    %v3124 = vpop.f32.mrb[0].mxu0
    %v3125 = vadd.f32 0.0, %v3124
    %v3126 = vpop.f32.mrb[0].mxu0
    %v3127 = vpop.f32.mrb[0].mxu0
    %v3128 = vpop.f32.mrb[0].mxu0
    %3129 = vdwg.mxu0
    %v3131 = vsel %vm287, %v3010, 0
    %v3134 = vsel %vm287, %v3027, 0
    %3136 = vmatprep.subr.bf16.mxu0 0
    %3137 = vmatpush1.bf16.xpose.msra.mxu0 %v3134
    %3138 = vmatprep.subr.bf16.mxu0 0
    %3139 = vmatpush1.bf16.xpose.msra.mxu0 0
    %3140 = vmatprep.subr.bf16.mxu0 0
    %3141 = vmatpush1.bf16.xpose.msra.mxu0 0
    %3142 = vmatprep.subr.bf16.mxu0 0
    %3143 = vmatpush1.bf16.xpose.msra.mxu0 0
    %3144 = vmatprep.subr.bf16.mxu0 0
    %3145 = vmatpush1.bf16.xpose.msra.mxu0 0
    %3146 = vmatprep.subr.bf16.mxu0 0
    %3147 = vmatpush1.bf16.xpose.msra.mxu0 0
    %3148 = vmatprep.subr.bf16.mxu0 0
    %3149 = vmatpush1.bf16.xpose.msra.mxu0 0
    %3150 = vmatprep.subr.bf16.mxu0 0
    %3151 = vmatpush1.bf16.xpose.msra.mxu0 0
    %3152 = vmatprep.subr.bf16.mxu0 0
    %3153 = vmatpush1.bf16.xpose.msra.mxu0 0
    %3154 = vmatprep.subr.bf16.mxu0 0
    %3155 = vmatpush1.bf16.xpose.msra.mxu0 0
    %3156 = vmatprep.subr.bf16.mxu0 0
    %3157 = vmatpush1.bf16.xpose.msra.mxu0 0
    %3158 = vmatprep.subr.bf16.mxu0 0
    %3159 = vmatpush1.bf16.xpose.msra.mxu0 0
    %3160 = vmatprep.subr.bf16.mxu0 0
    %3161 = vmatpush1.bf16.xpose.msra.mxu0 0
    %3162 = vmatprep.subr.bf16.mxu0 0
    %3163 = vmatpush1.bf16.xpose.msra.mxu0 0
    %3164 = vmatprep.subr.bf16.mxu0 0
    %3165 = vmatpush1.bf16.xpose.msra.mxu0 0
    %3166 = vmatprep.subr.bf16.mxu0 0
    %3167 = vmatpush1.bf16.xpose.msra.mxu0 0
    %3168 = vmatprep.mubr.bf16.mxu0 0
    %3169 = vmatmul.mubr.bf16.gmra.mrb[0].mxu0 %v3131
    %v3170 = vpop.f32.mrb[0].mxu0
    %v3171 = vadd.f32 0.0, %v3170
    %v3172 = vpop.f32.mrb[0].mxu0
    %v3173 = vpop.f32.mrb[0].mxu0
    %v3174 = vpop.f32.mrb[0].mxu0
    %3175 = vdwg.mxu0
    %v3177 = vsel %vm287, %v3012, 0
    %v3180 = vsel %vm287, %v3029, 0
    %3182 = vmatprep.subr.bf16.mxu0 0
    %3183 = vmatpush1.bf16.xpose.msra.mxu0 %v3180
    %3184 = vmatprep.subr.bf16.mxu0 0
    %3185 = vmatpush1.bf16.xpose.msra.mxu0 0
    %3186 = vmatprep.subr.bf16.mxu0 0
    %3187 = vmatpush1.bf16.xpose.msra.mxu0 0
    %3188 = vmatprep.subr.bf16.mxu0 0
    %3189 = vmatpush1.bf16.xpose.msra.mxu0 0
    %3190 = vmatprep.subr.bf16.mxu0 0
    %3191 = vmatpush1.bf16.xpose.msra.mxu0 0
    %3192 = vmatprep.subr.bf16.mxu0 0
    %3193 = vmatpush1.bf16.xpose.msra.mxu0 0
    %3194 = vmatprep.subr.bf16.mxu0 0
    %3195 = vmatpush1.bf16.xpose.msra.mxu0 0
    %3196 = vmatprep.subr.bf16.mxu0 0
    %3197 = vmatpush1.bf16.xpose.msra.mxu0 0
    %3198 = vmatprep.subr.bf16.mxu0 0
    %3199 = vmatpush1.bf16.xpose.msra.mxu0 0
    %3200 = vmatprep.subr.bf16.mxu0 0
    %3201 = vmatpush1.bf16.xpose.msra.mxu0 0
    %3202 = vmatprep.subr.bf16.mxu0 0
    %3203 = vmatpush1.bf16.xpose.msra.mxu0 0
    %3204 = vmatprep.subr.bf16.mxu0 0
    %3205 = vmatpush1.bf16.xpose.msra.mxu0 0
    %3206 = vmatprep.subr.bf16.mxu0 0
    %3207 = vmatpush1.bf16.xpose.msra.mxu0 0
    %3208 = vmatprep.subr.bf16.mxu0 0
    %3209 = vmatpush1.bf16.xpose.msra.mxu0 0
    %3210 = vmatprep.subr.bf16.mxu0 0
    %3211 = vmatpush1.bf16.xpose.msra.mxu0 0
    %3212 = vmatprep.subr.bf16.mxu0 0
    %3213 = vmatpush1.bf16.xpose.msra.mxu0 0
    %3214 = vmatprep.mubr.bf16.mxu0 0
    %3215 = vmatmul.mubr.bf16.gmra.mrb[0].mxu0 %v3177
    %v3216 = vpop.f32.mrb[0].mxu0
    %v3217 = vadd.f32 0.0, %v3216
    %v3218 = vpop.f32.mrb[0].mxu0
    %v3219 = vpop.f32.mrb[0].mxu0
    %v3220 = vpop.f32.mrb[0].mxu0
    %3221 = vdwg.mxu0
    %v3223 = vsel %vm287, %v3014, 0
    %v3226 = vsel %vm287, %v3031, 0
    %3228 = vmatprep.subr.bf16.mxu0 0
    %3229 = vmatpush1.bf16.xpose.msra.mxu0 %v3226
    %3230 = vmatprep.subr.bf16.mxu0 0
    %3231 = vmatpush1.bf16.xpose.msra.mxu0 0
    %3232 = vmatprep.subr.bf16.mxu0 0
    %3233 = vmatpush1.bf16.xpose.msra.mxu0 0
    %3234 = vmatprep.subr.bf16.mxu0 0
    %3235 = vmatpush1.bf16.xpose.msra.mxu0 0
    %3236 = vmatprep.subr.bf16.mxu0 0
    %3237 = vmatpush1.bf16.xpose.msra.mxu0 0
    %3238 = vmatprep.subr.bf16.mxu0 0
    %3239 = vmatpush1.bf16.xpose.msra.mxu0 0
    %3240 = vmatprep.subr.bf16.mxu0 0
    %3241 = vmatpush1.bf16.xpose.msra.mxu0 0
    %3242 = vmatprep.subr.bf16.mxu0 0
    %3243 = vmatpush1.bf16.xpose.msra.mxu0 0
    %3244 = vmatprep.subr.bf16.mxu0 0
    %3245 = vmatpush1.bf16.xpose.msra.mxu0 0
    %3246 = vmatprep.subr.bf16.mxu0 0
    %3247 = vmatpush1.bf16.xpose.msra.mxu0 0
    %3248 = vmatprep.subr.bf16.mxu0 0
    %3249 = vmatpush1.bf16.xpose.msra.mxu0 0
    %3250 = vmatprep.subr.bf16.mxu0 0
    %3251 = vmatpush1.bf16.xpose.msra.mxu0 0
    %3252 = vmatprep.subr.bf16.mxu0 0
    %3253 = vmatpush1.bf16.xpose.msra.mxu0 0
    %3254 = vmatprep.subr.bf16.mxu0 0
    %3255 = vmatpush1.bf16.xpose.msra.mxu0 0
    %3256 = vmatprep.subr.bf16.mxu0 0
    %3257 = vmatpush1.bf16.xpose.msra.mxu0 0
    %3258 = vmatprep.subr.bf16.mxu0 0
    %3259 = vmatpush1.bf16.xpose.msra.mxu0 0
    %3260 = vmatprep.mubr.bf16.mxu0 0
    %3261 = vmatmul.mubr.bf16.gmra.mrb[0].mxu0 %v3223
    %v3262 = vpop.f32.mrb[0].mxu0
    %v3263 = vadd.f32 0.0, %v3262
    %v3264 = vpop.f32.mrb[0].mxu0
    %v3265 = vpop.f32.mrb[0].mxu0
    %v3266 = vpop.f32.mrb[0].mxu0
    %3267 = vdwg.mxu0
    %v3269 = vsel %vm287, %v3016, 0
    %v3272 = vsel %vm287, %v3033, 0
    %3274 = vmatprep.subr.bf16.mxu0 0
    %3275 = vmatpush1.bf16.xpose.msra.mxu0 %v3272
    %3276 = vmatprep.subr.bf16.mxu0 0
    %3277 = vmatpush1.bf16.xpose.msra.mxu0 0
    %3278 = vmatprep.subr.bf16.mxu0 0
    %3279 = vmatpush1.bf16.xpose.msra.mxu0 0
    %3280 = vmatprep.subr.bf16.mxu0 0
    %3281 = vmatpush1.bf16.xpose.msra.mxu0 0
    %3282 = vmatprep.subr.bf16.mxu0 0
    %3283 = vmatpush1.bf16.xpose.msra.mxu0 0
    %3284 = vmatprep.subr.bf16.mxu0 0
    %3285 = vmatpush1.bf16.xpose.msra.mxu0 0
    %3286 = vmatprep.subr.bf16.mxu0 0
    %3287 = vmatpush1.bf16.xpose.msra.mxu0 0
    %3288 = vmatprep.subr.bf16.mxu0 0
    %3289 = vmatpush1.bf16.xpose.msra.mxu0 0
    %3290 = vmatprep.subr.bf16.mxu0 0
    %3291 = vmatpush1.bf16.xpose.msra.mxu0 0
    %3292 = vmatprep.subr.bf16.mxu0 0
    %3293 = vmatpush1.bf16.xpose.msra.mxu0 0
    %3294 = vmatprep.subr.bf16.mxu0 0
    %3295 = vmatpush1.bf16.xpose.msra.mxu0 0
    %3296 = vmatprep.subr.bf16.mxu0 0
    %3297 = vmatpush1.bf16.xpose.msra.mxu0 0
    %3298 = vmatprep.subr.bf16.mxu0 0
    %3299 = vmatpush1.bf16.xpose.msra.mxu0 0
    %3300 = vmatprep.subr.bf16.mxu0 0
    %3301 = vmatpush1.bf16.xpose.msra.mxu0 0
    %3302 = vmatprep.subr.bf16.mxu0 0
    %3303 = vmatpush1.bf16.xpose.msra.mxu0 0
    %3304 = vmatprep.subr.bf16.mxu0 0
    %3305 = vmatpush1.bf16.xpose.msra.mxu0 0
    %3306 = vmatprep.mubr.bf16.mxu0 0
    %3307 = vmatmul.mubr.bf16.gmra.mrb[0].mxu0 %v3269
    %v3308 = vpop.f32.mrb[0].mxu0
    %v3309 = vadd.f32 0.0, %v3308
    %v3310 = vpop.f32.mrb[0].mxu0
    %v3311 = vpop.f32.mrb[0].mxu0
    %v3312 = vpop.f32.mrb[0].mxu0
    %3313 = vdwg.mxu0
    %v3315 = vsel %vm287, %v3018, 0
    %v3318 = vsel %vm287, %v3035, 0
    %3320 = vmatprep.subr.bf16.mxu0 0
    %3321 = vmatpush1.bf16.xpose.msra.mxu0 %v3318
    %3322 = vmatprep.subr.bf16.mxu0 0
    %3323 = vmatpush1.bf16.xpose.msra.mxu0 0
    %3324 = vmatprep.subr.bf16.mxu0 0
    %3325 = vmatpush1.bf16.xpose.msra.mxu0 0
    %3326 = vmatprep.subr.bf16.mxu0 0
    %3327 = vmatpush1.bf16.xpose.msra.mxu0 0
    %3328 = vmatprep.subr.bf16.mxu0 0
    %3329 = vmatpush1.bf16.xpose.msra.mxu0 0
    %3330 = vmatprep.subr.bf16.mxu0 0
    %3331 = vmatpush1.bf16.xpose.msra.mxu0 0
    %3332 = vmatprep.subr.bf16.mxu0 0
    %3333 = vmatpush1.bf16.xpose.msra.mxu0 0
    %3334 = vmatprep.subr.bf16.mxu0 0
    %3335 = vmatpush1.bf16.xpose.msra.mxu0 0
    %3336 = vmatprep.subr.bf16.mxu0 0
    %3337 = vmatpush1.bf16.xpose.msra.mxu0 0
    %3338 = vmatprep.subr.bf16.mxu0 0
    %3339 = vmatpush1.bf16.xpose.msra.mxu0 0
    %3340 = vmatprep.subr.bf16.mxu0 0
    %3341 = vmatpush1.bf16.xpose.msra.mxu0 0
    %3342 = vmatprep.subr.bf16.mxu0 0
    %3343 = vmatpush1.bf16.xpose.msra.mxu0 0
    %3344 = vmatprep.subr.bf16.mxu0 0
    %3345 = vmatpush1.bf16.xpose.msra.mxu0 0
    %3346 = vmatprep.subr.bf16.mxu0 0
    %3347 = vmatpush1.bf16.xpose.msra.mxu0 0
    %3348 = vmatprep.subr.bf16.mxu0 0
    %3349 = vmatpush1.bf16.xpose.msra.mxu0 0
    %3350 = vmatprep.subr.bf16.mxu0 0
    %3351 = vmatpush1.bf16.xpose.msra.mxu0 0
    %3352 = vmatprep.mubr.bf16.mxu0 0
    %3353 = vmatmul.mubr.bf16.gmra.mrb[0].mxu0 %v3315
    %v3354 = vpop.f32.mrb[0].mxu0
    %v3355 = vadd.f32 0.0, %v3354
    %v3356 = vpop.f32.mrb[0].mxu0
    %v3357 = vpop.f32.mrb[0].mxu0
    %v3358 = vpop.f32.mrb[0].mxu0
    %3359 = vdwg.mxu0
    %v3361 = vsel %vm287, %v3020, 0
    %v3364 = vsel %vm287, %v3037, 0
    %3366 = vmatprep.subr.bf16.mxu0 0
    %3367 = vmatpush1.bf16.xpose.msra.mxu0 %v3364
    %3368 = vmatprep.subr.bf16.mxu0 0
    %3369 = vmatpush1.bf16.xpose.msra.mxu0 0
    %3370 = vmatprep.subr.bf16.mxu0 0
    %3371 = vmatpush1.bf16.xpose.msra.mxu0 0
    %3372 = vmatprep.subr.bf16.mxu0 0
    %3373 = vmatpush1.bf16.xpose.msra.mxu0 0
    %3374 = vmatprep.subr.bf16.mxu0 0
    %3375 = vmatpush1.bf16.xpose.msra.mxu0 0
    %3376 = vmatprep.subr.bf16.mxu0 0
    %3377 = vmatpush1.bf16.xpose.msra.mxu0 0
    %3378 = vmatprep.subr.bf16.mxu0 0
    %3379 = vmatpush1.bf16.xpose.msra.mxu0 0
    %3380 = vmatprep.subr.bf16.mxu0 0
    %3381 = vmatpush1.bf16.xpose.msra.mxu0 0
    %3382 = vmatprep.subr.bf16.mxu0 0
    %3383 = vmatpush1.bf16.xpose.msra.mxu0 0
    %3384 = vmatprep.subr.bf16.mxu0 0
    %3385 = vmatpush1.bf16.xpose.msra.mxu0 0
    %3386 = vmatprep.subr.bf16.mxu0 0
    %3387 = vmatpush1.bf16.xpose.msra.mxu0 0
    %3388 = vmatprep.subr.bf16.mxu0 0
    %3389 = vmatpush1.bf16.xpose.msra.mxu0 0
    %3390 = vmatprep.subr.bf16.mxu0 0
    %3391 = vmatpush1.bf16.xpose.msra.mxu0 0
    %3392 = vmatprep.subr.bf16.mxu0 0
    %3393 = vmatpush1.bf16.xpose.msra.mxu0 0
    %3394 = vmatprep.subr.bf16.mxu0 0
    %3395 = vmatpush1.bf16.xpose.msra.mxu0 0
    %3396 = vmatprep.subr.bf16.mxu0 0
    %3397 = vmatpush1.bf16.xpose.msra.mxu0 0
    %3398 = vmatprep.mubr.bf16.mxu0 0
    %3399 = vmatmul.mubr.bf16.gmra.mrb[0].mxu0 %v3361
    %v3400 = vpop.f32.mrb[0].mxu0
    %v3401 = vadd.f32 0.0, %v3400
    %v3402 = vpop.f32.mrb[0].mxu0
    %v3403 = vpop.f32.mrb[0].mxu0
    %v3404 = vpop.f32.mrb[0].mxu0
    %3405 = vdwg.mxu0
    %v3406 = vsel %vm287, %v3079, -inf
    %3407 = vmax.xlane.f32.xlu0 %v3406
    %v3408 = vpop.xlane.xlu0 %3407
    %v3409 = vsel %vm287, %v3125, -inf
    %3410 = vmax.xlane.f32.xlu0 %v3409
    %v3411 = vpop.xlane.xlu0 %3410
    %v3412 = vsel %vm287, %v3171, -inf
    %3413 = vmax.xlane.f32.xlu0 %v3412
    %v3414 = vpop.xlane.xlu0 %3413
    %v3415 = vsel %vm287, %v3217, -inf
    %3416 = vmax.xlane.f32.xlu0 %v3415
    %v3417 = vpop.xlane.xlu0 %3416
    %v3418 = vsel %vm287, %v3263, -inf
    %3419 = vmax.xlane.f32.xlu0 %v3418
    %v3420 = vpop.xlane.xlu0 %3419
    %v3421 = vsel %vm287, %v3309, -inf
    %3422 = vmax.xlane.f32.xlu0 %v3421
    %v3423 = vpop.xlane.xlu0 %3422
    %v3424 = vsel %vm287, %v3355, -inf
    %3425 = vmax.xlane.f32.xlu0 %v3424
    %v3426 = vpop.xlane.xlu0 %3425
    %v3427 = vsel %vm287, %v3401, -inf
    %3428 = vmax.xlane.f32.xlu0 %v3427
    %v3429 = vpop.xlane.xlu0 %3428
    %v3430 = vsub.f32 %v3079, %v3408
    %v3431 = vsub.f32 %v3125, %v3411
    %v3432 = vsub.f32 %v3171, %v3414
    %v3433 = vsub.f32 %v3217, %v3417
    %v3434 = vsub.f32 %v3263, %v3420
    %v3435 = vsub.f32 %v3309, %v3423
    %v3436 = vsub.f32 %v3355, %v3426
    %v3437 = vsub.f32 %v3401, %v3429
    %v3438 = vmul.f32 %v3430, 1.442695
    %v3439 = vpow.pop %v3438
    %v3440 = vmul.f32 %v3431, 1.442695
    %v3441 = vpow.pop %v3440
    %v3442 = vmul.f32 %v3432, 1.442695
    %v3443 = vpow.pop %v3442
    %v3444 = vmul.f32 %v3433, 1.442695
    %v3445 = vpow.pop %v3444
    %v3446 = vmul.f32 %v3434, 1.442695
    %v3447 = vpow.pop %v3446
    %v3448 = vmul.f32 %v3435, 1.442695
    %v3449 = vpow.pop %v3448
    %v3450 = vmul.f32 %v3436, 1.442695
    %v3451 = vpow.pop %v3450
    %v3452 = vmul.f32 %v3437, 1.442695
    %v3453 = vpow.pop %v3452
    %v3454 = vsel %vm287, %v3439, 0.0
    %3455 = vadd.xlane.f32.xlu0 %v3454
    %v3456 = vpop.xlane.xlu0 %3455
    %v3457 = vsel %vm287, %v3441, 0.0
    %3458 = vadd.xlane.f32.xlu0 %v3457
    %v3459 = vpop.xlane.xlu0 %3458
    %v3460 = vsel %vm287, %v3443, 0.0
    %3461 = vadd.xlane.f32.xlu0 %v3460
    %v3462 = vpop.xlane.xlu0 %3461
    %v3463 = vsel %vm287, %v3445, 0.0
    %3464 = vadd.xlane.f32.xlu0 %v3463
    %v3465 = vpop.xlane.xlu0 %3464
    %v3466 = vsel %vm287, %v3447, 0.0
    %3467 = vadd.xlane.f32.xlu0 %v3466
    %v3468 = vpop.xlane.xlu0 %3467
    %v3469 = vsel %vm287, %v3449, 0.0
    %3470 = vadd.xlane.f32.xlu0 %v3469
    %v3471 = vpop.xlane.xlu0 %3470
    %v3472 = vsel %vm287, %v3451, 0.0
    %3473 = vadd.xlane.f32.xlu0 %v3472
    %v3474 = vpop.xlane.xlu0 %3473
    %v3475 = vsel %vm287, %v3453, 0.0
    %3476 = vadd.xlane.f32.xlu0 %v3475
    %v3477 = vpop.xlane.xlu0 %3476
    %v3478 = vrcp.pop %v3456
    %v3479 = vrcp.pop %v3459
    %v3480 = vrcp.pop %v3462
    %v3481 = vrcp.pop %v3465
    %v3482 = vrcp.pop %v3468
    %v3483 = vrcp.pop %v3471
    %v3484 = vrcp.pop %v3474
    %v3485 = vrcp.pop %v3477
    %v3486 = vmul.f32 %v3439, %v3478
    %v3487 = vmul.f32 %v3441, %v3479
    %v3488 = vmul.f32 %v3443, %v3480
    %v3489 = vmul.f32 %v3445, %v3481
    %v3490 = vmul.f32 %v3447, %v3482
    %v3491 = vmul.f32 %v3449, %v3483
    %v3492 = vmul.f32 %v3451, %v3484
    %v3493 = vmul.f32 %v3453, %v3485
    %v3494 = vpack.c.bf16 %v3486, %v3486
    %v3495 = vpack.c.bf16 %v3487, %v3487
    %v3496 = vpack.c.bf16 %v3488, %v3488
    %v3497 = vpack.c.bf16 %v3489, %v3489
    %v3498 = vpack.c.bf16 %v3490, %v3490
    %v3499 = vpack.c.bf16 %v3491, %v3491
    %v3500 = vpack.c.bf16 %v3492, %v3492
    %v3501 = vpack.c.bf16 %v3493, %v3493
    %3502 = vrot.lane.b32.xlu0 %v3024, 96
    %v3503 = vpop.permute.xlu0 %3502
    %v3505 = vsel %vm287, %v3494, 0
    %v3508 = vsel %vm783, %v3503, 0
    %3510 = vmatprep.subr.bf16.mxu0 0
    %3511 = vmatpush1.bf16.msra.mxu0 %v3508
    %3512 = vmatprep.subr.bf16.mxu0 0
    %3513 = vmatpush1.bf16.msra.mxu0 0
    %3514 = vmatprep.subr.bf16.mxu0 0
    %3515 = vmatpush1.bf16.msra.mxu0 0
    %3516 = vmatprep.subr.bf16.mxu0 0
    %3517 = vmatpush1.bf16.msra.mxu0 0
    %3518 = vmatprep.subr.bf16.mxu0 0
    %3519 = vmatpush1.bf16.msra.mxu0 0
    %3520 = vmatprep.subr.bf16.mxu0 0
    %3521 = vmatpush1.bf16.msra.mxu0 0
    %3522 = vmatprep.subr.bf16.mxu0 0
    %3523 = vmatpush1.bf16.msra.mxu0 0
    %3524 = vmatprep.subr.bf16.mxu0 0
    %3525 = vmatpush1.bf16.msra.mxu0 0
    %3526 = vmatprep.subr.bf16.mxu0 0
    %3527 = vmatpush1.bf16.msra.mxu0 0
    %3528 = vmatprep.subr.bf16.mxu0 0
    %3529 = vmatpush1.bf16.msra.mxu0 0
    %3530 = vmatprep.subr.bf16.mxu0 0
    %3531 = vmatpush1.bf16.msra.mxu0 0
    %3532 = vmatprep.subr.bf16.mxu0 0
    %3533 = vmatpush1.bf16.msra.mxu0 0
    %3534 = vmatprep.subr.bf16.mxu0 0
    %3535 = vmatpush1.bf16.msra.mxu0 0
    %3536 = vmatprep.subr.bf16.mxu0 0
    %3537 = vmatpush1.bf16.msra.mxu0 0
    %3538 = vmatprep.subr.bf16.mxu0 0
    %3539 = vmatpush1.bf16.msra.mxu0 0
    %3540 = vmatprep.subr.bf16.mxu0 0
    %3541 = vmatpush1.bf16.msra.mxu0 0
    %3542 = vmatprep.mubr.bf16.mxu0 0
    %3543 = vmatmul.mubr.bf16.gmra.mrb[0].mxu0 %v3505
    %v3544 = vpop.f32.mrb[0].mxu0
    %v3545 = vadd.f32 0.0, %v3544
    %v3546 = vpop.f32.mrb[0].mxu0
    %v3547 = vpop.f32.mrb[0].mxu0
    %v3548 = vpop.f32.mrb[0].mxu0
    %3549 = vdwg.mxu0
    %3550 = vrot.lane.b32.xlu0 %v3025, 96
    %v3551 = vpop.permute.xlu0 %3550
    %v3553 = vsel %vm287, %v3495, 0
    %v3556 = vsel %vm783, %v3551, 0
    %3558 = vmatprep.subr.bf16.mxu0 0
    %3559 = vmatpush1.bf16.msra.mxu0 %v3556
    %3560 = vmatprep.subr.bf16.mxu0 0
    %3561 = vmatpush1.bf16.msra.mxu0 0
    %3562 = vmatprep.subr.bf16.mxu0 0
    %3563 = vmatpush1.bf16.msra.mxu0 0
    %3564 = vmatprep.subr.bf16.mxu0 0
    %3565 = vmatpush1.bf16.msra.mxu0 0
    %3566 = vmatprep.subr.bf16.mxu0 0
    %3567 = vmatpush1.bf16.msra.mxu0 0
    %3568 = vmatprep.subr.bf16.mxu0 0
    %3569 = vmatpush1.bf16.msra.mxu0 0
    %3570 = vmatprep.subr.bf16.mxu0 0
    %3571 = vmatpush1.bf16.msra.mxu0 0
    %3572 = vmatprep.subr.bf16.mxu0 0
    %3573 = vmatpush1.bf16.msra.mxu0 0
    %3574 = vmatprep.subr.bf16.mxu0 0
    %3575 = vmatpush1.bf16.msra.mxu0 0
    %3576 = vmatprep.subr.bf16.mxu0 0
    %3577 = vmatpush1.bf16.msra.mxu0 0
    %3578 = vmatprep.subr.bf16.mxu0 0
    %3579 = vmatpush1.bf16.msra.mxu0 0
    %3580 = vmatprep.subr.bf16.mxu0 0
    %3581 = vmatpush1.bf16.msra.mxu0 0
    %3582 = vmatprep.subr.bf16.mxu0 0
    %3583 = vmatpush1.bf16.msra.mxu0 0
    %3584 = vmatprep.subr.bf16.mxu0 0
    %3585 = vmatpush1.bf16.msra.mxu0 0
    %3586 = vmatprep.subr.bf16.mxu0 0
    %3587 = vmatpush1.bf16.msra.mxu0 0
    %3588 = vmatprep.subr.bf16.mxu0 0
    %3589 = vmatpush1.bf16.msra.mxu0 0
    %3590 = vmatprep.mubr.bf16.mxu0 0
    %3591 = vmatmul.mubr.bf16.gmra.mrb[0].mxu0 %v3553
    %v3592 = vpop.f32.mrb[0].mxu0
    %v3593 = vadd.f32 0.0, %v3592
    %v3594 = vpop.f32.mrb[0].mxu0
    %v3595 = vpop.f32.mrb[0].mxu0
    %v3596 = vpop.f32.mrb[0].mxu0
    %3597 = vdwg.mxu0
    %v3598 = vunpack.c.l.b16 %v3027
    %v3599 = vpack.c.b16 %v3598, %v3598
    %3600 = vrot.lane.b32.xlu0 %v3599, 96
    %v3601 = vpop.permute.xlu0 %3600
    %v3603 = vsel %vm287, %v3496, 0
    %v3606 = vsel %vm783, %v3601, 0
    %3608 = vmatprep.subr.bf16.mxu0 0
    %3609 = vmatpush1.bf16.msra.mxu0 %v3606
    %3610 = vmatprep.subr.bf16.mxu0 0
    %3611 = vmatpush1.bf16.msra.mxu0 0
    %3612 = vmatprep.subr.bf16.mxu0 0
    %3613 = vmatpush1.bf16.msra.mxu0 0
    %3614 = vmatprep.subr.bf16.mxu0 0
    %3615 = vmatpush1.bf16.msra.mxu0 0
    %3616 = vmatprep.subr.bf16.mxu0 0
    %3617 = vmatpush1.bf16.msra.mxu0 0
    %3618 = vmatprep.subr.bf16.mxu0 0
    %3619 = vmatpush1.bf16.msra.mxu0 0
    %3620 = vmatprep.subr.bf16.mxu0 0
    %3621 = vmatpush1.bf16.msra.mxu0 0
    %3622 = vmatprep.subr.bf16.mxu0 0
    %3623 = vmatpush1.bf16.msra.mxu0 0
    %3624 = vmatprep.subr.bf16.mxu0 0
    %3625 = vmatpush1.bf16.msra.mxu0 0
    %3626 = vmatprep.subr.bf16.mxu0 0
    %3627 = vmatpush1.bf16.msra.mxu0 0
    %3628 = vmatprep.subr.bf16.mxu0 0
    %3629 = vmatpush1.bf16.msra.mxu0 0
    %3630 = vmatprep.subr.bf16.mxu0 0
    %3631 = vmatpush1.bf16.msra.mxu0 0
    %3632 = vmatprep.subr.bf16.mxu0 0
    %3633 = vmatpush1.bf16.msra.mxu0 0
    %3634 = vmatprep.subr.bf16.mxu0 0
    %3635 = vmatpush1.bf16.msra.mxu0 0
    %3636 = vmatprep.subr.bf16.mxu0 0
    %3637 = vmatpush1.bf16.msra.mxu0 0
    %3638 = vmatprep.subr.bf16.mxu0 0
    %3639 = vmatpush1.bf16.msra.mxu0 0
    %3640 = vmatprep.mubr.bf16.mxu0 0
    %3641 = vmatmul.mubr.bf16.gmra.mrb[0].mxu0 %v3603
    %v3642 = vpop.f32.mrb[0].mxu0
    %v3643 = vadd.f32 0.0, %v3642
    %v3644 = vpop.f32.mrb[0].mxu0
    %v3645 = vpop.f32.mrb[0].mxu0
    %v3646 = vpop.f32.mrb[0].mxu0
    %3647 = vdwg.mxu0
    %v3648 = vunpack.c.l.b16 %v3029
    %v3649 = vpack.c.b16 %v3648, %v3648
    %3650 = vrot.lane.b32.xlu0 %v3649, 96
    %v3651 = vpop.permute.xlu0 %3650
    %v3653 = vsel %vm287, %v3497, 0
    %v3656 = vsel %vm783, %v3651, 0
    %3658 = vmatprep.subr.bf16.mxu0 0
    %3659 = vmatpush1.bf16.msra.mxu0 %v3656
    %3660 = vmatprep.subr.bf16.mxu0 0
    %3661 = vmatpush1.bf16.msra.mxu0 0
    %3662 = vmatprep.subr.bf16.mxu0 0
    %3663 = vmatpush1.bf16.msra.mxu0 0
    %3664 = vmatprep.subr.bf16.mxu0 0
    %3665 = vmatpush1.bf16.msra.mxu0 0
    %3666 = vmatprep.subr.bf16.mxu0 0
    %3667 = vmatpush1.bf16.msra.mxu0 0
    %3668 = vmatprep.subr.bf16.mxu0 0
    %3669 = vmatpush1.bf16.msra.mxu0 0
    %3670 = vmatprep.subr.bf16.mxu0 0
    %3671 = vmatpush1.bf16.msra.mxu0 0
    %3672 = vmatprep.subr.bf16.mxu0 0
    %3673 = vmatpush1.bf16.msra.mxu0 0
    %3674 = vmatprep.subr.bf16.mxu0 0
    %3675 = vmatpush1.bf16.msra.mxu0 0
    %3676 = vmatprep.subr.bf16.mxu0 0
    %3677 = vmatpush1.bf16.msra.mxu0 0
    %3678 = vmatprep.subr.bf16.mxu0 0
    %3679 = vmatpush1.bf16.msra.mxu0 0
    %3680 = vmatprep.subr.bf16.mxu0 0
    %3681 = vmatpush1.bf16.msra.mxu0 0
    %3682 = vmatprep.subr.bf16.mxu0 0
    %3683 = vmatpush1.bf16.msra.mxu0 0
    %3684 = vmatprep.subr.bf16.mxu0 0
    %3685 = vmatpush1.bf16.msra.mxu0 0
    %3686 = vmatprep.subr.bf16.mxu0 0
    %3687 = vmatpush1.bf16.msra.mxu0 0
    %3688 = vmatprep.subr.bf16.mxu0 0
    %3689 = vmatpush1.bf16.msra.mxu0 0
    %3690 = vmatprep.mubr.bf16.mxu0 0
    %3691 = vmatmul.mubr.bf16.gmra.mrb[0].mxu0 %v3653
    %v3692 = vpop.f32.mrb[0].mxu0
    %v3693 = vadd.f32 0.0, %v3692
    %v3694 = vpop.f32.mrb[0].mxu0
    %v3695 = vpop.f32.mrb[0].mxu0
    %v3696 = vpop.f32.mrb[0].mxu0
    %3697 = vdwg.mxu0
    %v3698 = vunpack.c.l.b16 %v3031
    %v3699 = vpack.c.b16 %v3698, %v3698
    %3700 = vrot.lane.b32.xlu0 %v3699, 96
    %v3701 = vpop.permute.xlu0 %3700
    %v3703 = vsel %vm287, %v3498, 0
    %v3706 = vsel %vm783, %v3701, 0
    %3708 = vmatprep.subr.bf16.mxu0 0
    %3709 = vmatpush1.bf16.msra.mxu0 %v3706
    %3710 = vmatprep.subr.bf16.mxu0 0
    %3711 = vmatpush1.bf16.msra.mxu0 0
    %3712 = vmatprep.subr.bf16.mxu0 0
    %3713 = vmatpush1.bf16.msra.mxu0 0
    %3714 = vmatprep.subr.bf16.mxu0 0
    %3715 = vmatpush1.bf16.msra.mxu0 0
    %3716 = vmatprep.subr.bf16.mxu0 0
    %3717 = vmatpush1.bf16.msra.mxu0 0
    %3718 = vmatprep.subr.bf16.mxu0 0
    %3719 = vmatpush1.bf16.msra.mxu0 0
    %3720 = vmatprep.subr.bf16.mxu0 0
    %3721 = vmatpush1.bf16.msra.mxu0 0
    %3722 = vmatprep.subr.bf16.mxu0 0
    %3723 = vmatpush1.bf16.msra.mxu0 0
    %3724 = vmatprep.subr.bf16.mxu0 0
    %3725 = vmatpush1.bf16.msra.mxu0 0
    %3726 = vmatprep.subr.bf16.mxu0 0
    %3727 = vmatpush1.bf16.msra.mxu0 0
    %3728 = vmatprep.subr.bf16.mxu0 0
    %3729 = vmatpush1.bf16.msra.mxu0 0
    %3730 = vmatprep.subr.bf16.mxu0 0
    %3731 = vmatpush1.bf16.msra.mxu0 0
    %3732 = vmatprep.subr.bf16.mxu0 0
    %3733 = vmatpush1.bf16.msra.mxu0 0
    %3734 = vmatprep.subr.bf16.mxu0 0
    %3735 = vmatpush1.bf16.msra.mxu0 0
    %3736 = vmatprep.subr.bf16.mxu0 0
    %3737 = vmatpush1.bf16.msra.mxu0 0
    %3738 = vmatprep.subr.bf16.mxu0 0
    %3739 = vmatpush1.bf16.msra.mxu0 0
    %3740 = vmatprep.mubr.bf16.mxu0 0
    %3741 = vmatmul.mubr.bf16.gmra.mrb[0].mxu0 %v3703
    %v3742 = vpop.f32.mrb[0].mxu0
    %v3743 = vadd.f32 0.0, %v3742
    %v3744 = vpop.f32.mrb[0].mxu0
    %v3745 = vpop.f32.mrb[0].mxu0
    %v3746 = vpop.f32.mrb[0].mxu0
    %3747 = vdwg.mxu0
    %v3748 = vunpack.c.l.b16 %v3033
    %v3749 = vpack.c.b16 %v3748, %v3748
    %3750 = vrot.lane.b32.xlu0 %v3749, 96
    %v3751 = vpop.permute.xlu0 %3750
    %v3753 = vsel %vm287, %v3499, 0
    %v3756 = vsel %vm783, %v3751, 0
    %3758 = vmatprep.subr.bf16.mxu0 0
    %3759 = vmatpush1.bf16.msra.mxu0 %v3756
    %3760 = vmatprep.subr.bf16.mxu0 0
    %3761 = vmatpush1.bf16.msra.mxu0 0
    %3762 = vmatprep.subr.bf16.mxu0 0
    %3763 = vmatpush1.bf16.msra.mxu0 0
    %3764 = vmatprep.subr.bf16.mxu0 0
    %3765 = vmatpush1.bf16.msra.mxu0 0
    %3766 = vmatprep.subr.bf16.mxu0 0
    %3767 = vmatpush1.bf16.msra.mxu0 0
    %3768 = vmatprep.subr.bf16.mxu0 0
    %3769 = vmatpush1.bf16.msra.mxu0 0
    %3770 = vmatprep.subr.bf16.mxu0 0
    %3771 = vmatpush1.bf16.msra.mxu0 0
    %3772 = vmatprep.subr.bf16.mxu0 0
    %3773 = vmatpush1.bf16.msra.mxu0 0
    %3774 = vmatprep.subr.bf16.mxu0 0
    %3775 = vmatpush1.bf16.msra.mxu0 0
    %3776 = vmatprep.subr.bf16.mxu0 0
    %3777 = vmatpush1.bf16.msra.mxu0 0
    %3778 = vmatprep.subr.bf16.mxu0 0
    %3779 = vmatpush1.bf16.msra.mxu0 0
    %3780 = vmatprep.subr.bf16.mxu0 0
    %3781 = vmatpush1.bf16.msra.mxu0 0
    %3782 = vmatprep.subr.bf16.mxu0 0
    %3783 = vmatpush1.bf16.msra.mxu0 0
    %3784 = vmatprep.subr.bf16.mxu0 0
    %3785 = vmatpush1.bf16.msra.mxu0 0
    %3786 = vmatprep.subr.bf16.mxu0 0
    %3787 = vmatpush1.bf16.msra.mxu0 0
    %3788 = vmatprep.subr.bf16.mxu0 0
    %3789 = vmatpush1.bf16.msra.mxu0 0
    %3790 = vmatprep.mubr.bf16.mxu0 0
    %3791 = vmatmul.mubr.bf16.gmra.mrb[0].mxu0 %v3753
    %v3792 = vpop.f32.mrb[0].mxu0
    %v3793 = vadd.f32 0.0, %v3792
    %v3794 = vpop.f32.mrb[0].mxu0
    %v3795 = vpop.f32.mrb[0].mxu0
    %v3796 = vpop.f32.mrb[0].mxu0
    %3797 = vdwg.mxu0
    %v3798 = vunpack.c.l.b16 %v3035
    %v3799 = vpack.c.b16 %v3798, %v3798
    %3800 = vrot.lane.b32.xlu0 %v3799, 96
    %v3801 = vpop.permute.xlu0 %3800
    %v3803 = vsel %vm287, %v3500, 0
    %v3806 = vsel %vm783, %v3801, 0
    %3808 = vmatprep.subr.bf16.mxu0 0
    %3809 = vmatpush1.bf16.msra.mxu0 %v3806
    %3810 = vmatprep.subr.bf16.mxu0 0
    %3811 = vmatpush1.bf16.msra.mxu0 0
    %3812 = vmatprep.subr.bf16.mxu0 0
    %3813 = vmatpush1.bf16.msra.mxu0 0
    %3814 = vmatprep.subr.bf16.mxu0 0
    %3815 = vmatpush1.bf16.msra.mxu0 0
    %3816 = vmatprep.subr.bf16.mxu0 0
    %3817 = vmatpush1.bf16.msra.mxu0 0
    %3818 = vmatprep.subr.bf16.mxu0 0
    %3819 = vmatpush1.bf16.msra.mxu0 0
    %3820 = vmatprep.subr.bf16.mxu0 0
    %3821 = vmatpush1.bf16.msra.mxu0 0
    %3822 = vmatprep.subr.bf16.mxu0 0
    %3823 = vmatpush1.bf16.msra.mxu0 0
    %3824 = vmatprep.subr.bf16.mxu0 0
    %3825 = vmatpush1.bf16.msra.mxu0 0
    %3826 = vmatprep.subr.bf16.mxu0 0
    %3827 = vmatpush1.bf16.msra.mxu0 0
    %3828 = vmatprep.subr.bf16.mxu0 0
    %3829 = vmatpush1.bf16.msra.mxu0 0
    %3830 = vmatprep.subr.bf16.mxu0 0
    %3831 = vmatpush1.bf16.msra.mxu0 0
    %3832 = vmatprep.subr.bf16.mxu0 0
    %3833 = vmatpush1.bf16.msra.mxu0 0
    %3834 = vmatprep.subr.bf16.mxu0 0
    %3835 = vmatpush1.bf16.msra.mxu0 0
    %3836 = vmatprep.subr.bf16.mxu0 0
    %3837 = vmatpush1.bf16.msra.mxu0 0
    %3838 = vmatprep.subr.bf16.mxu0 0
    %3839 = vmatpush1.bf16.msra.mxu0 0
    %3840 = vmatprep.mubr.bf16.mxu0 0
    %3841 = vmatmul.mubr.bf16.gmra.mrb[0].mxu0 %v3803
    %v3842 = vpop.f32.mrb[0].mxu0
    %v3843 = vadd.f32 0.0, %v3842
    %v3844 = vpop.f32.mrb[0].mxu0
    %v3845 = vpop.f32.mrb[0].mxu0
    %v3846 = vpop.f32.mrb[0].mxu0
    %3847 = vdwg.mxu0
    %v3848 = vunpack.c.l.b16 %v3037
    %v3849 = vpack.c.b16 %v3848, %v3848
    %3850 = vrot.lane.b32.xlu0 %v3849, 96
    %v3851 = vpop.permute.xlu0 %3850
    %v3853 = vsel %vm287, %v3501, 0
    %v3856 = vsel %vm783, %v3851, 0
    %3858 = vmatprep.subr.bf16.mxu0 0
    %3859 = vmatpush1.bf16.msra.mxu0 %v3856
    %3860 = vmatprep.subr.bf16.mxu0 0
    %3861 = vmatpush1.bf16.msra.mxu0 0
    %3862 = vmatprep.subr.bf16.mxu0 0
    %3863 = vmatpush1.bf16.msra.mxu0 0
    %3864 = vmatprep.subr.bf16.mxu0 0
    %3865 = vmatpush1.bf16.msra.mxu0 0
    %3866 = vmatprep.subr.bf16.mxu0 0
    %3867 = vmatpush1.bf16.msra.mxu0 0
    %3868 = vmatprep.subr.bf16.mxu0 0
    %3869 = vmatpush1.bf16.msra.mxu0 0
    %3870 = vmatprep.subr.bf16.mxu0 0
    %3871 = vmatpush1.bf16.msra.mxu0 0
    %3872 = vmatprep.subr.bf16.mxu0 0
    %3873 = vmatpush1.bf16.msra.mxu0 0
    %3874 = vmatprep.subr.bf16.mxu0 0
    %3875 = vmatpush1.bf16.msra.mxu0 0
    %3876 = vmatprep.subr.bf16.mxu0 0
    %3877 = vmatpush1.bf16.msra.mxu0 0
    %3878 = vmatprep.subr.bf16.mxu0 0
    %3879 = vmatpush1.bf16.msra.mxu0 0
    %3880 = vmatprep.subr.bf16.mxu0 0
    %3881 = vmatpush1.bf16.msra.mxu0 0
    %3882 = vmatprep.subr.bf16.mxu0 0
    %3883 = vmatpush1.bf16.msra.mxu0 0
    %3884 = vmatprep.subr.bf16.mxu0 0
    %3885 = vmatpush1.bf16.msra.mxu0 0
    %3886 = vmatprep.subr.bf16.mxu0 0
    %3887 = vmatpush1.bf16.msra.mxu0 0
    %3888 = vmatprep.subr.bf16.mxu0 0
    %3889 = vmatpush1.bf16.msra.mxu0 0
    %3890 = vmatprep.mubr.bf16.mxu0 0
    %3891 = vmatmul.mubr.bf16.gmra.mrb[0].mxu0 %v3853
    %v3892 = vpop.f32.mrb[0].mxu0
    %v3893 = vadd.f32 0.0, %v3892
    %v3894 = vpop.f32.mrb[0].mxu0
    %v3895 = vpop.f32.mrb[0].mxu0
    %v3896 = vpop.f32.mrb[0].mxu0
    %3897 = vdwg.mxu0
    %v3898 = vpack.c.bf16 %v3593, %v3545
    %v3899 = vpack.c.bf16 %v3693, %v3643
    %v3900 = vpack.c.bf16 %v3793, %v3743
    %v3901 = vpack.c.bf16 %v3893, %v3843
    %v3903 = vsel %vm287, %v3898, 0
    %v3906 = vsel %vm783, %v2873, 0
    %3908 = vmatprep.subr.bf16.mxu0 0
    %3909 = vmatpush1.bf16.msra.mxu0 %v3906
    %3910 = vmatprep.subr.bf16.mxu0 0
    %3911 = vmatpush1.bf16.msra.mxu0 0
    %3912 = vmatprep.subr.bf16.mxu0 0
    %3913 = vmatpush1.bf16.msra.mxu0 0
    %3914 = vmatprep.subr.bf16.mxu0 0
    %3915 = vmatpush1.bf16.msra.mxu0 0
    %3916 = vmatprep.subr.bf16.mxu0 0
    %3917 = vmatpush1.bf16.msra.mxu0 0
    %3918 = vmatprep.subr.bf16.mxu0 0
    %3919 = vmatpush1.bf16.msra.mxu0 0
    %3920 = vmatprep.subr.bf16.mxu0 0
    %3921 = vmatpush1.bf16.msra.mxu0 0
    %3922 = vmatprep.subr.bf16.mxu0 0
    %3923 = vmatpush1.bf16.msra.mxu0 0
    %3924 = vmatprep.subr.bf16.mxu0 0
    %3925 = vmatpush1.bf16.msra.mxu0 0
    %3926 = vmatprep.subr.bf16.mxu0 0
    %3927 = vmatpush1.bf16.msra.mxu0 0
    %3928 = vmatprep.subr.bf16.mxu0 0
    %3929 = vmatpush1.bf16.msra.mxu0 0
    %3930 = vmatprep.subr.bf16.mxu0 0
    %3931 = vmatpush1.bf16.msra.mxu0 0
    %3932 = vmatprep.subr.bf16.mxu0 0
    %3933 = vmatpush1.bf16.msra.mxu0 0
    %3934 = vmatprep.subr.bf16.mxu0 0
    %3935 = vmatpush1.bf16.msra.mxu0 0
    %3936 = vmatprep.subr.bf16.mxu0 0
    %3937 = vmatpush1.bf16.msra.mxu0 0
    %3938 = vmatprep.subr.bf16.mxu0 0
    %3939 = vmatpush1.bf16.msra.mxu0 0
    %3940 = vmatprep.mubr.bf16.mxu0 0
    %3941 = vmatmul.mubr.bf16.gmra.mrb[0].mxu0 %v3903
    %v3942 = vpop.f32.mrb[0].mxu0
    %v3943 = vadd.f32 0.0, %v3942
    %v3944 = vpop.f32.mrb[0].mxu0
    %v3945 = vpop.f32.mrb[0].mxu0
    %v3946 = vadd.f32 0.0, %v3945
    %v3947 = vpop.f32.mrb[0].mxu0
    %3948 = vdwg.mxu0
    %v3950 = vsel %vm287, %v3899, 0
    %v3953 = vsel %vm783, %v2874, 0
    %3955 = vmatprep.subr.bf16.mxu0 0
    %3956 = vmatpush1.bf16.msra.mxu0 %v3953
    %3957 = vmatprep.subr.bf16.mxu0 0
    %3958 = vmatpush1.bf16.msra.mxu0 0
    %3959 = vmatprep.subr.bf16.mxu0 0
    %3960 = vmatpush1.bf16.msra.mxu0 0
    %3961 = vmatprep.subr.bf16.mxu0 0
    %3962 = vmatpush1.bf16.msra.mxu0 0
    %3963 = vmatprep.subr.bf16.mxu0 0
    %3964 = vmatpush1.bf16.msra.mxu0 0
    %3965 = vmatprep.subr.bf16.mxu0 0
    %3966 = vmatpush1.bf16.msra.mxu0 0
    %3967 = vmatprep.subr.bf16.mxu0 0
    %3968 = vmatpush1.bf16.msra.mxu0 0
    %3969 = vmatprep.subr.bf16.mxu0 0
    %3970 = vmatpush1.bf16.msra.mxu0 0
    %3971 = vmatprep.subr.bf16.mxu0 0
    %3972 = vmatpush1.bf16.msra.mxu0 0
    %3973 = vmatprep.subr.bf16.mxu0 0
    %3974 = vmatpush1.bf16.msra.mxu0 0
    %3975 = vmatprep.subr.bf16.mxu0 0
    %3976 = vmatpush1.bf16.msra.mxu0 0
    %3977 = vmatprep.subr.bf16.mxu0 0
    %3978 = vmatpush1.bf16.msra.mxu0 0
    %3979 = vmatprep.subr.bf16.mxu0 0
    %3980 = vmatpush1.bf16.msra.mxu0 0
    %3981 = vmatprep.subr.bf16.mxu0 0
    %3982 = vmatpush1.bf16.msra.mxu0 0
    %3983 = vmatprep.subr.bf16.mxu0 0
    %3984 = vmatpush1.bf16.msra.mxu0 0
    %3985 = vmatprep.subr.bf16.mxu0 0
    %3986 = vmatpush1.bf16.msra.mxu0 0
    %3987 = vmatprep.mubr.bf16.mxu0 0
    %3988 = vmatmul.mubr.bf16.gmra.mrb[0].mxu0 %v3950
    %v3989 = vpop.f32.mrb[0].mxu0
    %v3990 = vadd.f32 0.0, %v3989
    %v3991 = vpop.f32.mrb[0].mxu0
    %v3992 = vpop.f32.mrb[0].mxu0
    %v3993 = vadd.f32 0.0, %v3992
    %v3994 = vpop.f32.mrb[0].mxu0
    %3995 = vdwg.mxu0
    %v3997 = vsel %vm287, %v3900, 0
    %v4000 = vsel %vm783, %v2875, 0
    %4002 = vmatprep.subr.bf16.mxu0 0
    %4003 = vmatpush1.bf16.msra.mxu0 %v4000
    %4004 = vmatprep.subr.bf16.mxu0 0
    %4005 = vmatpush1.bf16.msra.mxu0 0
    %4006 = vmatprep.subr.bf16.mxu0 0
    %4007 = vmatpush1.bf16.msra.mxu0 0
    %4008 = vmatprep.subr.bf16.mxu0 0
    %4009 = vmatpush1.bf16.msra.mxu0 0
    %4010 = vmatprep.subr.bf16.mxu0 0
    %4011 = vmatpush1.bf16.msra.mxu0 0
    %4012 = vmatprep.subr.bf16.mxu0 0
    %4013 = vmatpush1.bf16.msra.mxu0 0
    %4014 = vmatprep.subr.bf16.mxu0 0
    %4015 = vmatpush1.bf16.msra.mxu0 0
    %4016 = vmatprep.subr.bf16.mxu0 0
    %4017 = vmatpush1.bf16.msra.mxu0 0
    %4018 = vmatprep.subr.bf16.mxu0 0
    %4019 = vmatpush1.bf16.msra.mxu0 0
    %4020 = vmatprep.subr.bf16.mxu0 0
    %4021 = vmatpush1.bf16.msra.mxu0 0
    %4022 = vmatprep.subr.bf16.mxu0 0
    %4023 = vmatpush1.bf16.msra.mxu0 0
    %4024 = vmatprep.subr.bf16.mxu0 0
    %4025 = vmatpush1.bf16.msra.mxu0 0
    %4026 = vmatprep.subr.bf16.mxu0 0
    %4027 = vmatpush1.bf16.msra.mxu0 0
    %4028 = vmatprep.subr.bf16.mxu0 0
    %4029 = vmatpush1.bf16.msra.mxu0 0
    %4030 = vmatprep.subr.bf16.mxu0 0
    %4031 = vmatpush1.bf16.msra.mxu0 0
    %4032 = vmatprep.subr.bf16.mxu0 0
    %4033 = vmatpush1.bf16.msra.mxu0 0
    %4034 = vmatprep.mubr.bf16.mxu0 0
    %4035 = vmatmul.mubr.bf16.gmra.mrb[0].mxu0 %v3997
    %v4036 = vpop.f32.mrb[0].mxu0
    %v4037 = vadd.f32 0.0, %v4036
    %v4038 = vpop.f32.mrb[0].mxu0
    %v4039 = vpop.f32.mrb[0].mxu0
    %v4040 = vadd.f32 0.0, %v4039
    %v4041 = vpop.f32.mrb[0].mxu0
    %4042 = vdwg.mxu0
    %v4044 = vsel %vm287, %v3901, 0
    %v4047 = vsel %vm783, %v2876, 0
    %4049 = vmatprep.subr.bf16.mxu0 0
    %4050 = vmatpush1.bf16.msra.mxu0 %v4047
    %4051 = vmatprep.subr.bf16.mxu0 0
    %4052 = vmatpush1.bf16.msra.mxu0 0
    %4053 = vmatprep.subr.bf16.mxu0 0
    %4054 = vmatpush1.bf16.msra.mxu0 0
    %4055 = vmatprep.subr.bf16.mxu0 0
    %4056 = vmatpush1.bf16.msra.mxu0 0
    %4057 = vmatprep.subr.bf16.mxu0 0
    %4058 = vmatpush1.bf16.msra.mxu0 0
    %4059 = vmatprep.subr.bf16.mxu0 0
    %4060 = vmatpush1.bf16.msra.mxu0 0
    %4061 = vmatprep.subr.bf16.mxu0 0
    %4062 = vmatpush1.bf16.msra.mxu0 0
    %4063 = vmatprep.subr.bf16.mxu0 0
    %4064 = vmatpush1.bf16.msra.mxu0 0
    %4065 = vmatprep.subr.bf16.mxu0 0
    %4066 = vmatpush1.bf16.msra.mxu0 0
    %4067 = vmatprep.subr.bf16.mxu0 0
    %4068 = vmatpush1.bf16.msra.mxu0 0
    %4069 = vmatprep.subr.bf16.mxu0 0
    %4070 = vmatpush1.bf16.msra.mxu0 0
    %4071 = vmatprep.subr.bf16.mxu0 0
    %4072 = vmatpush1.bf16.msra.mxu0 0
    %4073 = vmatprep.subr.bf16.mxu0 0
    %4074 = vmatpush1.bf16.msra.mxu0 0
    %4075 = vmatprep.subr.bf16.mxu0 0
    %4076 = vmatpush1.bf16.msra.mxu0 0
    %4077 = vmatprep.subr.bf16.mxu0 0
    %4078 = vmatpush1.bf16.msra.mxu0 0
    %4079 = vmatprep.subr.bf16.mxu0 0
    %4080 = vmatpush1.bf16.msra.mxu0 0
    %4081 = vmatprep.mubr.bf16.mxu0 0
    %4082 = vmatmul.mubr.bf16.gmra.mrb[0].mxu0 %v4044
    %v4083 = vpop.f32.mrb[0].mxu0
    %v4084 = vadd.f32 0.0, %v4083
    %v4085 = vpop.f32.mrb[0].mxu0
    %v4086 = vpop.f32.mrb[0].mxu0
    %v4087 = vadd.f32 0.0, %v4086
    %v4088 = vpop.f32.mrb[0].mxu0
    %4089 = vdwg.mxu0
    %v4090 = vsel %vm150, %v3943, 0.0
    %v4091 = vsel %vm150, %v3990, 0.0
    %v4092 = vadd.f32 %v4090, %v4091
    %v4093 = vsel %vm150, %v4037, 0.0
    %v4094 = vadd.f32 %v4092, %v4093
    %v4095 = vsel %vm150, %v4084, 0.0
    %v4096 = vadd.f32 %v4094, %v4095
    %v4097 = vsel %vm150, %v3946, 0.0
    %v4098 = vsel %vm150, %v3993, 0.0
    %v4099 = vadd.f32 %v4097, %v4098
    %v4100 = vsel %vm150, %v4040, 0.0
    %v4101 = vadd.f32 %v4099, %v4100
    %v4102 = vsel %vm150, %v4087, 0.0
    %v4103 = vadd.f32 %v4101, %v4102
    %v4105 = vlaneseq
    %v4106 = vshrl.u32 %v4105, 7
    %v4107 = vsub.s32 0, %v4106
    %v4108 = vrot.slane %v2877, %v4107
    %v4110 = vadd.f32 %v4096, %v4108
    %v4111 = vadd.f32 %v4103, %v4108
    %v4112 = vadd.f32 %v2816, %v4110
    %v4113 = vadd.f32 %v2817, %v4111
    %v4114 = vld [vmem:[%s57] sm:$0x1]
    %v4115 = vld [vmem:[%s59] sm:$0x1]
    %v4116 = vsel %vm150, %v4112, 0.0
    %4117 = vadd.xlane.f32.xlu0 %v4116
    %v4118 = vpop.xlane.xlu0 %4117
    %v4119 = vsel %vm150, %v4113, 0.0
    %4120 = vadd.xlane.f32.xlu0 %v4119
    %v4121 = vpop.xlane.xlu0 %4120
    %v4122 = vmul.f32 %v4118, %v157
    %v4123 = vmul.f32 %v4121, %v157
    %v4124 = vsub.f32 %v4112, %v4122
    %v4125 = vsub.f32 %v4113, %v4123
    %v4126 = vmul.f32 %v4124, %v4124
    %v4127 = vmul.f32 %v4125, %v4125
    %v4128 = vsel %vm150, %v4126, 0.0
    %4129 = vadd.xlane.f32.xlu0 %v4128
    %v4130 = vpop.xlane.xlu0 %4129
    %v4131 = vsel %vm150, %v4127, 0.0
    %4132 = vadd.xlane.f32.xlu0 %v4131
    %v4133 = vpop.xlane.xlu0 %4132
    %v4134 = vmul.f32 %v4130, %v157
    %v4135 = vmul.f32 %v4133, %v157
    %v4136 = vadd.f32 %v4134, 1e-05
    %v4137 = vadd.f32 %v4135, 1e-05
    %v4138 = vrsqrt.pop %v4136
    %v4139 = vrsqrt.pop %v4137
    %v4140 = vmul.f32 %v4124, %v4138
    %v4141 = vmul.f32 %v4125, %v4139
    %v4143 = vlaneseq
    %v4144 = vshrl.u32 %v4143, 7
    %v4145 = vsub.s32 0, %v4144
    %v4146 = vrot.slane %v4114, %v4145
    %v4148 = vmul.f32 %v4140, %v4146
    %v4149 = vmul.f32 %v4141, %v4146
    %v4151 = vlaneseq
    %v4152 = vshrl.u32 %v4151, 7
    %v4153 = vsub.s32 0, %v4152
    %v4154 = vrot.slane %v4115, %v4153
    %v4156 = vadd.f32 %v4148, %v4154
    %v4157 = vadd.f32 %v4149, %v4154
    %v4158 = vpack.c.bf16 %v4157, %v4156
    %v4159 = vld [vmem:[%s61] sm:$0xf]
    %v4160 = vld [vmem:[%s61 + $0x4] sm:$0xf]
    %v4161 = vld [vmem:[%s61 + $0x8] sm:$0xf]
    %v4162 = vld [vmem:[%s61 + $0xc] sm:$0xf]
    %v4163 = vld [vmem:[%s63] sm:$0x1]
    %v4164 = vld [vmem:[%s65] sm:$0xf]
    %v4165 = vld [vmem:[%s65 + $0x4] sm:$0xf]
    %v4166 = vld [vmem:[%s65 + $0x8] sm:$0xf]
    %v4167 = vld [vmem:[%s65 + $0xc] sm:$0xf]
    %v4168 = vld [vmem:[%s65 + $0x10] sm:$0xf]
    %v4169 = vld [vmem:[%s65 + $0x14] sm:$0xf]
    %v4170 = vld [vmem:[%s65 + $0x18] sm:$0xf]
    %v4171 = vld [vmem:[%s65 + $0x1c] sm:$0xf]
    %v4172 = vld [vmem:[%s67] sm:$0x1]
    %v4174 = vlaneseq
    %v4175 = vshrl.u32 %v4174, 7
    %v4176 = vsub.s32 0, %v4175
    %v4177 = vrot.slane %v4163, %v4176
    %v4183 = vunpack.c.l.b16 %v4159
    %v4184 = vunpack.c.l.b16 %v4160
    %v4185 = vunpack.c.l.b16 %v4161
    %v4186 = vunpack.c.l.b16 %v4162
    %v4187 = vpack.c.b16 %v4184, %v4183
    %v4188 = vpack.c.b16 %v4186, %v4185
    %v4192 = vsel %vm150, %v4158, 0
    %4194 = vmatprep.subr.bf16.mxu0 0
    %4195 = vmatpush1.bf16.msra.mxu0 %v4187
    %4196 = vmatprep.subr.bf16.mxu0 0
    %4197 = vmatpush1.bf16.msra.mxu0 %v4188
    %4198 = vmatprep.subr.bf16.mxu0 0
    %4199 = vmatpush1.bf16.msra.mxu0 0
    %4200 = vmatprep.subr.bf16.mxu0 0
    %4201 = vmatpush1.bf16.msra.mxu0 0
    %4202 = vmatprep.subr.bf16.mxu0 0
    %4203 = vmatpush1.bf16.msra.mxu0 0
    %4204 = vmatprep.subr.bf16.mxu0 0
    %4205 = vmatpush1.bf16.msra.mxu0 0
    %4206 = vmatprep.subr.bf16.mxu0 0
    %4207 = vmatpush1.bf16.msra.mxu0 0
    %4208 = vmatprep.subr.bf16.mxu0 0
    %4209 = vmatpush1.bf16.msra.mxu0 0
    %4210 = vmatprep.subr.bf16.mxu0 0
    %4211 = vmatpush1.bf16.msra.mxu0 0
    %4212 = vmatprep.subr.bf16.mxu0 0
    %4213 = vmatpush1.bf16.msra.mxu0 0
    %4214 = vmatprep.subr.bf16.mxu0 0
    %4215 = vmatpush1.bf16.msra.mxu0 0
    %4216 = vmatprep.subr.bf16.mxu0 0
    %4217 = vmatpush1.bf16.msra.mxu0 0
    %4218 = vmatprep.subr.bf16.mxu0 0
    %4219 = vmatpush1.bf16.msra.mxu0 0
    %4220 = vmatprep.subr.bf16.mxu0 0
    %4221 = vmatpush1.bf16.msra.mxu0 0
    %4222 = vmatprep.subr.bf16.mxu0 0
    %4223 = vmatpush1.bf16.msra.mxu0 0
    %4224 = vmatprep.subr.bf16.mxu0 0
    %4225 = vmatpush1.bf16.msra.mxu0 0
    %4226 = vmatprep.mubr.bf16.mxu0 0
    %4227 = vmatmul.mubr.bf16.gmra.mrb[0].mxu0 %v4192
    %v4228 = vpop.f32.mrb[0].mxu0
    %v4229 = vadd.f32 %v4177, %v4228
    %v4230 = vpop.f32.mrb[0].mxu0
    %v4231 = vpop.f32.mrb[0].mxu0
    %v4232 = vadd.f32 %v4177, %v4231
    %v4233 = vpop.f32.mrb[0].mxu0
    %4234 = vdwg.mxu0
    %v4235 = vmax.f32 %v4229, 0.0
    %v4236 = vmax.f32 %v4232, 0.0
    %v4237 = vpack.c.bf16 %v4236, %v4235
    %v4239 = vlaneseq
    %v4240 = vshrl.u32 %v4239, 7
    %v4241 = vsub.s32 0, %v4240
    %v4242 = vrot.slane %v4172, %v4241
    %v4252 = vunpack.c.l.b16 %v4164
    %v4253 = vunpack.c.l.b16 %v4165
    %v4254 = vunpack.c.l.b16 %v4166
    %v4255 = vunpack.c.l.b16 %v4167
    %v4256 = vunpack.c.l.b16 %v4168
    %v4257 = vunpack.c.l.b16 %v4169
    %v4258 = vunpack.c.l.b16 %v4170
    %v4259 = vunpack.c.l.b16 %v4171
    %v4260 = vpack.c.b16 %v4253, %v4252
    %v4261 = vpack.c.b16 %v4255, %v4254
    %v4262 = vpack.c.b16 %v4257, %v4256
    %v4263 = vpack.c.b16 %v4259, %v4258
    %v4269 = vsel %vm1533, %v4237, 0
    %4271 = vmatprep.subr.bf16.mxu0 0
    %4272 = vmatpush1.bf16.msra.mxu0 %v4260
    %4273 = vmatprep.subr.bf16.mxu0 0
    %4274 = vmatpush1.bf16.msra.mxu0 %v4261
    %4275 = vmatprep.subr.bf16.mxu0 0
    %4276 = vmatpush1.bf16.msra.mxu0 %v4262
    %4277 = vmatprep.subr.bf16.mxu0 0
    %4278 = vmatpush1.bf16.msra.mxu0 %v4263
    %4279 = vmatprep.subr.bf16.mxu0 0
    %4280 = vmatpush1.bf16.msra.mxu0 0
    %4281 = vmatprep.subr.bf16.mxu0 0
    %4282 = vmatpush1.bf16.msra.mxu0 0
    %4283 = vmatprep.subr.bf16.mxu0 0
    %4284 = vmatpush1.bf16.msra.mxu0 0
    %4285 = vmatprep.subr.bf16.mxu0 0
    %4286 = vmatpush1.bf16.msra.mxu0 0
    %4287 = vmatprep.subr.bf16.mxu0 0
    %4288 = vmatpush1.bf16.msra.mxu0 0
    %4289 = vmatprep.subr.bf16.mxu0 0
    %4290 = vmatpush1.bf16.msra.mxu0 0
    %4291 = vmatprep.subr.bf16.mxu0 0
    %4292 = vmatpush1.bf16.msra.mxu0 0
    %4293 = vmatprep.subr.bf16.mxu0 0
    %4294 = vmatpush1.bf16.msra.mxu0 0
    %4295 = vmatprep.subr.bf16.mxu0 0
    %4296 = vmatpush1.bf16.msra.mxu0 0
    %4297 = vmatprep.subr.bf16.mxu0 0
    %4298 = vmatpush1.bf16.msra.mxu0 0
    %4299 = vmatprep.subr.bf16.mxu0 0
    %4300 = vmatpush1.bf16.msra.mxu0 0
    %4301 = vmatprep.subr.bf16.mxu0 0
    %4302 = vmatpush1.bf16.msra.mxu0 0
    %4303 = vmatprep.mubr.bf16.mxu0 0
    %4304 = vmatmul.mubr.bf16.gmra.mrb[0].mxu0 %v4269
    %v4305 = vpop.f32.mrb[0].mxu0
    %v4306 = vadd.f32 %v4242, %v4305
    %v4307 = vpop.f32.mrb[0].mxu0
    %v4308 = vpop.f32.mrb[0].mxu0
    %v4309 = vadd.f32 %v4242, %v4308
    %v4310 = vpop.f32.mrb[0].mxu0
    %4311 = vdwg.mxu0
    %v4312 = vadd.f32 %v4112, %v4306
    %v4313 = vadd.f32 %v4113, %v4309
    %4314 = vst.msk [vmem:[#allocation2] sm:$0xff] %vm150, %v4312
    %4315 = vst.msk [vmem:[#allocation2 + $0x8] sm:$0xff] %vm150, %v4313
    // Predicated region
    $region138: #{encoder_decoder_forward.1} parent=1 // pred_check
      _
    $region139: #{encoder_decoder_forward.1} parent=1 // pred_check_branch
      %4317 = sbr.rel (0) target = $region141
    $region140: #{encoder_decoder_forward.1} parent=1 // pred_region
      %s4319 = ssub.s32 256, 256
      %4320 = vsyncadd [#allocation3], %s4319
      %s4321 = sshll.u32 [#allocation2], 4
      %s4322 = int_to_ptr.vmem [resolvable:$true] %s4321
      %4327 = dma.vmem_to_hbm [thread:$0]  %s4322, 256, %s69, [#allocation3], 128, 128, 8
    $region141: #{encoder_decoder_forward.1} parent=1 // pred_fallthru
      _
    // Predicated region
    $region142: #{encoder_decoder_forward.1} parent=1 // pred_check
      _
    $region143: #{encoder_decoder_forward.1} parent=1 // pred_check_branch
      %4329 = sbr.rel (0) target = $region145
    $region144: #{encoder_decoder_forward.1} parent=1 // pred_region
      %4330 = dma.done [#allocation3], 256
    $region145: #{encoder_decoder_forward.1} parent=1 // pred_fallthru
      _
    %4331 = vsyncpa [#allocation3], 1

</llo_original>
